<compile_context>
chip_gen: v5e
topology: v5e:2x2
jax: 0.10.0
libtpu: 0.0.40
codegen_flags: <defaults>
</compile_context>

<pallas_src>
import functools

import jax
import jax.numpy as jnp
from jax.experimental import pallas as pl
from jax.experimental.pallas import tpu as pltpu

LANES = 128


def _round_up(x, m):
    return ((x + m - 1) // m) * m


def fused_unet_conv2_kernel(x_ref, *rest):
    """n fused [3x3 conv (s=1, p=1) -> BN(scale,bias) -> ReLU] layers.

    x_ref : (1, H, W, C)   bf16 input tile, channels pre-padded to C = k*128
    rest  : per layer (w_ref (9*C, C) bf16, scale_ref (1, C) f32, bias_ref (1, C) f32),
            then o_ref (1, H, W, C) f32.
    """
    *layer_refs, o_ref = rest
    n = len(layer_refs) // 3
    _, H, W, C = o_ref.shape

    a = x_ref[0]                                              # (H, W, C) bf16

    for layer in range(n):
        w_ref = layer_refs[3 * layer + 0]
        s_ref = layer_refs[3 * layer + 1]
        b_ref = layer_refs[3 * layer + 2]

        # padding=1: build the spatially padded activation as a value (stays on-chip).
        zrow = jnp.zeros((1, W, C), a.dtype)
        zcol = jnp.zeros((H + 2, 1, C), a.dtype)
        ap = jnp.concatenate([zrow, a, zrow], axis=0)         # (H+2, W,   C)
        ap = jnp.concatenate([zcol, ap, zcol], axis=1)        # (H+2, W+2, C)

        # im2col: fold the 3x3 window into the contraction -> K = 9*C.
        cols = []
        for ky in range(3):
            for kx in range(3):
                cols.append(ap[ky:ky + H, kx:kx + W, :].reshape(H * W, C))
        patch = jnp.concatenate(cols, axis=-1)                # (H*W, 9*C) bf16

        # One big MXU matmul per layer, f32 accumulation.
        acc = jnp.dot(patch, w_ref[...],
                      preferred_element_type=jnp.float32)     # (H*W, C) f32

        # Fused eval-BatchNorm (per-channel affine) + ReLU, f32 epilogue.
        y = jnp.maximum(acc * s_ref[...] + b_ref[...], 0.0)

        if layer + 1 < n:
            a = y.reshape(H, W, C).astype(jnp.bfloat16)       # next layer's input, on-chip
        else:
            o_ref[0] = y.reshape(H, W, C).astype(o_ref.dtype)  # lane-dense store


def unet_conv2_pallas(x_nhwc, kparams):
    """x_nhwc: (N, H, W, C) bf16 with C a multiple of 128 -> (N, H, W, C) f32."""
    N, H, W, C = x_nhwc.shape
    n = len(kparams)

    flat_params = []
    in_specs = [pl.BlockSpec((1, H, W, C), lambda b: (b, 0, 0, 0))]
    for (w2d, scale, bias) in kparams:
        assert w2d.shape == (9 * C, C), w2d.shape
        flat_params += [w2d, scale, bias]
        in_specs += [
            pl.BlockSpec((9 * C, C), lambda b: (0, 0)),
            pl.BlockSpec((1, C), lambda b: (0, 0)),
            pl.BlockSpec((1, C), lambda b: (0, 0)),
        ]

    # Rough per-step VMEM working set: double-buffered in/out blocks + weights,
    # plus live padded-activation / im2col / accumulator values.
    bytes_blocks = 2 * (H * W * C * 2) + 2 * (H * W * C * 4) + 2 * n * (9 * C * C * 2)
    bytes_live = (H + 2) * (W + 2) * C * 2 + H * W * 9 * C * 2 + H * W * C * 4
    # Keep under the tightest scoped-VMEM budget (v7x: 32 MiB default of 64 MiB physical).
    assert bytes_blocks + bytes_live < 24 * 1024 * 1024, (
        "whole-image fused block too large for VMEM; use row-strip tiling")

    return pl.pallas_call(
        fused_unet_conv2_kernel,
        out_shape=jax.ShapeDtypeStruct((N, H, W, C), jnp.float32),
        grid_spec=pltpu.PrefetchScalarGridSpec(
            num_scalar_prefetch=0,
            grid=(N,),
            in_specs=in_specs,
            out_specs=pl.BlockSpec((1, H, W, C), lambda b: (b, 0, 0, 0)),
        ),
        compiler_params=pltpu.CompilerParams(
            dimension_semantics=("parallel",),
            vmem_limit_bytes=32 * 1024 * 1024,
        ),
    )(x_nhwc, *flat_params)


def init_unet_conv2_params(key, in_size, out_size, n=3, ks=3):
    """Deterministic PyTorch-like parameters: HWIO conv weight, conv bias, BN stats."""
    params = []
    cin = in_size
    for _ in range(n):
        key, kw, kb, kg, kbeta, km, kv = jax.random.split(key, 7)
        w = jax.random.normal(kw, (ks, ks, cin, out_size), jnp.float32) * 0.1
        conv_b = jax.random.normal(kb, (out_size,), jnp.float32) * 0.1
        gamma = 1.0 + 0.1 * jax.random.normal(kg, (out_size,), jnp.float32)
        beta = 0.1 * jax.random.normal(kbeta, (out_size,), jnp.float32)
        mean = 0.1 * jax.random.normal(km, (out_size,), jnp.float32)
        var = jnp.abs(1.0 + 0.1 * jax.random.normal(kv, (out_size,), jnp.float32))
        params.append(dict(w=w, b=conv_b, gamma=gamma, beta=beta, mean=mean, var=var))
        cin = out_size
    return params


def prepare_kernel_params(params, cpad, is_batchnorm=True, eps=1e-5):
    """Fold conv bias + eval BatchNorm into per-channel scale/bias, pad channels
    to cpad, and reshape HWIO weights to dense 2D (9*cpad, cpad) bf16 (im2col order)."""
    kparams = []
    for p in params:
        ks, ks2, cin, cout = p["w"].shape
        assert ks == 3 and ks2 == 3, "kernel is specialized for 3x3 convolutions"
        if is_batchnorm:
            scale = p["gamma"] / jnp.sqrt(p["var"] + eps)
            bias = (p["b"] - p["mean"]) * scale + p["beta"]
        else:
            scale = jnp.ones((cout,), jnp.float32)
            bias = p["b"]
        w = jnp.pad(p["w"], ((0, 0), (0, 0), (0, cpad - cin), (0, cpad - cout)))
        w2d = w.reshape(ks * ks * cpad, cpad).astype(jnp.bfloat16)
        scale = jnp.pad(scale, (0, cpad - cout)).reshape(1, cpad).astype(jnp.float32)
        bias = jnp.pad(bias, (0, cpad - cout)).reshape(1, cpad).astype(jnp.float32)
        kparams.append((w2d, scale, bias))
    return kparams


@functools.partial(jax.jit, static_argnames=("out_size",))
def unet_conv2_forward(x_nchw, kparams, out_size):
    N, cin, H, W = x_nchw.shape
    cpad = kparams[0][0].shape[1]                                  # padded channel count
    x = jnp.transpose(x_nchw, (0, 2, 3, 1))                        # NCHW -> NHWC
    x = jnp.pad(x, ((0, 0), (0, 0), (0, 0), (0, cpad - cin)))      # lane-dense channels
    x = x.astype(jnp.bfloat16)
    y = unet_conv2_pallas(x, kparams)                              # (N, H, W, cpad) f32
    return jnp.transpose(y[..., :out_size], (0, 3, 1, 2))          # back to NCHW


def unet_conv2_reference(x_nchw, params, is_batchnorm=True, eps=1e-5):
    """Pure-XLA f32 reference (PyTorch eval-mode semantics) for correctness check."""
    x = x_nchw
    for p in params:
        w_oihw = jnp.transpose(p["w"], (3, 2, 0, 1))
        y = jax.lax.conv_general_dilated(
            x, w_oihw, window_strides=(1, 1), padding=((1, 1), (1, 1)),
            dimension_numbers=("NCHW", "OIHW", "NCHW"))
        y = y + p["b"][None, :, None, None]
        if is_batchnorm:
            scale = p["gamma"] / jnp.sqrt(p["var"] + eps)
            y = (y - p["mean"][None, :, None, None]) * scale[None, :, None, None] \
                + p["beta"][None, :, None, None]
        x = jnp.maximum(y, 0.0)
    return x


if __name__ == "__main__":
    key = jax.random.PRNGKey(0)
    k_x, k_p = jax.random.split(key)

    N, Cin, H, W = 2, 4, 16, 16
    Cout = 8
    x = jax.random.normal(k_x, (N, Cin, H, W), jnp.float32)

    params = init_unet_conv2_params(k_p, in_size=Cin, out_size=Cout, n=3, ks=3)
    cpad = _round_up(max(Cin, Cout), LANES)
    kparams = prepare_kernel_params(params, cpad, is_batchnorm=True)

    out = unet_conv2_forward(x, kparams, out_size=Cout)
    out = jax.block_until_ready(out)

    assert out.shape == (N, Cout, H, W), out.shape
    assert out.dtype == jnp.float32
    assert bool(jnp.all(out >= 0.0))                 # ReLU output

    # Correctness vs. f32 XLA reference (loose tolerance: bf16 matmul operands).
    ref = unet_conv2_reference(x, params, is_batchnorm=True)
    rel = jnp.linalg.norm(out - ref) / (jnp.linalg.norm(ref) + 1e-8)
    assert float(rel) < 5e-2, f"relative error too large: {float(rel)}"

    print("KERNEL_OK")
</pallas_src>

<mosaic_0001>
module attributes {stable_mosaic.version = 11 : i64} {
  func.func @fused_unet_conv2_kernel(%arg0: i32, %arg1: memref<1x16x16x128xbf16, #tpu.memory_space<vmem>>, %arg2: memref<1152x128xbf16, #tpu.memory_space<vmem>>, %arg3: memref<1x128xf32, #tpu.memory_space<vmem>>, %arg4: memref<1x128xf32, #tpu.memory_space<vmem>>, %arg5: memref<1152x128xbf16, #tpu.memory_space<vmem>>, %arg6: memref<1x128xf32, #tpu.memory_space<vmem>>, %arg7: memref<1x128xf32, #tpu.memory_space<vmem>>, %arg8: memref<1152x128xbf16, #tpu.memory_space<vmem>>, %arg9: memref<1x128xf32, #tpu.memory_space<vmem>>, %arg10: memref<1x128xf32, #tpu.memory_space<vmem>>, %arg11: memref<1x16x16x128xf32, #tpu.memory_space<vmem>>) attributes {dimension_semantics = [#tpu.dimension_semantics<parallel>], iteration_bounds = array<i64: 2>, scalar_prefetch = 0 : i64, scratch_operands = 0 : i64, tpu.core_type = #tpu.core_type<tc>, window_params = [{transform_indices = @transform_0, window_bounds = array<i64: 1, 16, 16, 128>}, {pipeline_mode = #tpu.pipeline_mode<synchronous>, transform_indices = @transform_1, window_bounds = array<i64: 1152, 128>}, {pipeline_mode = #tpu.pipeline_mode<synchronous>, transform_indices = @transform_2, window_bounds = array<i64: 1, 128>}, {pipeline_mode = #tpu.pipeline_mode<synchronous>, transform_indices = @transform_3, window_bounds = array<i64: 1, 128>}, {pipeline_mode = #tpu.pipeline_mode<synchronous>, transform_indices = @transform_4, window_bounds = array<i64: 1152, 128>}, {pipeline_mode = #tpu.pipeline_mode<synchronous>, transform_indices = @transform_5, window_bounds = array<i64: 1, 128>}, {pipeline_mode = #tpu.pipeline_mode<synchronous>, transform_indices = @transform_6, window_bounds = array<i64: 1, 128>}, {pipeline_mode = #tpu.pipeline_mode<synchronous>, transform_indices = @transform_7, window_bounds = array<i64: 1152, 128>}, {pipeline_mode = #tpu.pipeline_mode<synchronous>, transform_indices = @transform_8, window_bounds = array<i64: 1, 128>}, {pipeline_mode = #tpu.pipeline_mode<synchronous>, transform_indices = @transform_9, window_bounds = array<i64: 1, 128>}, {transform_indices = @transform_10, window_bounds = array<i64: 1, 16, 16, 128>}]} {
    %c0 = arith.constant 0 : index
    %c0_0 = arith.constant 0 : index
    %c0_1 = arith.constant 0 : index
    %c0_2 = arith.constant 0 : index
    %0 = vector.load %arg1[%c0, %c0_0, %c0_1, %c0_2] : memref<1x16x16x128xbf16, #tpu.memory_space<vmem>>, vector<1x16x16x128xbf16>
    %1 = vector.shape_cast %0 : vector<1x16x16x128xbf16> to vector<16x16x128xbf16>
    %cst = arith.constant 0.000000e+00 : bf16
    %2 = vector.broadcast %cst : bf16 to vector<1x16x128xbf16>
    %cst_3 = arith.constant 0.000000e+00 : bf16
    %3 = vector.broadcast %cst_3 : bf16 to vector<18x1x128xbf16>
    %4 = tpu.concatenate %2, %1, %2 in 0 : vector<1x16x128xbf16>, vector<16x16x128xbf16>, vector<1x16x128xbf16> -> vector<18x16x128xbf16>
    %5 = tpu.concatenate %3, %4, %3 in 1 : vector<18x1x128xbf16>, vector<18x16x128xbf16>, vector<18x1x128xbf16> -> vector<18x18x128xbf16>
    %6 = vector.extract_strided_slice %5 {offsets = [0, 0, 0], sizes = [16, 16, 128], strides = [1, 1, 1]} : vector<18x18x128xbf16> to vector<16x16x128xbf16>
    %7 = vector.shape_cast %6 : vector<16x16x128xbf16> to vector<256x128xbf16>
    %8 = vector.extract_strided_slice %5 {offsets = [0, 1, 0], sizes = [16, 16, 128], strides = [1, 1, 1]} : vector<18x18x128xbf16> to vector<16x16x128xbf16>
    %9 = vector.shape_cast %8 : vector<16x16x128xbf16> to vector<256x128xbf16>
    %10 = vector.extract_strided_slice %5 {offsets = [0, 2, 0], sizes = [16, 16, 128], strides = [1, 1, 1]} : vector<18x18x128xbf16> to vector<16x16x128xbf16>
    %11 = vector.shape_cast %10 : vector<16x16x128xbf16> to vector<256x128xbf16>
    %12 = vector.extract_strided_slice %5 {offsets = [1, 0, 0], sizes = [16, 16, 128], strides = [1, 1, 1]} : vector<18x18x128xbf16> to vector<16x16x128xbf16>
    %13 = vector.shape_cast %12 : vector<16x16x128xbf16> to vector<256x128xbf16>
    %14 = vector.extract_strided_slice %5 {offsets = [1, 1, 0], sizes = [16, 16, 128], strides = [1, 1, 1]} : vector<18x18x128xbf16> to vector<16x16x128xbf16>
    %15 = vector.shape_cast %14 : vector<16x16x128xbf16> to vector<256x128xbf16>
    %16 = vector.extract_strided_slice %5 {offsets = [1, 2, 0], sizes = [16, 16, 128], strides = [1, 1, 1]} : vector<18x18x128xbf16> to vector<16x16x128xbf16>
    %17 = vector.shape_cast %16 : vector<16x16x128xbf16> to vector<256x128xbf16>
    %18 = vector.extract_strided_slice %5 {offsets = [2, 0, 0], sizes = [16, 16, 128], strides = [1, 1, 1]} : vector<18x18x128xbf16> to vector<16x16x128xbf16>
    %19 = vector.shape_cast %18 : vector<16x16x128xbf16> to vector<256x128xbf16>
    %20 = vector.extract_strided_slice %5 {offsets = [2, 1, 0], sizes = [16, 16, 128], strides = [1, 1, 1]} : vector<18x18x128xbf16> to vector<16x16x128xbf16>
    %21 = vector.shape_cast %20 : vector<16x16x128xbf16> to vector<256x128xbf16>
    %22 = vector.extract_strided_slice %5 {offsets = [2, 2, 0], sizes = [16, 16, 128], strides = [1, 1, 1]} : vector<18x18x128xbf16> to vector<16x16x128xbf16>
    %23 = vector.shape_cast %22 : vector<16x16x128xbf16> to vector<256x128xbf16>
    %24 = tpu.concatenate %7, %9, %11, %13, %15, %17, %19, %21, %23 in 1 : vector<256x128xbf16>, vector<256x128xbf16>, vector<256x128xbf16>, vector<256x128xbf16>, vector<256x128xbf16>, vector<256x128xbf16>, vector<256x128xbf16>, vector<256x128xbf16>, vector<256x128xbf16> -> vector<256x1152xbf16>
    %c0_4 = arith.constant 0 : index
    %c0_5 = arith.constant 0 : index
    %25 = vector.load %arg2[%c0_4, %c0_5] : memref<1152x128xbf16, #tpu.memory_space<vmem>>, vector<1152x128xbf16>
    %cst_6 = arith.constant dense<0.000000e+00> : vector<256x128xf32>
    %26 = tpu.matmul %24, %25, %cst_6 {dimension_numbers = #tpu.dot_dimension_numbers<[1], [0], [0], [1], [0, 0, 1, 1], [], []>} : vector<256x1152xbf16>, vector<1152x128xbf16>, vector<256x128xf32> -> vector<256x128xf32>
    %c0_7 = arith.constant 0 : index
    %c0_8 = arith.constant 0 : index
    %27 = vector.load %arg3[%c0_7, %c0_8] : memref<1x128xf32, #tpu.memory_space<vmem>>, vector<1x128xf32>
    %28 = vector.broadcast %27 : vector<1x128xf32> to vector<256x128xf32>
    %29 = arith.mulf %26, %28 : vector<256x128xf32>
    %c0_9 = arith.constant 0 : index
    %c0_10 = arith.constant 0 : index
    %30 = vector.load %arg4[%c0_9, %c0_10] : memref<1x128xf32, #tpu.memory_space<vmem>>, vector<1x128xf32>
    %31 = vector.broadcast %30 : vector<1x128xf32> to vector<256x128xf32>
    %32 = arith.addf %29, %31 : vector<256x128xf32>
    %cst_11 = arith.constant 0.000000e+00 : f32
    %33 = vector.broadcast %cst_11 : f32 to vector<256x128xf32>
    %34 = arith.maximumf %32, %33 : vector<256x128xf32>
    %35 = vector.shape_cast %34 : vector<256x128xf32> to vector<16x16x128xf32>
    %36 = arith.truncf %35 : vector<16x16x128xf32> to vector<16x16x128xbf16>
    %cst_12 = arith.constant 0.000000e+00 : bf16
    %37 = vector.broadcast %cst_12 : bf16 to vector<1x16x128xbf16>
    %cst_13 = arith.constant 0.000000e+00 : bf16
    %38 = vector.broadcast %cst_13 : bf16 to vector<18x1x128xbf16>
    %39 = tpu.concatenate %37, %36, %37 in 0 : vector<1x16x128xbf16>, vector<16x16x128xbf16>, vector<1x16x128xbf16> -> vector<18x16x128xbf16>
    %40 = tpu.concatenate %38, %39, %38 in 1 : vector<18x1x128xbf16>, vector<18x16x128xbf16>, vector<18x1x128xbf16> -> vector<18x18x128xbf16>
    %41 = vector.extract_strided_slice %40 {offsets = [0, 0, 0], sizes = [16, 16, 128], strides = [1, 1, 1]} : vector<18x18x128xbf16> to vector<16x16x128xbf16>
    %42 = vector.shape_cast %41 : vector<16x16x128xbf16> to vector<256x128xbf16>
    %43 = vector.extract_strided_slice %40 {offsets = [0, 1, 0], sizes = [16, 16, 128], strides = [1, 1, 1]} : vector<18x18x128xbf16> to vector<16x16x128xbf16>
    %44 = vector.shape_cast %43 : vector<16x16x128xbf16> to vector<256x128xbf16>
    %45 = vector.extract_strided_slice %40 {offsets = [0, 2, 0], sizes = [16, 16, 128], strides = [1, 1, 1]} : vector<18x18x128xbf16> to vector<16x16x128xbf16>
    %46 = vector.shape_cast %45 : vector<16x16x128xbf16> to vector<256x128xbf16>
    %47 = vector.extract_strided_slice %40 {offsets = [1, 0, 0], sizes = [16, 16, 128], strides = [1, 1, 1]} : vector<18x18x128xbf16> to vector<16x16x128xbf16>
    %48 = vector.shape_cast %47 : vector<16x16x128xbf16> to vector<256x128xbf16>
    %49 = vector.extract_strided_slice %40 {offsets = [1, 1, 0], sizes = [16, 16, 128], strides = [1, 1, 1]} : vector<18x18x128xbf16> to vector<16x16x128xbf16>
    %50 = vector.shape_cast %49 : vector<16x16x128xbf16> to vector<256x128xbf16>
    %51 = vector.extract_strided_slice %40 {offsets = [1, 2, 0], sizes = [16, 16, 128], strides = [1, 1, 1]} : vector<18x18x128xbf16> to vector<16x16x128xbf16>
    %52 = vector.shape_cast %51 : vector<16x16x128xbf16> to vector<256x128xbf16>
    %53 = vector.extract_strided_slice %40 {offsets = [2, 0, 0], sizes = [16, 16, 128], strides = [1, 1, 1]} : vector<18x18x128xbf16> to vector<16x16x128xbf16>
    %54 = vector.shape_cast %53 : vector<16x16x128xbf16> to vector<256x128xbf16>
    %55 = vector.extract_strided_slice %40 {offsets = [2, 1, 0], sizes = [16, 16, 128], strides = [1, 1, 1]} : vector<18x18x128xbf16> to vector<16x16x128xbf16>
    %56 = vector.shape_cast %55 : vector<16x16x128xbf16> to vector<256x128xbf16>
    %57 = vector.extract_strided_slice %40 {offsets = [2, 2, 0], sizes = [16, 16, 128], strides = [1, 1, 1]} : vector<18x18x128xbf16> to vector<16x16x128xbf16>
    %58 = vector.shape_cast %57 : vector<16x16x128xbf16> to vector<256x128xbf16>
    %59 = tpu.concatenate %42, %44, %46, %48, %50, %52, %54, %56, %58 in 1 : vector<256x128xbf16>, vector<256x128xbf16>, vector<256x128xbf16>, vector<256x128xbf16>, vector<256x128xbf16>, vector<256x128xbf16>, vector<256x128xbf16>, vector<256x128xbf16>, vector<256x128xbf16> -> vector<256x1152xbf16>
    %c0_14 = arith.constant 0 : index
    %c0_15 = arith.constant 0 : index
    %60 = vector.load %arg5[%c0_14, %c0_15] : memref<1152x128xbf16, #tpu.memory_space<vmem>>, vector<1152x128xbf16>
    %cst_16 = arith.constant dense<0.000000e+00> : vector<256x128xf32>
    %61 = tpu.matmul %59, %60, %cst_16 {dimension_numbers = #tpu.dot_dimension_numbers<[1], [0], [0], [1], [0, 0, 1, 1], [], []>} : vector<256x1152xbf16>, vector<1152x128xbf16>, vector<256x128xf32> -> vector<256x128xf32>
    %c0_17 = arith.constant 0 : index
    %c0_18 = arith.constant 0 : index
    %62 = vector.load %arg6[%c0_17, %c0_18] : memref<1x128xf32, #tpu.memory_space<vmem>>, vector<1x128xf32>
    %63 = vector.broadcast %62 : vector<1x128xf32> to vector<256x128xf32>
    %64 = arith.mulf %61, %63 : vector<256x128xf32>
    %c0_19 = arith.constant 0 : index
    %c0_20 = arith.constant 0 : index
    %65 = vector.load %arg7[%c0_19, %c0_20] : memref<1x128xf32, #tpu.memory_space<vmem>>, vector<1x128xf32>
    %66 = vector.broadcast %65 : vector<1x128xf32> to vector<256x128xf32>
    %67 = arith.addf %64, %66 : vector<256x128xf32>
    %cst_21 = arith.constant 0.000000e+00 : f32
    %68 = vector.broadcast %cst_21 : f32 to vector<256x128xf32>
    %69 = arith.maximumf %67, %68 : vector<256x128xf32>
    %70 = vector.shape_cast %69 : vector<256x128xf32> to vector<16x16x128xf32>
    %71 = arith.truncf %70 : vector<16x16x128xf32> to vector<16x16x128xbf16>
    %cst_22 = arith.constant 0.000000e+00 : bf16
    %72 = vector.broadcast %cst_22 : bf16 to vector<1x16x128xbf16>
    %cst_23 = arith.constant 0.000000e+00 : bf16
    %73 = vector.broadcast %cst_23 : bf16 to vector<18x1x128xbf16>
    %74 = tpu.concatenate %72, %71, %72 in 0 : vector<1x16x128xbf16>, vector<16x16x128xbf16>, vector<1x16x128xbf16> -> vector<18x16x128xbf16>
    %75 = tpu.concatenate %73, %74, %73 in 1 : vector<18x1x128xbf16>, vector<18x16x128xbf16>, vector<18x1x128xbf16> -> vector<18x18x128xbf16>
    %76 = vector.extract_strided_slice %75 {offsets = [0, 0, 0], sizes = [16, 16, 128], strides = [1, 1, 1]} : vector<18x18x128xbf16> to vector<16x16x128xbf16>
    %77 = vector.shape_cast %76 : vector<16x16x128xbf16> to vector<256x128xbf16>
    %78 = vector.extract_strided_slice %75 {offsets = [0, 1, 0], sizes = [16, 16, 128], strides = [1, 1, 1]} : vector<18x18x128xbf16> to vector<16x16x128xbf16>
    %79 = vector.shape_cast %78 : vector<16x16x128xbf16> to vector<256x128xbf16>
    %80 = vector.extract_strided_slice %75 {offsets = [0, 2, 0], sizes = [16, 16, 128], strides = [1, 1, 1]} : vector<18x18x128xbf16> to vector<16x16x128xbf16>
    %81 = vector.shape_cast %80 : vector<16x16x128xbf16> to vector<256x128xbf16>
    %82 = vector.extract_strided_slice %75 {offsets = [1, 0, 0], sizes = [16, 16, 128], strides = [1, 1, 1]} : vector<18x18x128xbf16> to vector<16x16x128xbf16>
    %83 = vector.shape_cast %82 : vector<16x16x128xbf16> to vector<256x128xbf16>
    %84 = vector.extract_strided_slice %75 {offsets = [1, 1, 0], sizes = [16, 16, 128], strides = [1, 1, 1]} : vector<18x18x128xbf16> to vector<16x16x128xbf16>
    %85 = vector.shape_cast %84 : vector<16x16x128xbf16> to vector<256x128xbf16>
    %86 = vector.extract_strided_slice %75 {offsets = [1, 2, 0], sizes = [16, 16, 128], strides = [1, 1, 1]} : vector<18x18x128xbf16> to vector<16x16x128xbf16>
    %87 = vector.shape_cast %86 : vector<16x16x128xbf16> to vector<256x128xbf16>
    %88 = vector.extract_strided_slice %75 {offsets = [2, 0, 0], sizes = [16, 16, 128], strides = [1, 1, 1]} : vector<18x18x128xbf16> to vector<16x16x128xbf16>
    %89 = vector.shape_cast %88 : vector<16x16x128xbf16> to vector<256x128xbf16>
    %90 = vector.extract_strided_slice %75 {offsets = [2, 1, 0], sizes = [16, 16, 128], strides = [1, 1, 1]} : vector<18x18x128xbf16> to vector<16x16x128xbf16>
    %91 = vector.shape_cast %90 : vector<16x16x128xbf16> to vector<256x128xbf16>
    %92 = vector.extract_strided_slice %75 {offsets = [2, 2, 0], sizes = [16, 16, 128], strides = [1, 1, 1]} : vector<18x18x128xbf16> to vector<16x16x128xbf16>
    %93 = vector.shape_cast %92 : vector<16x16x128xbf16> to vector<256x128xbf16>
    %94 = tpu.concatenate %77, %79, %81, %83, %85, %87, %89, %91, %93 in 1 : vector<256x128xbf16>, vector<256x128xbf16>, vector<256x128xbf16>, vector<256x128xbf16>, vector<256x128xbf16>, vector<256x128xbf16>, vector<256x128xbf16>, vector<256x128xbf16>, vector<256x128xbf16> -> vector<256x1152xbf16>
    %c0_24 = arith.constant 0 : index
    %c0_25 = arith.constant 0 : index
    %95 = vector.load %arg8[%c0_24, %c0_25] : memref<1152x128xbf16, #tpu.memory_space<vmem>>, vector<1152x128xbf16>
    %cst_26 = arith.constant dense<0.000000e+00> : vector<256x128xf32>
    %96 = tpu.matmul %94, %95, %cst_26 {dimension_numbers = #tpu.dot_dimension_numbers<[1], [0], [0], [1], [0, 0, 1, 1], [], []>} : vector<256x1152xbf16>, vector<1152x128xbf16>, vector<256x128xf32> -> vector<256x128xf32>
    %c0_27 = arith.constant 0 : index
    %c0_28 = arith.constant 0 : index
    %97 = vector.load %arg9[%c0_27, %c0_28] : memref<1x128xf32, #tpu.memory_space<vmem>>, vector<1x128xf32>
    %98 = vector.broadcast %97 : vector<1x128xf32> to vector<256x128xf32>
    %99 = arith.mulf %96, %98 : vector<256x128xf32>
    %c0_29 = arith.constant 0 : index
    %c0_30 = arith.constant 0 : index
    %100 = vector.load %arg10[%c0_29, %c0_30] : memref<1x128xf32, #tpu.memory_space<vmem>>, vector<1x128xf32>
    %101 = vector.broadcast %100 : vector<1x128xf32> to vector<256x128xf32>
    %102 = arith.addf %99, %101 : vector<256x128xf32>
    %cst_31 = arith.constant 0.000000e+00 : f32
    %103 = vector.broadcast %cst_31 : f32 to vector<256x128xf32>
    %104 = arith.maximumf %102, %103 : vector<256x128xf32>
    %105 = vector.shape_cast %104 : vector<256x128xf32> to vector<16x16x128xf32>
    %c0_32 = arith.constant 0 : index
    %c0_33 = arith.constant 0 : index
    %c0_34 = arith.constant 0 : index
    %c0_35 = arith.constant 0 : index
    %106 = vector.load %arg11[%c0_32, %c0_33, %c0_34, %c0_35] : memref<1x16x16x128xf32, #tpu.memory_space<vmem>>, vector<1x16x16x128xf32>
    %107 = vector.shape_cast %106 : vector<1x16x16x128xf32> to vector<16x16x128xf32>
    %108 = vector.shape_cast %105 : vector<16x16x128xf32> to vector<1x16x16x128xf32>
    tpu.vector_store %arg11[%c0_32, %c0_33, %c0_34, %c0_35], %108 {strides = array<i32>} : memref<1x16x16x128xf32, #tpu.memory_space<vmem>>, vector<1x16x16x128xf32>,
    return
  }
  func.func @transform_0(%arg0: i32) -> (i32, i32, i32, i32) {
    %c0_i32 = arith.constant 0 : i32
    %c0_i32_0 = arith.constant 0 : i32
    %c0_i32_1 = arith.constant 0 : i32
    %c0_i32_2 = arith.constant 0 : i32
    return %arg0, %c0_i32, %c0_i32_0, %c0_i32_1 : i32, i32, i32, i32
  }
  func.func @transform_1(%arg0: i32) -> (i32, i32) {
    %c0_i32 = arith.constant 0 : i32
    %c0_i32_0 = arith.constant 0 : i32
    %c0_i32_1 = arith.constant 0 : i32
    return %c0_i32, %c0_i32_0 : i32, i32
  }
  func.func @transform_2(%arg0: i32) -> (i32, i32) {
    %c0_i32 = arith.constant 0 : i32
    %c0_i32_0 = arith.constant 0 : i32
    %c0_i32_1 = arith.constant 0 : i32
    return %c0_i32, %c0_i32_0 : i32, i32
  }
  func.func @transform_3(%arg0: i32) -> (i32, i32) {
    %c0_i32 = arith.constant 0 : i32
    %c0_i32_0 = arith.constant 0 : i32
    %c0_i32_1 = arith.constant 0 : i32
    return %c0_i32, %c0_i32_0 : i32, i32
  }
  func.func @transform_4(%arg0: i32) -> (i32, i32) {
    %c0_i32 = arith.constant 0 : i32
    %c0_i32_0 = arith.constant 0 : i32
    %c0_i32_1 = arith.constant 0 : i32
    return %c0_i32, %c0_i32_0 : i32, i32
  }
  func.func @transform_5(%arg0: i32) -> (i32, i32) {
    %c0_i32 = arith.constant 0 : i32
    %c0_i32_0 = arith.constant 0 : i32
    %c0_i32_1 = arith.constant 0 : i32
    return %c0_i32, %c0_i32_0 : i32, i32
  }
  func.func @transform_6(%arg0: i32) -> (i32, i32) {
    %c0_i32 = arith.constant 0 : i32
    %c0_i32_0 = arith.constant 0 : i32
    %c0_i32_1 = arith.constant 0 : i32
    return %c0_i32, %c0_i32_0 : i32, i32
  }
  func.func @transform_7(%arg0: i32) -> (i32, i32) {
    %c0_i32 = arith.constant 0 : i32
    %c0_i32_0 = arith.constant 0 : i32
    %c0_i32_1 = arith.constant 0 : i32
    return %c0_i32, %c0_i32_0 : i32, i32
  }
  func.func @transform_8(%arg0: i32) -> (i32, i32) {
    %c0_i32 = arith.constant 0 : i32
    %c0_i32_0 = arith.constant 0 : i32
    %c0_i32_1 = arith.constant 0 : i32
    return %c0_i32, %c0_i32_0 : i32, i32
  }
  func.func @transform_9(%arg0: i32) -> (i32, i32) {
    %c0_i32 = arith.constant 0 : i32
    %c0_i32_0 = arith.constant 0 : i32
    %c0_i32_1 = arith.constant 0 : i32
    return %c0_i32, %c0_i32_0 : i32, i32
  }
  func.func @transform_10(%arg0: i32) -> (i32, i32, i32, i32) {
    %c0_i32 = arith.constant 0 : i32
    %c0_i32_0 = arith.constant 0 : i32
    %c0_i32_1 = arith.constant 0 : i32
    %c0_i32_2 = arith.constant 0 : i32
    return %arg0, %c0_i32, %c0_i32_0, %c0_i32_1 : i32, i32, i32, i32
  }
}

</mosaic_0001>

<llo_original>
// kernel: unet_conv2_forward.1
$region0: #{unet_conv2_forward.1}
  #allocation0 [shape = 'u32[]', space=smem, size = 0x4, offset = 0x4, fixed_abs, tag = 'smem constant byte address 0x4 - core index']
  #allocation1 [shape = 'u32[72,128]{1,0:T(1,128)}', space=vmem, size = 0x9000, scoped, tag = 'internal scratch']
  %s0 = inlined_call_operand.vmem [shape: bf16[2,16,16,128], index: 0, kind: input, shape index: {}]
  %s1 = inlined_call_operand.vmem [shape: bf16[1152,128], index: 1, kind: input, shape index: {}]
  %s2 = inlined_call_operand.vmem [shape: f32[1,128], index: 2, kind: input, shape index: {}]
  %s3 = inlined_call_operand.vmem [shape: f32[1,128], index: 3, kind: input, shape index: {}]
  %s4 = inlined_call_operand.hbm [shape: bf16[1152,128], index: 4, kind: input, shape index: {}]
  %s5 = inlined_call_operand.vmem [shape: f32[1,128], index: 5, kind: input, shape index: {}]
  %s6 = inlined_call_operand.vmem [shape: f32[1,128], index: 6, kind: input, shape index: {}]
  %s7 = inlined_call_operand.hbm [shape: bf16[1152,128], index: 7, kind: input, shape index: {}]
  %s8 = inlined_call_operand.vmem [shape: f32[1,128], index: 8, kind: input, shape index: {}]
  %s9 = inlined_call_operand.vmem [shape: f32[1,128], index: 9, kind: input, shape index: {}]
  %s10 = inlined_call_operand.vmem [shape: f32[2,16,16,128], index: 10, kind: output, shape index: {}]
  %s11 = sld [smem:[#allocation0]]
  $region81: #{unet_conv2_forward.1} parent=0
    _
  %s13 = ssub.s32 1, %s11
  %s14 = scalar_select 0, %s13, %s11
  $region1: #{unet_conv2_forward.1} parent=0
    #allocation2 [shape = 'u8[294912]{0}', space=vmem, size = 0x48000, scoped, tag = 'input window, operand 4, single buffered']
    #allocation3 [shape = 's32[2]{0}', space=sflag, size = 0x8, scoped, tag = 'scoped memory for unet_conv2_forward.1']
    #allocation4 [shape = 'u8[294912]{0}', space=vmem, size = 0x48000, scoped, tag = 'input window, operand 7, single buffered']
    #allocation5 [shape = 's32[1]{0}', space=sflag, size = 0x4, scoped, tag = 'scoped memory for unet_conv2_forward.1']
    %15 = vsyncpa [#allocation3], 0
    %16 = vsyncpa [#allocation5], 0
    loop: start=0, step=1, limit=4
    $region2: #{unet_conv2_forward.1} parent=1 // loop_pre_header
      _
    $region3: #{unet_conv2_forward.1} parent=1 // loop_header
      %s18 = sphi 0, %s22
      %p19 = scmp.ge.s32.totalorder %s18, 4
      %s28 = sphi 0, %s30
      %s31 = sphi 0, %s28
      %s32 = sphi 0, %s31
      %s48 = sphi 0, %s32
      %s52 = sphi 0, %s52
      %s54 = sphi 0, %s52
      %s55 = sphi 0, %s54
      %s69 = sphi 0, %s55
      %s73 = sphi 0, %s73
      %s75 = sphi 0, %s73
      %s76 = sphi 0, %s75
      %s90 = sphi 0, %s76
      %s94 = sphi 0, %s94
      %s96 = sphi 0, %s94
      %s97 = sphi 0, %s96
      %s111 = sphi 0, %s97
      %s115 = sphi 0, %s115
      %s117 = sphi 0, %s115
      %s118 = sphi 0, %s117
      %s132 = sphi 0, %s118
      %s136 = sphi 0, %s136
      %s138 = sphi 0, %s136
      %s139 = sphi 0, %s138
      %s153 = sphi 0, %s139
      %s157 = sphi 0, %s157
      %s159 = sphi 0, %s157
      %s160 = sphi 0, %s159
      %s174 = sphi 0, %s160
      %s178 = sphi 0, %s178
      %s180 = sphi 0, %s178
      %s181 = sphi 0, %s180
      %s195 = sphi 0, %s181
      %s199 = sphi 0, %s199
      %s201 = sphi 0, %s199
      %s202 = sphi 0, %s201
      %s216 = sphi 0, %s202
      %s220 = sphi 0, %s220
      %s222 = sphi 0, %s220
      %s223 = sphi 0, %s222
      %s237 = sphi 0, %s223
      %s243 = sphi 0, %s245
      %s246 = sphi 0, %s243
      %s247 = sphi 0, %s246
      %s263 = sphi 0, %s247
    $region4: #{unet_conv2_forward.1} parent=1 // loop_header_branch
      %21 = sbr.rel (%p19) target = $region8
    $region5: #{unet_conv2_forward.1} parent=1 // loop_body
      %s23 = ssub.s32 %s18, 1
      %s24 = ssub.s32 %s18, 2
      %s25 = sadd.s32 %s18, 1
      %s26 = ssub.s32 %s18, %s25
      %p27 = scmp.eq.s32.totalorder %s26, 0
      %s29 = sadd.s32 %s28, 1
      %s30 = scalar_select %p27, %s28, %s29
      %p33 = pneg %p27
      %p34 = scmp.eq.s32.totalorder %s18, 1
      %p35 = por %p33, %p34
      %p36 = scmp.ne.s32.totalorder %s28, %s31
      %p37 = scmp.eq.s32.totalorder %s18, 0
      %p38 = por %p36, %p37
      %p39 = scmp.ne.s32.totalorder %s28, %s31
      %p40 = scmp.eq.s32.totalorder %s23, 1
      %p41 = por %p39, %p40
      %p42 = scmp.ne.s32.totalorder %s31, %s32
      %p43 = scmp.eq.s32.totalorder %s23, 0
      %p44 = por %p42, %p43
      %p45 = scmp.ne.s32.totalorder %s31, %s32
      %p46 = scmp.eq.s32.totalorder %s24, 1
      %p47 = por %p45, %p46
      %p49 = scmp.ne.s32.totalorder %s32, %s48
      %p50 = scmp.eq.s32.totalorder %s24, 0
      %p51 = por %p49, %p50
      %s53 = sadd.s32 %s52, 1
      %p56 = scmp.eq.s32.totalorder %s18, 1
      %p57 = scmp.ne.s32.totalorder %s52, %s54
      %p58 = scmp.eq.s32.totalorder %s18, 0
      %p59 = por %p57, %p58
      %p60 = scmp.ne.s32.totalorder %s52, %s54
      %p61 = scmp.eq.s32.totalorder %s23, 1
      %p62 = por %p60, %p61
      %p63 = scmp.ne.s32.totalorder %s54, %s55
      %p64 = scmp.eq.s32.totalorder %s23, 0
      %p65 = por %p63, %p64
      %p66 = scmp.ne.s32.totalorder %s54, %s55
      %p67 = scmp.eq.s32.totalorder %s24, 1
      %p68 = por %p66, %p67
      %p70 = scmp.ne.s32.totalorder %s55, %s69
      %p71 = scmp.eq.s32.totalorder %s24, 0
      %p72 = por %p70, %p71
      %s74 = sadd.s32 %s73, 1
      %p77 = scmp.eq.s32.totalorder %s18, 1
      %p78 = scmp.ne.s32.totalorder %s73, %s75
      %p79 = scmp.eq.s32.totalorder %s18, 0
      %p80 = por %p78, %p79
      %p81 = scmp.ne.s32.totalorder %s73, %s75
      %p82 = scmp.eq.s32.totalorder %s23, 1
      %p83 = por %p81, %p82
      %p84 = scmp.ne.s32.totalorder %s75, %s76
      %p85 = scmp.eq.s32.totalorder %s23, 0
      %p86 = por %p84, %p85
      %p87 = scmp.ne.s32.totalorder %s75, %s76
      %p88 = scmp.eq.s32.totalorder %s24, 1
      %p89 = por %p87, %p88
      %p91 = scmp.ne.s32.totalorder %s76, %s90
      %p92 = scmp.eq.s32.totalorder %s24, 0
      %p93 = por %p91, %p92
      %s95 = sadd.s32 %s94, 1
      %p98 = scmp.eq.s32.totalorder %s18, 1
      %p99 = scmp.ne.s32.totalorder %s94, %s96
      %p100 = scmp.eq.s32.totalorder %s18, 0
      %p101 = por %p99, %p100
      %p102 = scmp.ne.s32.totalorder %s94, %s96
      %p103 = scmp.eq.s32.totalorder %s23, 1
      %p104 = por %p102, %p103
      %p105 = scmp.ne.s32.totalorder %s96, %s97
      %p106 = scmp.eq.s32.totalorder %s23, 0
      %p107 = por %p105, %p106
      %p108 = scmp.ne.s32.totalorder %s96, %s97
      %p109 = scmp.eq.s32.totalorder %s24, 1
      %p110 = por %p108, %p109
      %p112 = scmp.ne.s32.totalorder %s97, %s111
      %p113 = scmp.eq.s32.totalorder %s24, 0
      %p114 = por %p112, %p113
      %s116 = sadd.s32 %s115, 1
      %p119 = scmp.eq.s32.totalorder %s18, 1
      %p120 = scmp.ne.s32.totalorder %s115, %s117
      %p121 = scmp.eq.s32.totalorder %s18, 0
      %p122 = por %p120, %p121
      %p123 = scmp.ne.s32.totalorder %s115, %s117
      %p124 = scmp.eq.s32.totalorder %s23, 1
      %p125 = por %p123, %p124
      %p126 = scmp.ne.s32.totalorder %s117, %s118
      %p127 = scmp.eq.s32.totalorder %s23, 0
      %p128 = por %p126, %p127
      %p129 = scmp.ne.s32.totalorder %s117, %s118
      %p130 = scmp.eq.s32.totalorder %s24, 1
      %p131 = por %p129, %p130
      %p133 = scmp.ne.s32.totalorder %s118, %s132
      %p134 = scmp.eq.s32.totalorder %s24, 0
      %p135 = por %p133, %p134
      %s137 = sadd.s32 %s136, 1
      %p140 = scmp.eq.s32.totalorder %s18, 1
      %p141 = scmp.ne.s32.totalorder %s136, %s138
      %p142 = scmp.eq.s32.totalorder %s18, 0
      %p143 = por %p141, %p142
      %p144 = scmp.ne.s32.totalorder %s136, %s138
      %p145 = scmp.eq.s32.totalorder %s23, 1
      %p146 = por %p144, %p145
      %p147 = scmp.ne.s32.totalorder %s138, %s139
      %p148 = scmp.eq.s32.totalorder %s23, 0
      %p149 = por %p147, %p148
      %p150 = scmp.ne.s32.totalorder %s138, %s139
      %p151 = scmp.eq.s32.totalorder %s24, 1
      %p152 = por %p150, %p151
      %p154 = scmp.ne.s32.totalorder %s139, %s153
      %p155 = scmp.eq.s32.totalorder %s24, 0
      %p156 = por %p154, %p155
      %s158 = sadd.s32 %s157, 1
      %p161 = scmp.eq.s32.totalorder %s18, 1
      %p162 = scmp.ne.s32.totalorder %s157, %s159
      %p163 = scmp.eq.s32.totalorder %s18, 0
      %p164 = por %p162, %p163
      %p165 = scmp.ne.s32.totalorder %s157, %s159
      %p166 = scmp.eq.s32.totalorder %s23, 1
      %p167 = por %p165, %p166
      %p168 = scmp.ne.s32.totalorder %s159, %s160
      %p169 = scmp.eq.s32.totalorder %s23, 0
      %p170 = por %p168, %p169
      %p171 = scmp.ne.s32.totalorder %s159, %s160
      %p172 = scmp.eq.s32.totalorder %s24, 1
      %p173 = por %p171, %p172
      %p175 = scmp.ne.s32.totalorder %s160, %s174
      %p176 = scmp.eq.s32.totalorder %s24, 0
      %p177 = por %p175, %p176
      %s179 = sadd.s32 %s178, 1
      %p182 = scmp.eq.s32.totalorder %s18, 1
      %p183 = scmp.ne.s32.totalorder %s178, %s180
      %p184 = scmp.eq.s32.totalorder %s18, 0
      %p185 = por %p183, %p184
      %p186 = scmp.ne.s32.totalorder %s178, %s180
      %p187 = scmp.eq.s32.totalorder %s23, 1
      %p188 = por %p186, %p187
      %p189 = scmp.ne.s32.totalorder %s180, %s181
      %p190 = scmp.eq.s32.totalorder %s23, 0
      %p191 = por %p189, %p190
      %p192 = scmp.ne.s32.totalorder %s180, %s181
      %p193 = scmp.eq.s32.totalorder %s24, 1
      %p194 = por %p192, %p193
      %p196 = scmp.ne.s32.totalorder %s181, %s195
      %p197 = scmp.eq.s32.totalorder %s24, 0
      %p198 = por %p196, %p197
      %s200 = sadd.s32 %s199, 1
      %p203 = scmp.eq.s32.totalorder %s18, 1
      %p204 = scmp.ne.s32.totalorder %s199, %s201
      %p205 = scmp.eq.s32.totalorder %s18, 0
      %p206 = por %p204, %p205
      %p207 = scmp.ne.s32.totalorder %s199, %s201
      %p208 = scmp.eq.s32.totalorder %s23, 1
      %p209 = por %p207, %p208
      %p210 = scmp.ne.s32.totalorder %s201, %s202
      %p211 = scmp.eq.s32.totalorder %s23, 0
      %p212 = por %p210, %p211
      %p213 = scmp.ne.s32.totalorder %s201, %s202
      %p214 = scmp.eq.s32.totalorder %s24, 1
      %p215 = por %p213, %p214
      %p217 = scmp.ne.s32.totalorder %s202, %s216
      %p218 = scmp.eq.s32.totalorder %s24, 0
      %p219 = por %p217, %p218
      %s221 = sadd.s32 %s220, 1
      %p224 = scmp.eq.s32.totalorder %s18, 1
      %p225 = scmp.ne.s32.totalorder %s220, %s222
      %p226 = scmp.eq.s32.totalorder %s18, 0
      %p227 = por %p225, %p226
      %p228 = scmp.ne.s32.totalorder %s220, %s222
      %p229 = scmp.eq.s32.totalorder %s23, 1
      %p230 = por %p228, %p229
      %p231 = scmp.ne.s32.totalorder %s222, %s223
      %p232 = scmp.eq.s32.totalorder %s23, 0
      %p233 = por %p231, %p232
      %p234 = scmp.ne.s32.totalorder %s222, %s223
      %p235 = scmp.eq.s32.totalorder %s24, 1
      %p236 = por %p234, %p235
      %p238 = scmp.ne.s32.totalorder %s223, %s237
      %p239 = scmp.eq.s32.totalorder %s24, 0
      %p240 = por %p238, %p239
      %s241 = ssub.s32 %s18, %s25
      %p242 = scmp.eq.s32.totalorder %s241, 0
      %s244 = sadd.s32 %s243, 1
      %s245 = scalar_select %p242, %s243, %s244
      %p248 = pneg %p242
      %p249 = scmp.eq.s32.totalorder %s18, 1
      %p250 = por %p248, %p249
      %p251 = scmp.ne.s32.totalorder %s243, %s246
      %p252 = scmp.eq.s32.totalorder %s18, 0
      %p253 = por %p251, %p252
      %p254 = scmp.ne.s32.totalorder %s243, %s246
      %p255 = scmp.eq.s32.totalorder %s23, 1
      %p256 = por %p254, %p255
      %p257 = scmp.ne.s32.totalorder %s246, %s247
      %p258 = scmp.eq.s32.totalorder %s23, 0
      %p259 = por %p257, %p258
      %p260 = scmp.ne.s32.totalorder %s246, %s247
      %p261 = scmp.eq.s32.totalorder %s24, 1
      %p262 = por %p260, %p261
      %p264 = scmp.ne.s32.totalorder %s247, %s263
      %p265 = scmp.eq.s32.totalorder %s24, 0
      %p266 = por %p264, %p265
      %p267 = scmp.le.s32.totalorder 1, %s18
      %p268 = scmp.lt.s32.totalorder %s18, 3
      %p269 = pnand %p267, %p268
      %p270 = pneg %p269
      // Predicated region
      $region9: #{unet_conv2_forward.1} parent=5 // pred_check
        _
      $region10: #{unet_conv2_forward.1} parent=5 // pred_check_branch
        %272 = sbr.rel (%p269) target = $region12
      $region11: #{unet_conv2_forward.1} parent=5 // pred_region
        %s273 = ssub.s32 %s18, 1
        // Predicated region
        $region13: #{unet_conv2_forward.1} parent=11 // pred_check
          %p274 = pneg %p65
        $region14: #{unet_conv2_forward.1} parent=11 // pred_check_branch
          %276 = sbr.rel (%p274) target = $region16
        $region15: #{unet_conv2_forward.1} parent=11 // pred_region
          _
        $region16: #{unet_conv2_forward.1} parent=11 // pred_fallthru
          _
        // Predicated region
        $region17: #{unet_conv2_forward.1} parent=11 // pred_check
          %p277 = pneg %p86
        $region18: #{unet_conv2_forward.1} parent=11 // pred_check_branch
          %279 = sbr.rel (%p277) target = $region20
        $region19: #{unet_conv2_forward.1} parent=11 // pred_region
          _
        $region20: #{unet_conv2_forward.1} parent=11 // pred_fallthru
          _
        // Predicated region
        $region21: #{unet_conv2_forward.1} parent=11 // pred_check
          %p280 = pneg %p107
        $region22: #{unet_conv2_forward.1} parent=11 // pred_check_branch
          %282 = sbr.rel (%p280) target = $region24
        $region23: #{unet_conv2_forward.1} parent=11 // pred_region
          _
        $region24: #{unet_conv2_forward.1} parent=11 // pred_fallthru
          _
        // Predicated region
        $region25: #{unet_conv2_forward.1} parent=11 // pred_check
          %p283 = pneg %p128
        $region26: #{unet_conv2_forward.1} parent=11 // pred_check_branch
          %285 = sbr.rel (%p283) target = $region28
        $region27: #{unet_conv2_forward.1} parent=11 // pred_region
          %287 = vsyncadd [#allocation3], 0
          %s288 = sshll.u32 %s4, 4
          %s289 = int_to_ptr.hbm [resolvable:$true] %s288
          %s290 = sshll.u32 [#allocation2], 4
          %s291 = int_to_ptr.vmem [resolvable:$true] %s290
          %296 = dma.hbm_to_vmem [thread:$0]  %s289, 9216, %s291, [#allocation3], 64, 64, 4
        $region28: #{unet_conv2_forward.1} parent=11 // pred_fallthru
          _
        // Predicated region
        $region29: #{unet_conv2_forward.1} parent=11 // pred_check
          %p297 = pneg %p149
        $region30: #{unet_conv2_forward.1} parent=11 // pred_check_branch
          %299 = sbr.rel (%p297) target = $region32
        $region31: #{unet_conv2_forward.1} parent=11 // pred_region
          _
        $region32: #{unet_conv2_forward.1} parent=11 // pred_fallthru
          _
        // Predicated region
        $region33: #{unet_conv2_forward.1} parent=11 // pred_check
          %p300 = pneg %p170
        $region34: #{unet_conv2_forward.1} parent=11 // pred_check_branch
          %302 = sbr.rel (%p300) target = $region36
        $region35: #{unet_conv2_forward.1} parent=11 // pred_region
          _
        $region36: #{unet_conv2_forward.1} parent=11 // pred_fallthru
          _
        // Predicated region
        $region37: #{unet_conv2_forward.1} parent=11 // pred_check
          %p303 = pneg %p191
        $region38: #{unet_conv2_forward.1} parent=11 // pred_check_branch
          %305 = sbr.rel (%p303) target = $region40
        $region39: #{unet_conv2_forward.1} parent=11 // pred_region
          %307 = vsyncadd [#allocation5], 0
          %s308 = sshll.u32 %s7, 4
          %s309 = int_to_ptr.hbm [resolvable:$true] %s308
          %s310 = sshll.u32 [#allocation4], 4
          %s311 = int_to_ptr.vmem [resolvable:$true] %s310
          %316 = dma.hbm_to_vmem [thread:$0]  %s309, 9216, %s311, [#allocation5], 64, 64, 4
        $region40: #{unet_conv2_forward.1} parent=11 // pred_fallthru
          _
        // Predicated region
        $region41: #{unet_conv2_forward.1} parent=11 // pred_check
          %p317 = pneg %p212
        $region42: #{unet_conv2_forward.1} parent=11 // pred_check_branch
          %319 = sbr.rel (%p317) target = $region44
        $region43: #{unet_conv2_forward.1} parent=11 // pred_region
          _
        $region44: #{unet_conv2_forward.1} parent=11 // pred_fallthru
          _
        // Predicated region
        $region45: #{unet_conv2_forward.1} parent=11 // pred_check
          %p320 = pneg %p233
        $region46: #{unet_conv2_forward.1} parent=11 // pred_check_branch
          %322 = sbr.rel (%p320) target = $region48
        $region47: #{unet_conv2_forward.1} parent=11 // pred_region
          _
        $region48: #{unet_conv2_forward.1} parent=11 // pred_fallthru
          _
      $region12: #{unet_conv2_forward.1} parent=5 // pred_fallthru
        _
      %p323 = scmp.lt.s32.totalorder %s18, 2
      // Predicated region
      $region49: #{unet_conv2_forward.1} parent=5 // pred_check
        %p324 = pneg %p323
      $region50: #{unet_conv2_forward.1} parent=5 // pred_check_branch
        %326 = sbr.rel (%p324) target = $region52
      $region51: #{unet_conv2_forward.1} parent=5 // pred_region
        // Predicated region
        $region53: #{unet_conv2_forward.1} parent=51 // pred_check
          %p327 = pneg %p38
        $region54: #{unet_conv2_forward.1} parent=51 // pred_check_branch
          %329 = sbr.rel (%p327) target = $region56
        $region55: #{unet_conv2_forward.1} parent=51 // pred_region
          %p330 = scmp.lt.s32.totalorder %s18, 1
          %s331 = scalar_select %p330, %s18, 1
          %s332 = smul.addr %s331, 32
          %s333 = smul.addr %s332, 4
          %s334 = scalar_lea.vmem %s0, %s333
        $region56: #{unet_conv2_forward.1} parent=51 // pred_fallthru
          _
      $region52: #{unet_conv2_forward.1} parent=5 // pred_fallthru
        _
      %p335 = scmp.le.s32.totalorder 1, %s18
      %p336 = scmp.lt.s32.totalorder %s18, 3
      %p337 = pnand %p335, %p336
      %p338 = pneg %p337
      // Predicated region
      $region57: #{unet_conv2_forward.1} parent=5 // pred_check
        _
      $region58: #{unet_conv2_forward.1} parent=5 // pred_check_branch
        %340 = sbr.rel (%p337) target = $region60
      $region59: #{unet_conv2_forward.1} parent=5 // pred_region
        %s341 = ssub.s32 %s18, 1
        // Predicated region
        $region61: #{unet_conv2_forward.1} parent=59 // pred_check
          %p342 = pneg %p128
        $region62: #{unet_conv2_forward.1} parent=59 // pred_check_branch
          %344 = sbr.rel (%p342) target = $region64
        $region63: #{unet_conv2_forward.1} parent=59 // pred_region
          %346 = dma.done [#allocation3], 9216
        $region64: #{unet_conv2_forward.1} parent=59 // pred_fallthru
          _
        // Predicated region
        $region65: #{unet_conv2_forward.1} parent=59 // pred_check
          %p347 = pneg %p191
        $region66: #{unet_conv2_forward.1} parent=59 // pred_check_branch
          %349 = sbr.rel (%p347) target = $region68
        $region67: #{unet_conv2_forward.1} parent=59 // pred_region
          %351 = dma.done [#allocation5], 9216
        $region68: #{unet_conv2_forward.1} parent=59 // pred_fallthru
          _
        %p352 = scmp.lt.s32.totalorder %s23, 1
        %s353 = scalar_select %p352, %s23, 1
        %s354 = smul.addr %s353, 32
        %s355 = smul.addr %s354, 4
        %s356 = scalar_lea.vmem %s0, %s355
        %p357 = pneg %p44
        %p358 = pneg %p41
        %p359 = pneg %p65
        %p360 = pneg %p62
        %p361 = pneg %p86
        %p362 = pneg %p83
        %p363 = pneg %p107
        %p364 = pneg %p104
        %p365 = pneg %p128
        %p366 = pneg %p125
        %p367 = pneg %p149
        %p368 = pneg %p146
        %p369 = pneg %p170
        %p370 = pneg %p167
        %p371 = pneg %p191
        %p372 = pneg %p188
        %p373 = pneg %p212
        %p374 = pneg %p209
        %p375 = pneg %p233
        %p376 = pneg %p230
        %p377 = pneg %p259
        %p378 = pneg %p256
        %p379 = scmp.lt.s32.totalorder %s23, 1
        %s380 = scalar_select %p379, %s23, 1
        %s381 = smul.addr %s380, 32
        %s382 = smul.addr %s381, 8
        %s383 = scalar_lea.vmem %s10, %s382
        %p384 = scmp.lt.s32.totalorder %s23, 1
        %s385 = scalar_select %p384, %s23, 1
        %s386 = smul.addr %s385, 32
        %s387 = smul.addr %s386, 4
        %s388 = scalar_lea.vmem %s0, %s387
        %p389 = scmp.lt.s32.totalorder %s23, 1
        %s390 = scalar_select %p389, %s23, 1
        %s391 = smul.addr %s390, 32
        %s392 = smul.addr %s391, 8
        %s393 = scalar_lea.vmem %s10, %s392
        %v395 = vld [vmem:[%s388] sm:$0xf]
        %v396 = vld [vmem:[%s388 + $0x4] sm:$0xf]
        %v397 = vld [vmem:[%s388 + $0x8] sm:$0xf]
        %v398 = vld [vmem:[%s388 + $0xc] sm:$0xf]
        %v399 = vld [vmem:[%s388 + $0x10] sm:$0xf]
        %v400 = vld [vmem:[%s388 + $0x14] sm:$0xf]
        %v401 = vld [vmem:[%s388 + $0x18] sm:$0xf]
        %v402 = vld [vmem:[%s388 + $0x1c] sm:$0xf]
        %v403 = vld [vmem:[%s388 + $0x20] sm:$0xf]
        %v404 = vld [vmem:[%s388 + $0x24] sm:$0xf]
        %v405 = vld [vmem:[%s388 + $0x28] sm:$0xf]
        %v406 = vld [vmem:[%s388 + $0x2c] sm:$0xf]
        %v407 = vld [vmem:[%s388 + $0x30] sm:$0xf]
        %v408 = vld [vmem:[%s388 + $0x34] sm:$0xf]
        %v409 = vld [vmem:[%s388 + $0x38] sm:$0xf]
        %v410 = vld [vmem:[%s388 + $0x3c] sm:$0xf]
        %v411 = vld [vmem:[%s388 + $0x40] sm:$0xf]
        %v412 = vld [vmem:[%s388 + $0x44] sm:$0xf]
        %v413 = vld [vmem:[%s388 + $0x48] sm:$0xf]
        %v414 = vld [vmem:[%s388 + $0x4c] sm:$0xf]
        %v415 = vld [vmem:[%s388 + $0x50] sm:$0xf]
        %v416 = vld [vmem:[%s388 + $0x54] sm:$0xf]
        %v417 = vld [vmem:[%s388 + $0x58] sm:$0xf]
        %v418 = vld [vmem:[%s388 + $0x5c] sm:$0xf]
        %v419 = vld [vmem:[%s388 + $0x60] sm:$0xf]
        %v420 = vld [vmem:[%s388 + $0x64] sm:$0xf]
        %v421 = vld [vmem:[%s388 + $0x68] sm:$0xf]
        %v422 = vld [vmem:[%s388 + $0x6c] sm:$0xf]
        %v423 = vld [vmem:[%s388 + $0x70] sm:$0xf]
        %v424 = vld [vmem:[%s388 + $0x74] sm:$0xf]
        %v425 = vld [vmem:[%s388 + $0x78] sm:$0xf]
        %v426 = vld [vmem:[%s388 + $0x7c] sm:$0xf]
        %v459 = vunpack.c.l.b16 %v395
        %v460 = vunpack.c.l.b16 %v396
        %v461 = vunpack.c.l.b16 %v397
        %v462 = vunpack.c.l.b16 %v398
        %v463 = vunpack.c.l.b16 %v399
        %v464 = vunpack.c.l.b16 %v400
        %v465 = vunpack.c.l.b16 %v401
        %v466 = vunpack.c.l.b16 %v402
        %v467 = vunpack.c.l.b16 %v403
        %v468 = vunpack.c.l.b16 %v404
        %v469 = vunpack.c.l.b16 %v405
        %v470 = vunpack.c.l.b16 %v406
        %v471 = vunpack.c.l.b16 %v407
        %v472 = vunpack.c.l.b16 %v408
        %v473 = vunpack.c.l.b16 %v409
        %v474 = vunpack.c.l.b16 %v410
        %v475 = vunpack.c.l.b16 %v411
        %v476 = vunpack.c.l.b16 %v412
        %v477 = vunpack.c.l.b16 %v413
        %v478 = vunpack.c.l.b16 %v414
        %v479 = vunpack.c.l.b16 %v415
        %v480 = vunpack.c.l.b16 %v416
        %v481 = vunpack.c.l.b16 %v417
        %v482 = vunpack.c.l.b16 %v418
        %v483 = vunpack.c.l.b16 %v419
        %v484 = vunpack.c.l.b16 %v420
        %v485 = vunpack.c.l.b16 %v421
        %v486 = vunpack.c.l.b16 %v422
        %v487 = vunpack.c.l.b16 %v423
        %v488 = vunpack.c.l.b16 %v424
        %v489 = vunpack.c.l.b16 %v425
        %v490 = vunpack.c.l.b16 %v426
        %v491 = vpack.c.b16 %v460, %v459
        %v492 = vpack.c.b16 %v462, %v461
        %v493 = vpack.c.b16 %v464, %v463
        %v494 = vpack.c.b16 %v466, %v465
        %v495 = vpack.c.b16 %v468, %v467
        %v496 = vpack.c.b16 %v470, %v469
        %v497 = vpack.c.b16 %v472, %v471
        %v498 = vpack.c.b16 %v474, %v473
        %v499 = vpack.c.b16 %v476, %v475
        %v500 = vpack.c.b16 %v478, %v477
        %v501 = vpack.c.b16 %v480, %v479
        %v502 = vpack.c.b16 %v482, %v481
        %v503 = vpack.c.b16 %v484, %v483
        %v504 = vpack.c.b16 %v486, %v485
        %v505 = vpack.c.b16 %v488, %v487
        %v506 = vpack.c.b16 %v490, %v489
        %v508 = vshrl.u32 0, 16
        %v510 = vrot.slane %v508, 7
        %v511 = vshll.u32 0, 16
        %v513 = vor.u32 %v510, %v511
        %v515 = vshrl.u32 %v491, 16
        %v517 = vrot.slane %v515, 7
        %v518 = vshll.u32 %v491, 16
        %v520 = vor.u32 %v517, %v518
        %v522 = vshrl.u32 %v492, 16
        %v524 = vrot.slane %v522, 7
        %v525 = vshll.u32 %v492, 16
        %v527 = vor.u32 %v524, %v525
        %v529 = vshrl.u32 %v493, 16
        %v531 = vrot.slane %v529, 7
        %v532 = vshll.u32 %v493, 16
        %v534 = vor.u32 %v531, %v532
        %v536 = vshrl.u32 %v494, 16
        %v538 = vrot.slane %v536, 7
        %v539 = vshll.u32 %v494, 16
        %v541 = vor.u32 %v538, %v539
        %v543 = vshrl.u32 %v495, 16
        %v545 = vrot.slane %v543, 7
        %v546 = vshll.u32 %v495, 16
        %v548 = vor.u32 %v545, %v546
        %v550 = vshrl.u32 %v496, 16
        %v552 = vrot.slane %v550, 7
        %v553 = vshll.u32 %v496, 16
        %v555 = vor.u32 %v552, %v553
        %v557 = vshrl.u32 %v497, 16
        %v559 = vrot.slane %v557, 7
        %v560 = vshll.u32 %v497, 16
        %v562 = vor.u32 %v559, %v560
        %v564 = vshrl.u32 %v498, 16
        %v566 = vrot.slane %v564, 7
        %v567 = vshll.u32 %v498, 16
        %v569 = vor.u32 %v566, %v567
        %v571 = vshrl.u32 %v499, 16
        %v573 = vrot.slane %v571, 7
        %v574 = vshll.u32 %v499, 16
        %v576 = vor.u32 %v573, %v574
        %v578 = vshrl.u32 %v500, 16
        %v580 = vrot.slane %v578, 7
        %v581 = vshll.u32 %v500, 16
        %v583 = vor.u32 %v580, %v581
        %v585 = vshrl.u32 %v501, 16
        %v587 = vrot.slane %v585, 7
        %v588 = vshll.u32 %v501, 16
        %v590 = vor.u32 %v587, %v588
        %v592 = vshrl.u32 %v502, 16
        %v594 = vrot.slane %v592, 7
        %v595 = vshll.u32 %v502, 16
        %v597 = vor.u32 %v594, %v595
        %v599 = vshrl.u32 %v503, 16
        %v601 = vrot.slane %v599, 7
        %v602 = vshll.u32 %v503, 16
        %v604 = vor.u32 %v601, %v602
        %v606 = vshrl.u32 %v504, 16
        %v608 = vrot.slane %v606, 7
        %v609 = vshll.u32 %v504, 16
        %v611 = vor.u32 %v608, %v609
        %v613 = vshrl.u32 %v505, 16
        %v615 = vrot.slane %v613, 7
        %v616 = vshll.u32 %v505, 16
        %v618 = vor.u32 %v615, %v616
        %v620 = vshrl.u32 %v506, 16
        %v622 = vrot.slane %v620, 7
        %v623 = vshll.u32 %v506, 16
        %v625 = vor.u32 %v622, %v623
        %vm660 = vcmask 1040384
        %vm661 = vsmask.f32 256
        %vm662 = vmand %vm660, %vm661
        %v663 = vsel %vm662, 0, %v513
        %v664 = vsel %vm662, 0, %v520
        %v665 = vsel %vm662, 0, %v527
        %v666 = vsel %vm662, 0, %v534
        %v667 = vsel %vm662, 0, %v541
        %v668 = vsel %vm662, 0, %v548
        %v669 = vsel %vm662, 0, %v555
        %v670 = vsel %vm662, 0, %v562
        %v671 = vsel %vm662, 0, %v569
        %v672 = vsel %vm662, 0, %v576
        %v673 = vsel %vm662, 0, %v583
        %v674 = vsel %vm662, 0, %v590
        %v675 = vsel %vm662, 0, %v597
        %v676 = vsel %vm662, 0, %v604
        %v677 = vsel %vm662, 0, %v611
        %v678 = vsel %vm662, 0, %v618
        %v679 = vsel %vm662, 0, %v625
        %v680 = vsel %vm662, %v510, 0
        %v681 = vsel %vm662, %v517, 0
        %v682 = vsel %vm662, %v524, 0
        %v683 = vsel %vm662, %v531, 0
        %v684 = vsel %vm662, %v538, 0
        %v685 = vsel %vm662, %v545, 0
        %v686 = vsel %vm662, %v552, 0
        %v687 = vsel %vm662, %v559, 0
        %v688 = vsel %vm662, %v566, 0
        %v689 = vsel %vm662, %v573, 0
        %v690 = vsel %vm662, %v580, 0
        %v691 = vsel %vm662, %v587, 0
        %v692 = vsel %vm662, %v594, 0
        %v693 = vsel %vm662, %v601, 0
        %v694 = vsel %vm662, %v608, 0
        %v695 = vsel %vm662, %v615, 0
        %v696 = vsel %vm662, %v622, 0
        %vm697 = vsmask.f32 7424
        %v699 = vshrl.u32 %v663, 16
        %v701 = vshll.u32 %v663, 16
        %v703 = vrot.slane %v701, 1
        %v704 = vor.u32 %v699, %v703
        %v706 = vshll.u32 %v680, 16
        %v708 = vrot.slane %v706, 1
        %v709 = vsel %vm697, %v704, %v708
        %v711 = vshrl.u32 %v664, 16
        %v713 = vshll.u32 %v664, 16
        %v715 = vrot.slane %v713, 1
        %v716 = vor.u32 %v711, %v715
        %v718 = vshll.u32 %v681, 16
        %v720 = vrot.slane %v718, 1
        %v721 = vsel %vm697, %v716, %v720
        %v723 = vshrl.u32 %v665, 16
        %v725 = vshll.u32 %v665, 16
        %v727 = vrot.slane %v725, 1
        %v728 = vor.u32 %v723, %v727
        %v730 = vshll.u32 %v682, 16
        %v732 = vrot.slane %v730, 1
        %v733 = vsel %vm697, %v728, %v732
        %v735 = vshrl.u32 %v666, 16
        %v737 = vshll.u32 %v666, 16
        %v739 = vrot.slane %v737, 1
        %v740 = vor.u32 %v735, %v739
        %v742 = vshll.u32 %v683, 16
        %v744 = vrot.slane %v742, 1
        %v745 = vsel %vm697, %v740, %v744
        %v747 = vshrl.u32 %v667, 16
        %v749 = vshll.u32 %v667, 16
        %v751 = vrot.slane %v749, 1
        %v752 = vor.u32 %v747, %v751
        %v754 = vshll.u32 %v684, 16
        %v756 = vrot.slane %v754, 1
        %v757 = vsel %vm697, %v752, %v756
        %v759 = vshrl.u32 %v668, 16
        %v761 = vshll.u32 %v668, 16
        %v763 = vrot.slane %v761, 1
        %v764 = vor.u32 %v759, %v763
        %v766 = vshll.u32 %v685, 16
        %v768 = vrot.slane %v766, 1
        %v769 = vsel %vm697, %v764, %v768
        %v771 = vshrl.u32 %v669, 16
        %v773 = vshll.u32 %v669, 16
        %v775 = vrot.slane %v773, 1
        %v776 = vor.u32 %v771, %v775
        %v778 = vshll.u32 %v686, 16
        %v780 = vrot.slane %v778, 1
        %v781 = vsel %vm697, %v776, %v780
        %v783 = vshrl.u32 %v670, 16
        %v785 = vshll.u32 %v670, 16
        %v787 = vrot.slane %v785, 1
        %v788 = vor.u32 %v783, %v787
        %v790 = vshll.u32 %v687, 16
        %v792 = vrot.slane %v790, 1
        %v793 = vsel %vm697, %v788, %v792
        %v795 = vshrl.u32 %v671, 16
        %v797 = vshll.u32 %v671, 16
        %v799 = vrot.slane %v797, 1
        %v800 = vor.u32 %v795, %v799
        %v802 = vshll.u32 %v688, 16
        %v804 = vrot.slane %v802, 1
        %v805 = vsel %vm697, %v800, %v804
        %v807 = vshrl.u32 %v672, 16
        %v809 = vshll.u32 %v672, 16
        %v811 = vrot.slane %v809, 1
        %v812 = vor.u32 %v807, %v811
        %v814 = vshll.u32 %v689, 16
        %v816 = vrot.slane %v814, 1
        %v817 = vsel %vm697, %v812, %v816
        %v819 = vshrl.u32 %v673, 16
        %v821 = vshll.u32 %v673, 16
        %v823 = vrot.slane %v821, 1
        %v824 = vor.u32 %v819, %v823
        %v826 = vshll.u32 %v690, 16
        %v828 = vrot.slane %v826, 1
        %v829 = vsel %vm697, %v824, %v828
        %v831 = vshrl.u32 %v674, 16
        %v833 = vshll.u32 %v674, 16
        %v835 = vrot.slane %v833, 1
        %v836 = vor.u32 %v831, %v835
        %v838 = vshll.u32 %v691, 16
        %v840 = vrot.slane %v838, 1
        %v841 = vsel %vm697, %v836, %v840
        %v843 = vshrl.u32 %v675, 16
        %v845 = vshll.u32 %v675, 16
        %v847 = vrot.slane %v845, 1
        %v848 = vor.u32 %v843, %v847
        %v850 = vshll.u32 %v692, 16
        %v852 = vrot.slane %v850, 1
        %v853 = vsel %vm697, %v848, %v852
        %v855 = vshrl.u32 %v676, 16
        %v857 = vshll.u32 %v676, 16
        %v859 = vrot.slane %v857, 1
        %v860 = vor.u32 %v855, %v859
        %v862 = vshll.u32 %v693, 16
        %v864 = vrot.slane %v862, 1
        %v865 = vsel %vm697, %v860, %v864
        %v867 = vshrl.u32 %v677, 16
        %v869 = vshll.u32 %v677, 16
        %v871 = vrot.slane %v869, 1
        %v872 = vor.u32 %v867, %v871
        %v874 = vshll.u32 %v694, 16
        %v876 = vrot.slane %v874, 1
        %v877 = vsel %vm697, %v872, %v876
        %v879 = vshrl.u32 %v678, 16
        %v881 = vshll.u32 %v678, 16
        %v883 = vrot.slane %v881, 1
        %v884 = vor.u32 %v879, %v883
        %v886 = vshll.u32 %v695, 16
        %v888 = vrot.slane %v886, 1
        %v889 = vsel %vm697, %v884, %v888
        %vm938 = vcmask 1046528
        %v939 = vrot.slane %v663, 1
        %v940 = vrot.slane %v680, 1
        %v941 = vsel %vm938, %v939, %v940
        %v942 = vrot.slane %v664, 1
        %v943 = vrot.slane %v681, 1
        %v944 = vsel %vm938, %v942, %v943
        %v945 = vrot.slane %v665, 1
        %v946 = vrot.slane %v682, 1
        %v947 = vsel %vm938, %v945, %v946
        %v948 = vrot.slane %v666, 1
        %v949 = vrot.slane %v683, 1
        %v950 = vsel %vm938, %v948, %v949
        %v951 = vrot.slane %v667, 1
        %v952 = vrot.slane %v684, 1
        %v953 = vsel %vm938, %v951, %v952
        %v954 = vrot.slane %v668, 1
        %v955 = vrot.slane %v685, 1
        %v956 = vsel %vm938, %v954, %v955
        %v957 = vrot.slane %v669, 1
        %v958 = vrot.slane %v686, 1
        %v959 = vsel %vm938, %v957, %v958
        %v960 = vrot.slane %v670, 1
        %v961 = vrot.slane %v687, 1
        %v962 = vsel %vm938, %v960, %v961
        %v963 = vrot.slane %v671, 1
        %v964 = vrot.slane %v688, 1
        %v965 = vsel %vm938, %v963, %v964
        %v966 = vrot.slane %v672, 1
        %v967 = vrot.slane %v689, 1
        %v968 = vsel %vm938, %v966, %v967
        %v969 = vrot.slane %v673, 1
        %v970 = vrot.slane %v690, 1
        %v971 = vsel %vm938, %v969, %v970
        %v972 = vrot.slane %v674, 1
        %v973 = vrot.slane %v691, 1
        %v974 = vsel %vm938, %v972, %v973
        %v975 = vrot.slane %v675, 1
        %v976 = vrot.slane %v692, 1
        %v977 = vsel %vm938, %v975, %v976
        %v978 = vrot.slane %v676, 1
        %v979 = vrot.slane %v693, 1
        %v980 = vsel %vm938, %v978, %v979
        %v981 = vrot.slane %v677, 1
        %v982 = vrot.slane %v694, 1
        %v983 = vsel %vm938, %v981, %v982
        %v984 = vrot.slane %v678, 1
        %v985 = vrot.slane %v695, 1
        %v986 = vsel %vm938, %v984, %v985
        %v1004 = vshrl.u32 %v679, 16
        %v1006 = vshll.u32 %v679, 16
        %v1008 = vrot.slane %v1006, 1
        %v1009 = vor.u32 %v1004, %v1008
        %v1011 = vshll.u32 %v696, 16
        %v1013 = vrot.slane %v1011, 1
        %v1014 = vsel %vm697, %v1009, %v1013
        %v1018 = vrot.slane %v679, 1
        %v1019 = vrot.slane %v696, 1
        %v1020 = vsel %vm938, %v1018, %v1019
        %v1022 = vld [vmem:[%s1] sm:$0xf]
        %v1023 = vld [vmem:[%s1 + $0x4] sm:$0xf]
        %v1024 = vld [vmem:[%s1 + $0x8] sm:$0xf]
        %v1025 = vld [vmem:[%s1 + $0xc] sm:$0xf]
        %v1026 = vld [vmem:[%s1 + $0x10] sm:$0xf]
        %v1027 = vld [vmem:[%s1 + $0x14] sm:$0xf]
        %v1028 = vld [vmem:[%s1 + $0x18] sm:$0xf]
        %v1029 = vld [vmem:[%s1 + $0x1c] sm:$0xf]
        %v1030 = vld [vmem:[%s1 + $0x20] sm:$0xf]
        %v1031 = vld [vmem:[%s1 + $0x24] sm:$0xf]
        %v1032 = vld [vmem:[%s1 + $0x28] sm:$0xf]
        %v1033 = vld [vmem:[%s1 + $0x2c] sm:$0xf]
        %v1034 = vld [vmem:[%s1 + $0x30] sm:$0xf]
        %v1035 = vld [vmem:[%s1 + $0x34] sm:$0xf]
        %v1036 = vld [vmem:[%s1 + $0x38] sm:$0xf]
        %v1037 = vld [vmem:[%s1 + $0x3c] sm:$0xf]
        %v1038 = vld [vmem:[%s1 + $0x40] sm:$0xf]
        %v1039 = vld [vmem:[%s1 + $0x44] sm:$0xf]
        %v1040 = vld [vmem:[%s1 + $0x48] sm:$0xf]
        %v1041 = vld [vmem:[%s1 + $0x4c] sm:$0xf]
        %v1042 = vld [vmem:[%s1 + $0x50] sm:$0xf]
        %v1043 = vld [vmem:[%s1 + $0x54] sm:$0xf]
        %v1044 = vld [vmem:[%s1 + $0x58] sm:$0xf]
        %v1045 = vld [vmem:[%s1 + $0x5c] sm:$0xf]
        %v1046 = vld [vmem:[%s1 + $0x60] sm:$0xf]
        %v1047 = vld [vmem:[%s1 + $0x64] sm:$0xf]
        %v1048 = vld [vmem:[%s1 + $0x68] sm:$0xf]
        %v1049 = vld [vmem:[%s1 + $0x6c] sm:$0xf]
        %v1050 = vld [vmem:[%s1 + $0x70] sm:$0xf]
        %v1051 = vld [vmem:[%s1 + $0x74] sm:$0xf]
        %v1052 = vld [vmem:[%s1 + $0x78] sm:$0xf]
        %v1053 = vld [vmem:[%s1 + $0x7c] sm:$0xf]
        %v1054 = vld [vmem:[%s1 + $0x80] sm:$0xf]
        %v1055 = vld [vmem:[%s1 + $0x84] sm:$0xf]
        %v1056 = vld [vmem:[%s1 + $0x88] sm:$0xf]
        %v1057 = vld [vmem:[%s1 + $0x8c] sm:$0xf]
        %v1058 = vld [vmem:[%s1 + $0x90] sm:$0xf]
        %v1059 = vld [vmem:[%s1 + $0x94] sm:$0xf]
        %v1060 = vld [vmem:[%s1 + $0x98] sm:$0xf]
        %v1061 = vld [vmem:[%s1 + $0x9c] sm:$0xf]
        %v1062 = vld [vmem:[%s1 + $0xa0] sm:$0xf]
        %v1063 = vld [vmem:[%s1 + $0xa4] sm:$0xf]
        %v1064 = vld [vmem:[%s1 + $0xa8] sm:$0xf]
        %v1065 = vld [vmem:[%s1 + $0xac] sm:$0xf]
        %v1066 = vld [vmem:[%s1 + $0xb0] sm:$0xf]
        %v1067 = vld [vmem:[%s1 + $0xb4] sm:$0xf]
        %v1068 = vld [vmem:[%s1 + $0xb8] sm:$0xf]
        %v1069 = vld [vmem:[%s1 + $0xbc] sm:$0xf]
        %v1070 = vld [vmem:[%s1 + $0xc0] sm:$0xf]
        %v1071 = vld [vmem:[%s1 + $0xc4] sm:$0xf]
        %v1072 = vld [vmem:[%s1 + $0xc8] sm:$0xf]
        %v1073 = vld [vmem:[%s1 + $0xcc] sm:$0xf]
        %v1074 = vld [vmem:[%s1 + $0xd0] sm:$0xf]
        %v1075 = vld [vmem:[%s1 + $0xd4] sm:$0xf]
        %v1076 = vld [vmem:[%s1 + $0xd8] sm:$0xf]
        %v1077 = vld [vmem:[%s1 + $0xdc] sm:$0xf]
        %v1078 = vld [vmem:[%s1 + $0xe0] sm:$0xf]
        %v1079 = vld [vmem:[%s1 + $0xe4] sm:$0xf]
        %v1080 = vld [vmem:[%s1 + $0xe8] sm:$0xf]
        %v1081 = vld [vmem:[%s1 + $0xec] sm:$0xf]
        %v1082 = vld [vmem:[%s1 + $0xf0] sm:$0xf]
        %v1083 = vld [vmem:[%s1 + $0xf4] sm:$0xf]
        %v1084 = vld [vmem:[%s1 + $0xf8] sm:$0xf]
        %v1085 = vld [vmem:[%s1 + $0xfc] sm:$0xf]
        %v1086 = vld [vmem:[%s1 + $0x100] sm:$0xf]
        %v1087 = vld [vmem:[%s1 + $0x104] sm:$0xf]
        %v1088 = vld [vmem:[%s1 + $0x108] sm:$0xf]
        %v1089 = vld [vmem:[%s1 + $0x10c] sm:$0xf]
        %v1090 = vld [vmem:[%s1 + $0x110] sm:$0xf]
        %v1091 = vld [vmem:[%s1 + $0x114] sm:$0xf]
        %v1092 = vld [vmem:[%s1 + $0x118] sm:$0xf]
        %v1093 = vld [vmem:[%s1 + $0x11c] sm:$0xf]
        %v1094 = vld [vmem:[%s1 + $0x120] sm:$0xf]
        %v1095 = vld [vmem:[%s1 + $0x124] sm:$0xf]
        %v1096 = vld [vmem:[%s1 + $0x128] sm:$0xf]
        %v1097 = vld [vmem:[%s1 + $0x12c] sm:$0xf]
        %v1098 = vld [vmem:[%s1 + $0x130] sm:$0xf]
        %v1099 = vld [vmem:[%s1 + $0x134] sm:$0xf]
        %v1100 = vld [vmem:[%s1 + $0x138] sm:$0xf]
        %v1101 = vld [vmem:[%s1 + $0x13c] sm:$0xf]
        %v1102 = vld [vmem:[%s1 + $0x140] sm:$0xf]
        %v1103 = vld [vmem:[%s1 + $0x144] sm:$0xf]
        %v1104 = vld [vmem:[%s1 + $0x148] sm:$0xf]
        %v1105 = vld [vmem:[%s1 + $0x14c] sm:$0xf]
        %v1106 = vld [vmem:[%s1 + $0x150] sm:$0xf]
        %v1107 = vld [vmem:[%s1 + $0x154] sm:$0xf]
        %v1108 = vld [vmem:[%s1 + $0x158] sm:$0xf]
        %v1109 = vld [vmem:[%s1 + $0x15c] sm:$0xf]
        %v1110 = vld [vmem:[%s1 + $0x160] sm:$0xf]
        %v1111 = vld [vmem:[%s1 + $0x164] sm:$0xf]
        %v1112 = vld [vmem:[%s1 + $0x168] sm:$0xf]
        %v1113 = vld [vmem:[%s1 + $0x16c] sm:$0xf]
        %v1114 = vld [vmem:[%s1 + $0x170] sm:$0xf]
        %v1115 = vld [vmem:[%s1 + $0x174] sm:$0xf]
        %v1116 = vld [vmem:[%s1 + $0x178] sm:$0xf]
        %v1117 = vld [vmem:[%s1 + $0x17c] sm:$0xf]
        %v1118 = vld [vmem:[%s1 + $0x180] sm:$0xf]
        %v1119 = vld [vmem:[%s1 + $0x184] sm:$0xf]
        %v1120 = vld [vmem:[%s1 + $0x188] sm:$0xf]
        %v1121 = vld [vmem:[%s1 + $0x18c] sm:$0xf]
        %v1122 = vld [vmem:[%s1 + $0x190] sm:$0xf]
        %v1123 = vld [vmem:[%s1 + $0x194] sm:$0xf]
        %v1124 = vld [vmem:[%s1 + $0x198] sm:$0xf]
        %v1125 = vld [vmem:[%s1 + $0x19c] sm:$0xf]
        %v1126 = vld [vmem:[%s1 + $0x1a0] sm:$0xf]
        %v1127 = vld [vmem:[%s1 + $0x1a4] sm:$0xf]
        %v1128 = vld [vmem:[%s1 + $0x1a8] sm:$0xf]
        %v1129 = vld [vmem:[%s1 + $0x1ac] sm:$0xf]
        %v1130 = vld [vmem:[%s1 + $0x1b0] sm:$0xf]
        %v1131 = vld [vmem:[%s1 + $0x1b4] sm:$0xf]
        %v1132 = vld [vmem:[%s1 + $0x1b8] sm:$0xf]
        %v1133 = vld [vmem:[%s1 + $0x1bc] sm:$0xf]
        %v1134 = vld [vmem:[%s1 + $0x1c0] sm:$0xf]
        %v1135 = vld [vmem:[%s1 + $0x1c4] sm:$0xf]
        %v1136 = vld [vmem:[%s1 + $0x1c8] sm:$0xf]
        %v1137 = vld [vmem:[%s1 + $0x1cc] sm:$0xf]
        %v1138 = vld [vmem:[%s1 + $0x1d0] sm:$0xf]
        %v1139 = vld [vmem:[%s1 + $0x1d4] sm:$0xf]
        %v1140 = vld [vmem:[%s1 + $0x1d8] sm:$0xf]
        %v1141 = vld [vmem:[%s1 + $0x1dc] sm:$0xf]
        %v1142 = vld [vmem:[%s1 + $0x1e0] sm:$0xf]
        %v1143 = vld [vmem:[%s1 + $0x1e4] sm:$0xf]
        %v1144 = vld [vmem:[%s1 + $0x1e8] sm:$0xf]
        %v1145 = vld [vmem:[%s1 + $0x1ec] sm:$0xf]
        %v1146 = vld [vmem:[%s1 + $0x1f0] sm:$0xf]
        %v1147 = vld [vmem:[%s1 + $0x1f4] sm:$0xf]
        %v1148 = vld [vmem:[%s1 + $0x1f8] sm:$0xf]
        %v1149 = vld [vmem:[%s1 + $0x1fc] sm:$0xf]
        %v1150 = vld [vmem:[%s1 + $0x200] sm:$0xf]
        %v1151 = vld [vmem:[%s1 + $0x204] sm:$0xf]
        %v1152 = vld [vmem:[%s1 + $0x208] sm:$0xf]
        %v1153 = vld [vmem:[%s1 + $0x20c] sm:$0xf]
        %v1154 = vld [vmem:[%s1 + $0x210] sm:$0xf]
        %v1155 = vld [vmem:[%s1 + $0x214] sm:$0xf]
        %v1156 = vld [vmem:[%s1 + $0x218] sm:$0xf]
        %v1157 = vld [vmem:[%s1 + $0x21c] sm:$0xf]
        %v1158 = vld [vmem:[%s1 + $0x220] sm:$0xf]
        %v1159 = vld [vmem:[%s1 + $0x224] sm:$0xf]
        %v1160 = vld [vmem:[%s1 + $0x228] sm:$0xf]
        %v1161 = vld [vmem:[%s1 + $0x22c] sm:$0xf]
        %v1162 = vld [vmem:[%s1 + $0x230] sm:$0xf]
        %v1163 = vld [vmem:[%s1 + $0x234] sm:$0xf]
        %v1164 = vld [vmem:[%s1 + $0x238] sm:$0xf]
        %v1165 = vld [vmem:[%s1 + $0x23c] sm:$0xf]
        %v1310 = vunpack.c.l.b16 %v1022
        %v1311 = vunpack.c.l.b16 %v1023
        %v1312 = vunpack.c.l.b16 %v1024
        %v1313 = vunpack.c.l.b16 %v1025
        %v1314 = vunpack.c.l.b16 %v1026
        %v1315 = vunpack.c.l.b16 %v1027
        %v1316 = vunpack.c.l.b16 %v1028
        %v1317 = vunpack.c.l.b16 %v1029
        %v1318 = vunpack.c.l.b16 %v1030
        %v1319 = vunpack.c.l.b16 %v1031
        %v1320 = vunpack.c.l.b16 %v1032
        %v1321 = vunpack.c.l.b16 %v1033
        %v1322 = vunpack.c.l.b16 %v1034
        %v1323 = vunpack.c.l.b16 %v1035
        %v1324 = vunpack.c.l.b16 %v1036
        %v1325 = vunpack.c.l.b16 %v1037
        %v1326 = vunpack.c.l.b16 %v1038
        %v1327 = vunpack.c.l.b16 %v1039
        %v1328 = vunpack.c.l.b16 %v1040
        %v1329 = vunpack.c.l.b16 %v1041
        %v1330 = vunpack.c.l.b16 %v1042
        %v1331 = vunpack.c.l.b16 %v1043
        %v1332 = vunpack.c.l.b16 %v1044
        %v1333 = vunpack.c.l.b16 %v1045
        %v1334 = vunpack.c.l.b16 %v1046
        %v1335 = vunpack.c.l.b16 %v1047
        %v1336 = vunpack.c.l.b16 %v1048
        %v1337 = vunpack.c.l.b16 %v1049
        %v1338 = vunpack.c.l.b16 %v1050
        %v1339 = vunpack.c.l.b16 %v1051
        %v1340 = vunpack.c.l.b16 %v1052
        %v1341 = vunpack.c.l.b16 %v1053
        %v1342 = vunpack.c.l.b16 %v1054
        %v1343 = vunpack.c.l.b16 %v1055
        %v1344 = vunpack.c.l.b16 %v1056
        %v1345 = vunpack.c.l.b16 %v1057
        %v1346 = vunpack.c.l.b16 %v1058
        %v1347 = vunpack.c.l.b16 %v1059
        %v1348 = vunpack.c.l.b16 %v1060
        %v1349 = vunpack.c.l.b16 %v1061
        %v1350 = vunpack.c.l.b16 %v1062
        %v1351 = vunpack.c.l.b16 %v1063
        %v1352 = vunpack.c.l.b16 %v1064
        %v1353 = vunpack.c.l.b16 %v1065
        %v1354 = vunpack.c.l.b16 %v1066
        %v1355 = vunpack.c.l.b16 %v1067
        %v1356 = vunpack.c.l.b16 %v1068
        %v1357 = vunpack.c.l.b16 %v1069
        %v1358 = vunpack.c.l.b16 %v1070
        %v1359 = vunpack.c.l.b16 %v1071
        %v1360 = vunpack.c.l.b16 %v1072
        %v1361 = vunpack.c.l.b16 %v1073
        %v1362 = vunpack.c.l.b16 %v1074
        %v1363 = vunpack.c.l.b16 %v1075
        %v1364 = vunpack.c.l.b16 %v1076
        %v1365 = vunpack.c.l.b16 %v1077
        %v1366 = vunpack.c.l.b16 %v1078
        %v1367 = vunpack.c.l.b16 %v1079
        %v1368 = vunpack.c.l.b16 %v1080
        %v1369 = vunpack.c.l.b16 %v1081
        %v1370 = vunpack.c.l.b16 %v1082
        %v1371 = vunpack.c.l.b16 %v1083
        %v1372 = vunpack.c.l.b16 %v1084
        %v1373 = vunpack.c.l.b16 %v1085
        %v1374 = vunpack.c.l.b16 %v1086
        %v1375 = vunpack.c.l.b16 %v1087
        %v1376 = vunpack.c.l.b16 %v1088
        %v1377 = vunpack.c.l.b16 %v1089
        %v1378 = vunpack.c.l.b16 %v1090
        %v1379 = vunpack.c.l.b16 %v1091
        %v1380 = vunpack.c.l.b16 %v1092
        %v1381 = vunpack.c.l.b16 %v1093
        %v1382 = vunpack.c.l.b16 %v1094
        %v1383 = vunpack.c.l.b16 %v1095
        %v1384 = vunpack.c.l.b16 %v1096
        %v1385 = vunpack.c.l.b16 %v1097
        %v1386 = vunpack.c.l.b16 %v1098
        %v1387 = vunpack.c.l.b16 %v1099
        %v1388 = vunpack.c.l.b16 %v1100
        %v1389 = vunpack.c.l.b16 %v1101
        %v1390 = vunpack.c.l.b16 %v1102
        %v1391 = vunpack.c.l.b16 %v1103
        %v1392 = vunpack.c.l.b16 %v1104
        %v1393 = vunpack.c.l.b16 %v1105
        %v1394 = vunpack.c.l.b16 %v1106
        %v1395 = vunpack.c.l.b16 %v1107
        %v1396 = vunpack.c.l.b16 %v1108
        %v1397 = vunpack.c.l.b16 %v1109
        %v1398 = vunpack.c.l.b16 %v1110
        %v1399 = vunpack.c.l.b16 %v1111
        %v1400 = vunpack.c.l.b16 %v1112
        %v1401 = vunpack.c.l.b16 %v1113
        %v1402 = vunpack.c.l.b16 %v1114
        %v1403 = vunpack.c.l.b16 %v1115
        %v1404 = vunpack.c.l.b16 %v1116
        %v1405 = vunpack.c.l.b16 %v1117
        %v1406 = vunpack.c.l.b16 %v1118
        %v1407 = vunpack.c.l.b16 %v1119
        %v1408 = vunpack.c.l.b16 %v1120
        %v1409 = vunpack.c.l.b16 %v1121
        %v1410 = vunpack.c.l.b16 %v1122
        %v1411 = vunpack.c.l.b16 %v1123
        %v1412 = vunpack.c.l.b16 %v1124
        %v1413 = vunpack.c.l.b16 %v1125
        %v1414 = vunpack.c.l.b16 %v1126
        %v1415 = vunpack.c.l.b16 %v1127
        %v1416 = vunpack.c.l.b16 %v1128
        %v1417 = vunpack.c.l.b16 %v1129
        %v1418 = vunpack.c.l.b16 %v1130
        %v1419 = vunpack.c.l.b16 %v1131
        %v1420 = vunpack.c.l.b16 %v1132
        %v1421 = vunpack.c.l.b16 %v1133
        %v1422 = vunpack.c.l.b16 %v1134
        %v1423 = vunpack.c.l.b16 %v1135
        %v1424 = vunpack.c.l.b16 %v1136
        %v1425 = vunpack.c.l.b16 %v1137
        %v1426 = vunpack.c.l.b16 %v1138
        %v1427 = vunpack.c.l.b16 %v1139
        %v1428 = vunpack.c.l.b16 %v1140
        %v1429 = vunpack.c.l.b16 %v1141
        %v1430 = vunpack.c.l.b16 %v1142
        %v1431 = vunpack.c.l.b16 %v1143
        %v1432 = vunpack.c.l.b16 %v1144
        %v1433 = vunpack.c.l.b16 %v1145
        %v1434 = vunpack.c.l.b16 %v1146
        %v1435 = vunpack.c.l.b16 %v1147
        %v1436 = vunpack.c.l.b16 %v1148
        %v1437 = vunpack.c.l.b16 %v1149
        %v1438 = vunpack.c.l.b16 %v1150
        %v1439 = vunpack.c.l.b16 %v1151
        %v1440 = vunpack.c.l.b16 %v1152
        %v1441 = vunpack.c.l.b16 %v1153
        %v1442 = vunpack.c.l.b16 %v1154
        %v1443 = vunpack.c.l.b16 %v1155
        %v1444 = vunpack.c.l.b16 %v1156
        %v1445 = vunpack.c.l.b16 %v1157
        %v1446 = vunpack.c.l.b16 %v1158
        %v1447 = vunpack.c.l.b16 %v1159
        %v1448 = vunpack.c.l.b16 %v1160
        %v1449 = vunpack.c.l.b16 %v1161
        %v1450 = vunpack.c.l.b16 %v1162
        %v1451 = vunpack.c.l.b16 %v1163
        %v1452 = vunpack.c.l.b16 %v1164
        %v1453 = vunpack.c.l.b16 %v1165
        %v1454 = vpack.c.b16 %v1311, %v1310
        %v1455 = vpack.c.b16 %v1313, %v1312
        %v1456 = vpack.c.b16 %v1315, %v1314
        %v1457 = vpack.c.b16 %v1317, %v1316
        %v1458 = vpack.c.b16 %v1319, %v1318
        %v1459 = vpack.c.b16 %v1321, %v1320
        %v1460 = vpack.c.b16 %v1323, %v1322
        %v1461 = vpack.c.b16 %v1325, %v1324
        %v1462 = vpack.c.b16 %v1327, %v1326
        %v1463 = vpack.c.b16 %v1329, %v1328
        %v1464 = vpack.c.b16 %v1331, %v1330
        %v1465 = vpack.c.b16 %v1333, %v1332
        %v1466 = vpack.c.b16 %v1335, %v1334
        %v1467 = vpack.c.b16 %v1337, %v1336
        %v1468 = vpack.c.b16 %v1339, %v1338
        %v1469 = vpack.c.b16 %v1341, %v1340
        %v1470 = vpack.c.b16 %v1343, %v1342
        %v1471 = vpack.c.b16 %v1345, %v1344
        %v1472 = vpack.c.b16 %v1347, %v1346
        %v1473 = vpack.c.b16 %v1349, %v1348
        %v1474 = vpack.c.b16 %v1351, %v1350
        %v1475 = vpack.c.b16 %v1353, %v1352
        %v1476 = vpack.c.b16 %v1355, %v1354
        %v1477 = vpack.c.b16 %v1357, %v1356
        %v1478 = vpack.c.b16 %v1359, %v1358
        %v1479 = vpack.c.b16 %v1361, %v1360
        %v1480 = vpack.c.b16 %v1363, %v1362
        %v1481 = vpack.c.b16 %v1365, %v1364
        %v1482 = vpack.c.b16 %v1367, %v1366
        %v1483 = vpack.c.b16 %v1369, %v1368
        %v1484 = vpack.c.b16 %v1371, %v1370
        %v1485 = vpack.c.b16 %v1373, %v1372
        %v1486 = vpack.c.b16 %v1375, %v1374
        %v1487 = vpack.c.b16 %v1377, %v1376
        %v1488 = vpack.c.b16 %v1379, %v1378
        %v1489 = vpack.c.b16 %v1381, %v1380
        %v1490 = vpack.c.b16 %v1383, %v1382
        %v1491 = vpack.c.b16 %v1385, %v1384
        %v1492 = vpack.c.b16 %v1387, %v1386
        %v1493 = vpack.c.b16 %v1389, %v1388
        %v1494 = vpack.c.b16 %v1391, %v1390
        %v1495 = vpack.c.b16 %v1393, %v1392
        %v1496 = vpack.c.b16 %v1395, %v1394
        %v1497 = vpack.c.b16 %v1397, %v1396
        %v1498 = vpack.c.b16 %v1399, %v1398
        %v1499 = vpack.c.b16 %v1401, %v1400
        %v1500 = vpack.c.b16 %v1403, %v1402
        %v1501 = vpack.c.b16 %v1405, %v1404
        %v1502 = vpack.c.b16 %v1407, %v1406
        %v1503 = vpack.c.b16 %v1409, %v1408
        %v1504 = vpack.c.b16 %v1411, %v1410
        %v1505 = vpack.c.b16 %v1413, %v1412
        %v1506 = vpack.c.b16 %v1415, %v1414
        %v1507 = vpack.c.b16 %v1417, %v1416
        %v1508 = vpack.c.b16 %v1419, %v1418
        %v1509 = vpack.c.b16 %v1421, %v1420
        %v1510 = vpack.c.b16 %v1423, %v1422
        %v1511 = vpack.c.b16 %v1425, %v1424
        %v1512 = vpack.c.b16 %v1427, %v1426
        %v1513 = vpack.c.b16 %v1429, %v1428
        %v1514 = vpack.c.b16 %v1431, %v1430
        %v1515 = vpack.c.b16 %v1433, %v1432
        %v1516 = vpack.c.b16 %v1435, %v1434
        %v1517 = vpack.c.b16 %v1437, %v1436
        %v1518 = vpack.c.b16 %v1439, %v1438
        %v1519 = vpack.c.b16 %v1441, %v1440
        %v1520 = vpack.c.b16 %v1443, %v1442
        %v1521 = vpack.c.b16 %v1445, %v1444
        %v1522 = vpack.c.b16 %v1447, %v1446
        %v1523 = vpack.c.b16 %v1449, %v1448
        %v1524 = vpack.c.b16 %v1451, %v1450
        %v1525 = vpack.c.b16 %v1453, %v1452
        %1598 = vmatpush.bf16.msra.mxu0 %v1461
        %1599 = vmatpush.bf16.msra.mxu0 %v1460
        %1600 = vmatpush.bf16.msra.mxu0 %v1459
        %1601 = vmatpush.bf16.msra.mxu0 %v1458
        %1602 = vmatpush.bf16.msra.mxu0 %v1457
        %1603 = vmatpush.bf16.msra.mxu0 %v1456
        %1604 = vmatpush.bf16.msra.mxu0 %v1455
        %1605 = vmatpush.bf16.msra.mxu0 %v1454
        %1606 = vmatmul.bf16.gmra.mxu0 %v663
        %v1607 = vpop.f32.mrf.mxu0
        %v1608 = vadd.f32 0.0, %v1607
        %v1609 = vpop.f32.mrf.mxu0
        %v1610 = vadd.f32 0.0, %v1609
        %1611 = vmatmul.bf16.gmra.mxu0 %v664
        %v1612 = vpop.f32.mrf.mxu0
        %v1613 = vadd.f32 0.0, %v1612
        %v1614 = vpop.f32.mrf.mxu0
        %v1615 = vadd.f32 0.0, %v1614
        %1616 = vmatmul.bf16.gmra.mxu0 %v665
        %v1617 = vpop.f32.mrf.mxu0
        %v1618 = vadd.f32 0.0, %v1617
        %v1619 = vpop.f32.mrf.mxu0
        %v1620 = vadd.f32 0.0, %v1619
        %1621 = vmatmul.bf16.gmra.mxu0 %v666
        %v1622 = vpop.f32.mrf.mxu0
        %v1623 = vadd.f32 0.0, %v1622
        %v1624 = vpop.f32.mrf.mxu0
        %v1625 = vadd.f32 0.0, %v1624
        %1626 = vmatmul.bf16.gmra.mxu0 %v667
        %v1627 = vpop.f32.mrf.mxu0
        %v1628 = vadd.f32 0.0, %v1627
        %v1629 = vpop.f32.mrf.mxu0
        %v1630 = vadd.f32 0.0, %v1629
        %1631 = vmatmul.bf16.gmra.mxu0 %v668
        %v1632 = vpop.f32.mrf.mxu0
        %v1633 = vadd.f32 0.0, %v1632
        %v1634 = vpop.f32.mrf.mxu0
        %v1635 = vadd.f32 0.0, %v1634
        %1636 = vmatmul.bf16.gmra.mxu0 %v669
        %v1637 = vpop.f32.mrf.mxu0
        %v1638 = vadd.f32 0.0, %v1637
        %v1639 = vpop.f32.mrf.mxu0
        %v1640 = vadd.f32 0.0, %v1639
        %1641 = vmatmul.bf16.gmra.mxu0 %v670
        %v1642 = vpop.f32.mrf.mxu0
        %v1643 = vadd.f32 0.0, %v1642
        %v1644 = vpop.f32.mrf.mxu0
        %v1645 = vadd.f32 0.0, %v1644
        %1646 = vmatmul.bf16.gmra.mxu0 %v671
        %v1647 = vpop.f32.mrf.mxu0
        %v1648 = vadd.f32 0.0, %v1647
        %v1649 = vpop.f32.mrf.mxu0
        %v1650 = vadd.f32 0.0, %v1649
        %1651 = vmatmul.bf16.gmra.mxu0 %v672
        %v1652 = vpop.f32.mrf.mxu0
        %v1653 = vadd.f32 0.0, %v1652
        %v1654 = vpop.f32.mrf.mxu0
        %v1655 = vadd.f32 0.0, %v1654
        %1656 = vmatmul.bf16.gmra.mxu0 %v673
        %v1657 = vpop.f32.mrf.mxu0
        %v1658 = vadd.f32 0.0, %v1657
        %v1659 = vpop.f32.mrf.mxu0
        %v1660 = vadd.f32 0.0, %v1659
        %1661 = vmatmul.bf16.gmra.mxu0 %v674
        %v1662 = vpop.f32.mrf.mxu0
        %v1663 = vadd.f32 0.0, %v1662
        %v1664 = vpop.f32.mrf.mxu0
        %v1665 = vadd.f32 0.0, %v1664
        %1666 = vmatmul.bf16.gmra.mxu0 %v675
        %v1667 = vpop.f32.mrf.mxu0
        %v1668 = vadd.f32 0.0, %v1667
        %v1669 = vpop.f32.mrf.mxu0
        %v1670 = vadd.f32 0.0, %v1669
        %1671 = vmatmul.bf16.gmra.mxu0 %v676
        %v1672 = vpop.f32.mrf.mxu0
        %v1673 = vadd.f32 0.0, %v1672
        %v1674 = vpop.f32.mrf.mxu0
        %v1675 = vadd.f32 0.0, %v1674
        %1676 = vmatmul.bf16.gmra.mxu0 %v677
        %v1677 = vpop.f32.mrf.mxu0
        %v1678 = vadd.f32 0.0, %v1677
        %v1679 = vpop.f32.mrf.mxu0
        %v1680 = vadd.f32 0.0, %v1679
        %1681 = vmatmul.bf16.gmra.mxu0 %v678
        %v1682 = vpop.f32.mrf.mxu0
        %v1683 = vadd.f32 0.0, %v1682
        %v1684 = vpop.f32.mrf.mxu0
        %v1685 = vadd.f32 0.0, %v1684
        %1686 = vdwg.mxu0
        %1687 = vmatpush.bf16.msra.mxu0 %v1469
        %1688 = vmatpush.bf16.msra.mxu0 %v1468
        %1689 = vmatpush.bf16.msra.mxu0 %v1467
        %1690 = vmatpush.bf16.msra.mxu0 %v1466
        %1691 = vmatpush.bf16.msra.mxu0 %v1465
        %1692 = vmatpush.bf16.msra.mxu0 %v1464
        %1693 = vmatpush.bf16.msra.mxu0 %v1463
        %1694 = vmatpush.bf16.msra.mxu0 %v1462
        %1695 = vmatmul.bf16.gmra.mxu0 %v709
        %v1696 = vpop.f32.mrf.mxu0
        %v1697 = vadd.f32 %v1608, %v1696
        %v1698 = vpop.f32.mrf.mxu0
        %v1699 = vadd.f32 %v1610, %v1698
        %1700 = vmatmul.bf16.gmra.mxu0 %v721
        %v1701 = vpop.f32.mrf.mxu0
        %v1702 = vadd.f32 %v1613, %v1701
        %v1703 = vpop.f32.mrf.mxu0
        %v1704 = vadd.f32 %v1615, %v1703
        %1705 = vmatmul.bf16.gmra.mxu0 %v733
        %v1706 = vpop.f32.mrf.mxu0
        %v1707 = vadd.f32 %v1618, %v1706
        %v1708 = vpop.f32.mrf.mxu0
        %v1709 = vadd.f32 %v1620, %v1708
        %1710 = vmatmul.bf16.gmra.mxu0 %v745
        %v1711 = vpop.f32.mrf.mxu0
        %v1712 = vadd.f32 %v1623, %v1711
        %v1713 = vpop.f32.mrf.mxu0
        %v1714 = vadd.f32 %v1625, %v1713
        %1715 = vmatmul.bf16.gmra.mxu0 %v757
        %v1716 = vpop.f32.mrf.mxu0
        %v1717 = vadd.f32 %v1628, %v1716
        %v1718 = vpop.f32.mrf.mxu0
        %v1719 = vadd.f32 %v1630, %v1718
        %1720 = vmatmul.bf16.gmra.mxu0 %v769
        %v1721 = vpop.f32.mrf.mxu0
        %v1722 = vadd.f32 %v1633, %v1721
        %v1723 = vpop.f32.mrf.mxu0
        %v1724 = vadd.f32 %v1635, %v1723
        %1725 = vmatmul.bf16.gmra.mxu0 %v781
        %v1726 = vpop.f32.mrf.mxu0
        %v1727 = vadd.f32 %v1638, %v1726
        %v1728 = vpop.f32.mrf.mxu0
        %v1729 = vadd.f32 %v1640, %v1728
        %1730 = vmatmul.bf16.gmra.mxu0 %v793
        %v1731 = vpop.f32.mrf.mxu0
        %v1732 = vadd.f32 %v1643, %v1731
        %v1733 = vpop.f32.mrf.mxu0
        %v1734 = vadd.f32 %v1645, %v1733
        %1735 = vmatmul.bf16.gmra.mxu0 %v805
        %v1736 = vpop.f32.mrf.mxu0
        %v1737 = vadd.f32 %v1648, %v1736
        %v1738 = vpop.f32.mrf.mxu0
        %v1739 = vadd.f32 %v1650, %v1738
        %1740 = vmatmul.bf16.gmra.mxu0 %v817
        %v1741 = vpop.f32.mrf.mxu0
        %v1742 = vadd.f32 %v1653, %v1741
        %v1743 = vpop.f32.mrf.mxu0
        %v1744 = vadd.f32 %v1655, %v1743
        %1745 = vmatmul.bf16.gmra.mxu0 %v829
        %v1746 = vpop.f32.mrf.mxu0
        %v1747 = vadd.f32 %v1658, %v1746
        %v1748 = vpop.f32.mrf.mxu0
        %v1749 = vadd.f32 %v1660, %v1748
        %1750 = vmatmul.bf16.gmra.mxu0 %v841
        %v1751 = vpop.f32.mrf.mxu0
        %v1752 = vadd.f32 %v1663, %v1751
        %v1753 = vpop.f32.mrf.mxu0
        %v1754 = vadd.f32 %v1665, %v1753
        %1755 = vmatmul.bf16.gmra.mxu0 %v853
        %v1756 = vpop.f32.mrf.mxu0
        %v1757 = vadd.f32 %v1668, %v1756
        %v1758 = vpop.f32.mrf.mxu0
        %v1759 = vadd.f32 %v1670, %v1758
        %1760 = vmatmul.bf16.gmra.mxu0 %v865
        %v1761 = vpop.f32.mrf.mxu0
        %v1762 = vadd.f32 %v1673, %v1761
        %v1763 = vpop.f32.mrf.mxu0
        %v1764 = vadd.f32 %v1675, %v1763
        %1765 = vmatmul.bf16.gmra.mxu0 %v877
        %v1766 = vpop.f32.mrf.mxu0
        %v1767 = vadd.f32 %v1678, %v1766
        %v1768 = vpop.f32.mrf.mxu0
        %v1769 = vadd.f32 %v1680, %v1768
        %1770 = vmatmul.bf16.gmra.mxu0 %v889
        %v1771 = vpop.f32.mrf.mxu0
        %v1772 = vadd.f32 %v1683, %v1771
        %v1773 = vpop.f32.mrf.mxu0
        %v1774 = vadd.f32 %v1685, %v1773
        %1775 = vdwg.mxu0
        %1776 = vmatpush.bf16.msra.mxu0 %v1477
        %1777 = vmatpush.bf16.msra.mxu0 %v1476
        %1778 = vmatpush.bf16.msra.mxu0 %v1475
        %1779 = vmatpush.bf16.msra.mxu0 %v1474
        %1780 = vmatpush.bf16.msra.mxu0 %v1473
        %1781 = vmatpush.bf16.msra.mxu0 %v1472
        %1782 = vmatpush.bf16.msra.mxu0 %v1471
        %1783 = vmatpush.bf16.msra.mxu0 %v1470
        %1784 = vmatmul.bf16.gmra.mxu0 %v941
        %v1785 = vpop.f32.mrf.mxu0
        %v1786 = vadd.f32 %v1697, %v1785
        %v1787 = vpop.f32.mrf.mxu0
        %v1788 = vadd.f32 %v1699, %v1787
        %1789 = vmatmul.bf16.gmra.mxu0 %v944
        %v1790 = vpop.f32.mrf.mxu0
        %v1791 = vadd.f32 %v1702, %v1790
        %v1792 = vpop.f32.mrf.mxu0
        %v1793 = vadd.f32 %v1704, %v1792
        %1794 = vmatmul.bf16.gmra.mxu0 %v947
        %v1795 = vpop.f32.mrf.mxu0
        %v1796 = vadd.f32 %v1707, %v1795
        %v1797 = vpop.f32.mrf.mxu0
        %v1798 = vadd.f32 %v1709, %v1797
        %1799 = vmatmul.bf16.gmra.mxu0 %v950
        %v1800 = vpop.f32.mrf.mxu0
        %v1801 = vadd.f32 %v1712, %v1800
        %v1802 = vpop.f32.mrf.mxu0
        %v1803 = vadd.f32 %v1714, %v1802
        %1804 = vmatmul.bf16.gmra.mxu0 %v953
        %v1805 = vpop.f32.mrf.mxu0
        %v1806 = vadd.f32 %v1717, %v1805
        %v1807 = vpop.f32.mrf.mxu0
        %v1808 = vadd.f32 %v1719, %v1807
        %1809 = vmatmul.bf16.gmra.mxu0 %v956
        %v1810 = vpop.f32.mrf.mxu0
        %v1811 = vadd.f32 %v1722, %v1810
        %v1812 = vpop.f32.mrf.mxu0
        %v1813 = vadd.f32 %v1724, %v1812
        %1814 = vmatmul.bf16.gmra.mxu0 %v959
        %v1815 = vpop.f32.mrf.mxu0
        %v1816 = vadd.f32 %v1727, %v1815
        %v1817 = vpop.f32.mrf.mxu0
        %v1818 = vadd.f32 %v1729, %v1817
        %1819 = vmatmul.bf16.gmra.mxu0 %v962
        %v1820 = vpop.f32.mrf.mxu0
        %v1821 = vadd.f32 %v1732, %v1820
        %v1822 = vpop.f32.mrf.mxu0
        %v1823 = vadd.f32 %v1734, %v1822
        %1824 = vmatmul.bf16.gmra.mxu0 %v965
        %v1825 = vpop.f32.mrf.mxu0
        %v1826 = vadd.f32 %v1737, %v1825
        %v1827 = vpop.f32.mrf.mxu0
        %v1828 = vadd.f32 %v1739, %v1827
        %1829 = vmatmul.bf16.gmra.mxu0 %v968
        %v1830 = vpop.f32.mrf.mxu0
        %v1831 = vadd.f32 %v1742, %v1830
        %v1832 = vpop.f32.mrf.mxu0
        %v1833 = vadd.f32 %v1744, %v1832
        %1834 = vmatmul.bf16.gmra.mxu0 %v971
        %v1835 = vpop.f32.mrf.mxu0
        %v1836 = vadd.f32 %v1747, %v1835
        %v1837 = vpop.f32.mrf.mxu0
        %v1838 = vadd.f32 %v1749, %v1837
        %1839 = vmatmul.bf16.gmra.mxu0 %v974
        %v1840 = vpop.f32.mrf.mxu0
        %v1841 = vadd.f32 %v1752, %v1840
        %v1842 = vpop.f32.mrf.mxu0
        %v1843 = vadd.f32 %v1754, %v1842
        %1844 = vmatmul.bf16.gmra.mxu0 %v977
        %v1845 = vpop.f32.mrf.mxu0
        %v1846 = vadd.f32 %v1757, %v1845
        %v1847 = vpop.f32.mrf.mxu0
        %v1848 = vadd.f32 %v1759, %v1847
        %1849 = vmatmul.bf16.gmra.mxu0 %v980
        %v1850 = vpop.f32.mrf.mxu0
        %v1851 = vadd.f32 %v1762, %v1850
        %v1852 = vpop.f32.mrf.mxu0
        %v1853 = vadd.f32 %v1764, %v1852
        %1854 = vmatmul.bf16.gmra.mxu0 %v983
        %v1855 = vpop.f32.mrf.mxu0
        %v1856 = vadd.f32 %v1767, %v1855
        %v1857 = vpop.f32.mrf.mxu0
        %v1858 = vadd.f32 %v1769, %v1857
        %1859 = vmatmul.bf16.gmra.mxu0 %v986
        %v1860 = vpop.f32.mrf.mxu0
        %v1861 = vadd.f32 %v1772, %v1860
        %v1862 = vpop.f32.mrf.mxu0
        %v1863 = vadd.f32 %v1774, %v1862
        %1864 = vdwg.mxu0
        %1865 = vmatpush.bf16.msra.mxu0 %v1485
        %1866 = vmatpush.bf16.msra.mxu0 %v1484
        %1867 = vmatpush.bf16.msra.mxu0 %v1483
        %1868 = vmatpush.bf16.msra.mxu0 %v1482
        %1869 = vmatpush.bf16.msra.mxu0 %v1481
        %1870 = vmatpush.bf16.msra.mxu0 %v1480
        %1871 = vmatpush.bf16.msra.mxu0 %v1479
        %1872 = vmatpush.bf16.msra.mxu0 %v1478
        %1873 = vmatmul.bf16.gmra.mxu0 %v664
        %v1874 = vpop.f32.mrf.mxu0
        %v1875 = vadd.f32 %v1786, %v1874
        %v1876 = vpop.f32.mrf.mxu0
        %v1877 = vadd.f32 %v1788, %v1876
        %1878 = vmatmul.bf16.gmra.mxu0 %v665
        %v1879 = vpop.f32.mrf.mxu0
        %v1880 = vadd.f32 %v1791, %v1879
        %v1881 = vpop.f32.mrf.mxu0
        %v1882 = vadd.f32 %v1793, %v1881
        %1883 = vmatmul.bf16.gmra.mxu0 %v666
        %v1884 = vpop.f32.mrf.mxu0
        %v1885 = vadd.f32 %v1796, %v1884
        %v1886 = vpop.f32.mrf.mxu0
        %v1887 = vadd.f32 %v1798, %v1886
        %1888 = vmatmul.bf16.gmra.mxu0 %v667
        %v1889 = vpop.f32.mrf.mxu0
        %v1890 = vadd.f32 %v1801, %v1889
        %v1891 = vpop.f32.mrf.mxu0
        %v1892 = vadd.f32 %v1803, %v1891
        %1893 = vmatmul.bf16.gmra.mxu0 %v668
        %v1894 = vpop.f32.mrf.mxu0
        %v1895 = vadd.f32 %v1806, %v1894
        %v1896 = vpop.f32.mrf.mxu0
        %v1897 = vadd.f32 %v1808, %v1896
        %1898 = vmatmul.bf16.gmra.mxu0 %v669
        %v1899 = vpop.f32.mrf.mxu0
        %v1900 = vadd.f32 %v1811, %v1899
        %v1901 = vpop.f32.mrf.mxu0
        %v1902 = vadd.f32 %v1813, %v1901
        %1903 = vmatmul.bf16.gmra.mxu0 %v670
        %v1904 = vpop.f32.mrf.mxu0
        %v1905 = vadd.f32 %v1816, %v1904
        %v1906 = vpop.f32.mrf.mxu0
        %v1907 = vadd.f32 %v1818, %v1906
        %1908 = vmatmul.bf16.gmra.mxu0 %v671
        %v1909 = vpop.f32.mrf.mxu0
        %v1910 = vadd.f32 %v1821, %v1909
        %v1911 = vpop.f32.mrf.mxu0
        %v1912 = vadd.f32 %v1823, %v1911
        %1913 = vmatmul.bf16.gmra.mxu0 %v672
        %v1914 = vpop.f32.mrf.mxu0
        %v1915 = vadd.f32 %v1826, %v1914
        %v1916 = vpop.f32.mrf.mxu0
        %v1917 = vadd.f32 %v1828, %v1916
        %1918 = vmatmul.bf16.gmra.mxu0 %v673
        %v1919 = vpop.f32.mrf.mxu0
        %v1920 = vadd.f32 %v1831, %v1919
        %v1921 = vpop.f32.mrf.mxu0
        %v1922 = vadd.f32 %v1833, %v1921
        %1923 = vmatmul.bf16.gmra.mxu0 %v674
        %v1924 = vpop.f32.mrf.mxu0
        %v1925 = vadd.f32 %v1836, %v1924
        %v1926 = vpop.f32.mrf.mxu0
        %v1927 = vadd.f32 %v1838, %v1926
        %1928 = vmatmul.bf16.gmra.mxu0 %v675
        %v1929 = vpop.f32.mrf.mxu0
        %v1930 = vadd.f32 %v1841, %v1929
        %v1931 = vpop.f32.mrf.mxu0
        %v1932 = vadd.f32 %v1843, %v1931
        %1933 = vmatmul.bf16.gmra.mxu0 %v676
        %v1934 = vpop.f32.mrf.mxu0
        %v1935 = vadd.f32 %v1846, %v1934
        %v1936 = vpop.f32.mrf.mxu0
        %v1937 = vadd.f32 %v1848, %v1936
        %1938 = vmatmul.bf16.gmra.mxu0 %v677
        %v1939 = vpop.f32.mrf.mxu0
        %v1940 = vadd.f32 %v1851, %v1939
        %v1941 = vpop.f32.mrf.mxu0
        %v1942 = vadd.f32 %v1853, %v1941
        %1943 = vmatmul.bf16.gmra.mxu0 %v678
        %v1944 = vpop.f32.mrf.mxu0
        %v1945 = vadd.f32 %v1856, %v1944
        %v1946 = vpop.f32.mrf.mxu0
        %v1947 = vadd.f32 %v1858, %v1946
        %1948 = vmatmul.bf16.gmra.mxu0 %v679
        %v1949 = vpop.f32.mrf.mxu0
        %v1950 = vadd.f32 %v1861, %v1949
        %v1951 = vpop.f32.mrf.mxu0
        %v1952 = vadd.f32 %v1863, %v1951
        %1953 = vdwg.mxu0
        %1954 = vmatpush.bf16.msra.mxu0 %v1493
        %1955 = vmatpush.bf16.msra.mxu0 %v1492
        %1956 = vmatpush.bf16.msra.mxu0 %v1491
        %1957 = vmatpush.bf16.msra.mxu0 %v1490
        %1958 = vmatpush.bf16.msra.mxu0 %v1489
        %1959 = vmatpush.bf16.msra.mxu0 %v1488
        %1960 = vmatpush.bf16.msra.mxu0 %v1487
        %1961 = vmatpush.bf16.msra.mxu0 %v1486
        %1962 = vmatmul.bf16.gmra.mxu0 %v721
        %v1963 = vpop.f32.mrf.mxu0
        %v1964 = vadd.f32 %v1875, %v1963
        %v1965 = vpop.f32.mrf.mxu0
        %v1966 = vadd.f32 %v1877, %v1965
        %1967 = vmatmul.bf16.gmra.mxu0 %v733
        %v1968 = vpop.f32.mrf.mxu0
        %v1969 = vadd.f32 %v1880, %v1968
        %v1970 = vpop.f32.mrf.mxu0
        %v1971 = vadd.f32 %v1882, %v1970
        %1972 = vmatmul.bf16.gmra.mxu0 %v745
        %v1973 = vpop.f32.mrf.mxu0
        %v1974 = vadd.f32 %v1885, %v1973
        %v1975 = vpop.f32.mrf.mxu0
        %v1976 = vadd.f32 %v1887, %v1975
        %1977 = vmatmul.bf16.gmra.mxu0 %v757
        %v1978 = vpop.f32.mrf.mxu0
        %v1979 = vadd.f32 %v1890, %v1978
        %v1980 = vpop.f32.mrf.mxu0
        %v1981 = vadd.f32 %v1892, %v1980
        %1982 = vmatmul.bf16.gmra.mxu0 %v769
        %v1983 = vpop.f32.mrf.mxu0
        %v1984 = vadd.f32 %v1895, %v1983
        %v1985 = vpop.f32.mrf.mxu0
        %v1986 = vadd.f32 %v1897, %v1985
        %1987 = vmatmul.bf16.gmra.mxu0 %v781
        %v1988 = vpop.f32.mrf.mxu0
        %v1989 = vadd.f32 %v1900, %v1988
        %v1990 = vpop.f32.mrf.mxu0
        %v1991 = vadd.f32 %v1902, %v1990
        %1992 = vmatmul.bf16.gmra.mxu0 %v793
        %v1993 = vpop.f32.mrf.mxu0
        %v1994 = vadd.f32 %v1905, %v1993
        %v1995 = vpop.f32.mrf.mxu0
        %v1996 = vadd.f32 %v1907, %v1995
        %1997 = vmatmul.bf16.gmra.mxu0 %v805
        %v1998 = vpop.f32.mrf.mxu0
        %v1999 = vadd.f32 %v1910, %v1998
        %v2000 = vpop.f32.mrf.mxu0
        %v2001 = vadd.f32 %v1912, %v2000
        %2002 = vmatmul.bf16.gmra.mxu0 %v817
        %v2003 = vpop.f32.mrf.mxu0
        %v2004 = vadd.f32 %v1915, %v2003
        %v2005 = vpop.f32.mrf.mxu0
        %v2006 = vadd.f32 %v1917, %v2005
        %2007 = vmatmul.bf16.gmra.mxu0 %v829
        %v2008 = vpop.f32.mrf.mxu0
        %v2009 = vadd.f32 %v1920, %v2008
        %v2010 = vpop.f32.mrf.mxu0
        %v2011 = vadd.f32 %v1922, %v2010
        %2012 = vmatmul.bf16.gmra.mxu0 %v841
        %v2013 = vpop.f32.mrf.mxu0
        %v2014 = vadd.f32 %v1925, %v2013
        %v2015 = vpop.f32.mrf.mxu0
        %v2016 = vadd.f32 %v1927, %v2015
        %2017 = vmatmul.bf16.gmra.mxu0 %v853
        %v2018 = vpop.f32.mrf.mxu0
        %v2019 = vadd.f32 %v1930, %v2018
        %v2020 = vpop.f32.mrf.mxu0
        %v2021 = vadd.f32 %v1932, %v2020
        %2022 = vmatmul.bf16.gmra.mxu0 %v865
        %v2023 = vpop.f32.mrf.mxu0
        %v2024 = vadd.f32 %v1935, %v2023
        %v2025 = vpop.f32.mrf.mxu0
        %v2026 = vadd.f32 %v1937, %v2025
        %2027 = vmatmul.bf16.gmra.mxu0 %v877
        %v2028 = vpop.f32.mrf.mxu0
        %v2029 = vadd.f32 %v1940, %v2028
        %v2030 = vpop.f32.mrf.mxu0
        %v2031 = vadd.f32 %v1942, %v2030
        %2032 = vmatmul.bf16.gmra.mxu0 %v889
        %v2033 = vpop.f32.mrf.mxu0
        %v2034 = vadd.f32 %v1945, %v2033
        %v2035 = vpop.f32.mrf.mxu0
        %v2036 = vadd.f32 %v1947, %v2035
        %2037 = vmatmul.bf16.gmra.mxu0 %v1014
        %v2038 = vpop.f32.mrf.mxu0
        %v2039 = vadd.f32 %v1950, %v2038
        %v2040 = vpop.f32.mrf.mxu0
        %v2041 = vadd.f32 %v1952, %v2040
        %2042 = vdwg.mxu0
        %2043 = vmatpush.bf16.msra.mxu0 %v1501
        %2044 = vmatpush.bf16.msra.mxu0 %v1500
        %2045 = vmatpush.bf16.msra.mxu0 %v1499
        %2046 = vmatpush.bf16.msra.mxu0 %v1498
        %2047 = vmatpush.bf16.msra.mxu0 %v1497
        %2048 = vmatpush.bf16.msra.mxu0 %v1496
        %2049 = vmatpush.bf16.msra.mxu0 %v1495
        %2050 = vmatpush.bf16.msra.mxu0 %v1494
        %2051 = vmatmul.bf16.gmra.mxu0 %v944
        %v2052 = vpop.f32.mrf.mxu0
        %v2053 = vadd.f32 %v1964, %v2052
        %v2054 = vpop.f32.mrf.mxu0
        %v2055 = vadd.f32 %v1966, %v2054
        %2056 = vmatmul.bf16.gmra.mxu0 %v947
        %v2057 = vpop.f32.mrf.mxu0
        %v2058 = vadd.f32 %v1969, %v2057
        %v2059 = vpop.f32.mrf.mxu0
        %v2060 = vadd.f32 %v1971, %v2059
        %2061 = vmatmul.bf16.gmra.mxu0 %v950
        %v2062 = vpop.f32.mrf.mxu0
        %v2063 = vadd.f32 %v1974, %v2062
        %v2064 = vpop.f32.mrf.mxu0
        %v2065 = vadd.f32 %v1976, %v2064
        %2066 = vmatmul.bf16.gmra.mxu0 %v953
        %v2067 = vpop.f32.mrf.mxu0
        %v2068 = vadd.f32 %v1979, %v2067
        %v2069 = vpop.f32.mrf.mxu0
        %v2070 = vadd.f32 %v1981, %v2069
        %2071 = vmatmul.bf16.gmra.mxu0 %v956
        %v2072 = vpop.f32.mrf.mxu0
        %v2073 = vadd.f32 %v1984, %v2072
        %v2074 = vpop.f32.mrf.mxu0
        %v2075 = vadd.f32 %v1986, %v2074
        %2076 = vmatmul.bf16.gmra.mxu0 %v959
        %v2077 = vpop.f32.mrf.mxu0
        %v2078 = vadd.f32 %v1989, %v2077
        %v2079 = vpop.f32.mrf.mxu0
        %v2080 = vadd.f32 %v1991, %v2079
        %2081 = vmatmul.bf16.gmra.mxu0 %v962
        %v2082 = vpop.f32.mrf.mxu0
        %v2083 = vadd.f32 %v1994, %v2082
        %v2084 = vpop.f32.mrf.mxu0
        %v2085 = vadd.f32 %v1996, %v2084
        %2086 = vmatmul.bf16.gmra.mxu0 %v965
        %v2087 = vpop.f32.mrf.mxu0
        %v2088 = vadd.f32 %v1999, %v2087
        %v2089 = vpop.f32.mrf.mxu0
        %v2090 = vadd.f32 %v2001, %v2089
        %2091 = vmatmul.bf16.gmra.mxu0 %v968
        %v2092 = vpop.f32.mrf.mxu0
        %v2093 = vadd.f32 %v2004, %v2092
        %v2094 = vpop.f32.mrf.mxu0
        %v2095 = vadd.f32 %v2006, %v2094
        %2096 = vmatmul.bf16.gmra.mxu0 %v971
        %v2097 = vpop.f32.mrf.mxu0
        %v2098 = vadd.f32 %v2009, %v2097
        %v2099 = vpop.f32.mrf.mxu0
        %v2100 = vadd.f32 %v2011, %v2099
        %2101 = vmatmul.bf16.gmra.mxu0 %v974
        %v2102 = vpop.f32.mrf.mxu0
        %v2103 = vadd.f32 %v2014, %v2102
        %v2104 = vpop.f32.mrf.mxu0
        %v2105 = vadd.f32 %v2016, %v2104
        %2106 = vmatmul.bf16.gmra.mxu0 %v977
        %v2107 = vpop.f32.mrf.mxu0
        %v2108 = vadd.f32 %v2019, %v2107
        %v2109 = vpop.f32.mrf.mxu0
        %v2110 = vadd.f32 %v2021, %v2109
        %2111 = vmatmul.bf16.gmra.mxu0 %v980
        %v2112 = vpop.f32.mrf.mxu0
        %v2113 = vadd.f32 %v2024, %v2112
        %v2114 = vpop.f32.mrf.mxu0
        %v2115 = vadd.f32 %v2026, %v2114
        %2116 = vmatmul.bf16.gmra.mxu0 %v983
        %v2117 = vpop.f32.mrf.mxu0
        %v2118 = vadd.f32 %v2029, %v2117
        %v2119 = vpop.f32.mrf.mxu0
        %v2120 = vadd.f32 %v2031, %v2119
        %2121 = vmatmul.bf16.gmra.mxu0 %v986
        %v2122 = vpop.f32.mrf.mxu0
        %v2123 = vadd.f32 %v2034, %v2122
        %v2124 = vpop.f32.mrf.mxu0
        %v2125 = vadd.f32 %v2036, %v2124
        %2126 = vmatmul.bf16.gmra.mxu0 %v1020
        %v2127 = vpop.f32.mrf.mxu0
        %v2128 = vadd.f32 %v2039, %v2127
        %v2129 = vpop.f32.mrf.mxu0
        %v2130 = vadd.f32 %v2041, %v2129
        %2131 = vdwg.mxu0
        %2132 = vmatpush.bf16.msra.mxu0 %v1509
        %2133 = vmatpush.bf16.msra.mxu0 %v1508
        %2134 = vmatpush.bf16.msra.mxu0 %v1507
        %2135 = vmatpush.bf16.msra.mxu0 %v1506
        %2136 = vmatpush.bf16.msra.mxu0 %v1505
        %2137 = vmatpush.bf16.msra.mxu0 %v1504
        %2138 = vmatpush.bf16.msra.mxu0 %v1503
        %2139 = vmatpush.bf16.msra.mxu0 %v1502
        %2140 = vmatmul.bf16.gmra.mxu0 %v665
        %v2141 = vpop.f32.mrf.mxu0
        %v2142 = vadd.f32 %v2053, %v2141
        %v2143 = vpop.f32.mrf.mxu0
        %v2144 = vadd.f32 %v2055, %v2143
        %2145 = vmatmul.bf16.gmra.mxu0 %v666
        %v2146 = vpop.f32.mrf.mxu0
        %v2147 = vadd.f32 %v2058, %v2146
        %v2148 = vpop.f32.mrf.mxu0
        %v2149 = vadd.f32 %v2060, %v2148
        %2150 = vmatmul.bf16.gmra.mxu0 %v667
        %v2151 = vpop.f32.mrf.mxu0
        %v2152 = vadd.f32 %v2063, %v2151
        %v2153 = vpop.f32.mrf.mxu0
        %v2154 = vadd.f32 %v2065, %v2153
        %2155 = vmatmul.bf16.gmra.mxu0 %v668
        %v2156 = vpop.f32.mrf.mxu0
        %v2157 = vadd.f32 %v2068, %v2156
        %v2158 = vpop.f32.mrf.mxu0
        %v2159 = vadd.f32 %v2070, %v2158
        %2160 = vmatmul.bf16.gmra.mxu0 %v669
        %v2161 = vpop.f32.mrf.mxu0
        %v2162 = vadd.f32 %v2073, %v2161
        %v2163 = vpop.f32.mrf.mxu0
        %v2164 = vadd.f32 %v2075, %v2163
        %2165 = vmatmul.bf16.gmra.mxu0 %v670
        %v2166 = vpop.f32.mrf.mxu0
        %v2167 = vadd.f32 %v2078, %v2166
        %v2168 = vpop.f32.mrf.mxu0
        %v2169 = vadd.f32 %v2080, %v2168
        %2170 = vmatmul.bf16.gmra.mxu0 %v671
        %v2171 = vpop.f32.mrf.mxu0
        %v2172 = vadd.f32 %v2083, %v2171
        %v2173 = vpop.f32.mrf.mxu0
        %v2174 = vadd.f32 %v2085, %v2173
        %2175 = vmatmul.bf16.gmra.mxu0 %v672
        %v2176 = vpop.f32.mrf.mxu0
        %v2177 = vadd.f32 %v2088, %v2176
        %v2178 = vpop.f32.mrf.mxu0
        %v2179 = vadd.f32 %v2090, %v2178
        %2180 = vmatmul.bf16.gmra.mxu0 %v673
        %v2181 = vpop.f32.mrf.mxu0
        %v2182 = vadd.f32 %v2093, %v2181
        %v2183 = vpop.f32.mrf.mxu0
        %v2184 = vadd.f32 %v2095, %v2183
        %2185 = vmatmul.bf16.gmra.mxu0 %v674
        %v2186 = vpop.f32.mrf.mxu0
        %v2187 = vadd.f32 %v2098, %v2186
        %v2188 = vpop.f32.mrf.mxu0
        %v2189 = vadd.f32 %v2100, %v2188
        %2190 = vmatmul.bf16.gmra.mxu0 %v675
        %v2191 = vpop.f32.mrf.mxu0
        %v2192 = vadd.f32 %v2103, %v2191
        %v2193 = vpop.f32.mrf.mxu0
        %v2194 = vadd.f32 %v2105, %v2193
        %2195 = vmatmul.bf16.gmra.mxu0 %v676
        %v2196 = vpop.f32.mrf.mxu0
        %v2197 = vadd.f32 %v2108, %v2196
        %v2198 = vpop.f32.mrf.mxu0
        %v2199 = vadd.f32 %v2110, %v2198
        %2200 = vmatmul.bf16.gmra.mxu0 %v677
        %v2201 = vpop.f32.mrf.mxu0
        %v2202 = vadd.f32 %v2113, %v2201
        %v2203 = vpop.f32.mrf.mxu0
        %v2204 = vadd.f32 %v2115, %v2203
        %2205 = vmatmul.bf16.gmra.mxu0 %v678
        %v2206 = vpop.f32.mrf.mxu0
        %v2207 = vadd.f32 %v2118, %v2206
        %v2208 = vpop.f32.mrf.mxu0
        %v2209 = vadd.f32 %v2120, %v2208
        %2210 = vmatmul.bf16.gmra.mxu0 %v679
        %v2211 = vpop.f32.mrf.mxu0
        %v2212 = vadd.f32 %v2123, %v2211
        %v2213 = vpop.f32.mrf.mxu0
        %v2214 = vadd.f32 %v2125, %v2213
        %2215 = vmatmul.bf16.gmra.mxu0 %v663
        %v2216 = vpop.f32.mrf.mxu0
        %v2217 = vadd.f32 %v2128, %v2216
        %v2218 = vpop.f32.mrf.mxu0
        %v2219 = vadd.f32 %v2130, %v2218
        %2220 = vdwg.mxu0
        %2221 = vmatpush.bf16.msra.mxu0 %v1517
        %2222 = vmatpush.bf16.msra.mxu0 %v1516
        %2223 = vmatpush.bf16.msra.mxu0 %v1515
        %2224 = vmatpush.bf16.msra.mxu0 %v1514
        %2225 = vmatpush.bf16.msra.mxu0 %v1513
        %2226 = vmatpush.bf16.msra.mxu0 %v1512
        %2227 = vmatpush.bf16.msra.mxu0 %v1511
        %2228 = vmatpush.bf16.msra.mxu0 %v1510
        %2229 = vmatmul.bf16.gmra.mxu0 %v733
        %v2230 = vpop.f32.mrf.mxu0
        %v2231 = vadd.f32 %v2142, %v2230
        %v2232 = vpop.f32.mrf.mxu0
        %v2233 = vadd.f32 %v2144, %v2232
        %2234 = vmatmul.bf16.gmra.mxu0 %v745
        %v2235 = vpop.f32.mrf.mxu0
        %v2236 = vadd.f32 %v2147, %v2235
        %v2237 = vpop.f32.mrf.mxu0
        %v2238 = vadd.f32 %v2149, %v2237
        %2239 = vmatmul.bf16.gmra.mxu0 %v757
        %v2240 = vpop.f32.mrf.mxu0
        %v2241 = vadd.f32 %v2152, %v2240
        %v2242 = vpop.f32.mrf.mxu0
        %v2243 = vadd.f32 %v2154, %v2242
        %2244 = vmatmul.bf16.gmra.mxu0 %v769
        %v2245 = vpop.f32.mrf.mxu0
        %v2246 = vadd.f32 %v2157, %v2245
        %v2247 = vpop.f32.mrf.mxu0
        %v2248 = vadd.f32 %v2159, %v2247
        %2249 = vmatmul.bf16.gmra.mxu0 %v781
        %v2250 = vpop.f32.mrf.mxu0
        %v2251 = vadd.f32 %v2162, %v2250
        %v2252 = vpop.f32.mrf.mxu0
        %v2253 = vadd.f32 %v2164, %v2252
        %2254 = vmatmul.bf16.gmra.mxu0 %v793
        %v2255 = vpop.f32.mrf.mxu0
        %v2256 = vadd.f32 %v2167, %v2255
        %v2257 = vpop.f32.mrf.mxu0
        %v2258 = vadd.f32 %v2169, %v2257
        %2259 = vmatmul.bf16.gmra.mxu0 %v805
        %v2260 = vpop.f32.mrf.mxu0
        %v2261 = vadd.f32 %v2172, %v2260
        %v2262 = vpop.f32.mrf.mxu0
        %v2263 = vadd.f32 %v2174, %v2262
        %2264 = vmatmul.bf16.gmra.mxu0 %v817
        %v2265 = vpop.f32.mrf.mxu0
        %v2266 = vadd.f32 %v2177, %v2265
        %v2267 = vpop.f32.mrf.mxu0
        %v2268 = vadd.f32 %v2179, %v2267
        %2269 = vmatmul.bf16.gmra.mxu0 %v829
        %v2270 = vpop.f32.mrf.mxu0
        %v2271 = vadd.f32 %v2182, %v2270
        %v2272 = vpop.f32.mrf.mxu0
        %v2273 = vadd.f32 %v2184, %v2272
        %2274 = vmatmul.bf16.gmra.mxu0 %v841
        %v2275 = vpop.f32.mrf.mxu0
        %v2276 = vadd.f32 %v2187, %v2275
        %v2277 = vpop.f32.mrf.mxu0
        %v2278 = vadd.f32 %v2189, %v2277
        %2279 = vmatmul.bf16.gmra.mxu0 %v853
        %v2280 = vpop.f32.mrf.mxu0
        %v2281 = vadd.f32 %v2192, %v2280
        %v2282 = vpop.f32.mrf.mxu0
        %v2283 = vadd.f32 %v2194, %v2282
        %2284 = vmatmul.bf16.gmra.mxu0 %v865
        %v2285 = vpop.f32.mrf.mxu0
        %v2286 = vadd.f32 %v2197, %v2285
        %v2287 = vpop.f32.mrf.mxu0
        %v2288 = vadd.f32 %v2199, %v2287
        %2289 = vmatmul.bf16.gmra.mxu0 %v877
        %v2290 = vpop.f32.mrf.mxu0
        %v2291 = vadd.f32 %v2202, %v2290
        %v2292 = vpop.f32.mrf.mxu0
        %v2293 = vadd.f32 %v2204, %v2292
        %2294 = vmatmul.bf16.gmra.mxu0 %v889
        %v2295 = vpop.f32.mrf.mxu0
        %v2296 = vadd.f32 %v2207, %v2295
        %v2297 = vpop.f32.mrf.mxu0
        %v2298 = vadd.f32 %v2209, %v2297
        %2299 = vmatmul.bf16.gmra.mxu0 %v1014
        %v2300 = vpop.f32.mrf.mxu0
        %v2301 = vadd.f32 %v2212, %v2300
        %v2302 = vpop.f32.mrf.mxu0
        %v2303 = vadd.f32 %v2214, %v2302
        %2304 = vmatmul.bf16.gmra.mxu0 %v709
        %v2305 = vpop.f32.mrf.mxu0
        %v2306 = vadd.f32 %v2217, %v2305
        %v2307 = vpop.f32.mrf.mxu0
        %v2308 = vadd.f32 %v2219, %v2307
        %2309 = vdwg.mxu0
        %2310 = vmatpush.bf16.msra.mxu0 %v1525
        %2311 = vmatpush.bf16.msra.mxu0 %v1524
        %2312 = vmatpush.bf16.msra.mxu0 %v1523
        %2313 = vmatpush.bf16.msra.mxu0 %v1522
        %2314 = vmatpush.bf16.msra.mxu0 %v1521
        %2315 = vmatpush.bf16.msra.mxu0 %v1520
        %2316 = vmatpush.bf16.msra.mxu0 %v1519
        %2317 = vmatpush.bf16.msra.mxu0 %v1518
        %2318 = vmatmul.bf16.gmra.mxu0 %v947
        %v2319 = vpop.f32.mrf.mxu0
        %v2320 = vadd.f32 %v2231, %v2319
        %v2321 = vpop.f32.mrf.mxu0
        %v2322 = vadd.f32 %v2233, %v2321
        %2323 = vmatmul.bf16.gmra.mxu0 %v950
        %v2324 = vpop.f32.mrf.mxu0
        %v2325 = vadd.f32 %v2236, %v2324
        %v2326 = vpop.f32.mrf.mxu0
        %v2327 = vadd.f32 %v2238, %v2326
        %2328 = vmatmul.bf16.gmra.mxu0 %v953
        %v2329 = vpop.f32.mrf.mxu0
        %v2330 = vadd.f32 %v2241, %v2329
        %v2331 = vpop.f32.mrf.mxu0
        %v2332 = vadd.f32 %v2243, %v2331
        %2333 = vmatmul.bf16.gmra.mxu0 %v956
        %v2334 = vpop.f32.mrf.mxu0
        %v2335 = vadd.f32 %v2246, %v2334
        %v2336 = vpop.f32.mrf.mxu0
        %v2337 = vadd.f32 %v2248, %v2336
        %2338 = vmatmul.bf16.gmra.mxu0 %v959
        %v2339 = vpop.f32.mrf.mxu0
        %v2340 = vadd.f32 %v2251, %v2339
        %v2341 = vpop.f32.mrf.mxu0
        %v2342 = vadd.f32 %v2253, %v2341
        %2343 = vmatmul.bf16.gmra.mxu0 %v962
        %v2344 = vpop.f32.mrf.mxu0
        %v2345 = vadd.f32 %v2256, %v2344
        %v2346 = vpop.f32.mrf.mxu0
        %v2347 = vadd.f32 %v2258, %v2346
        %2348 = vmatmul.bf16.gmra.mxu0 %v965
        %v2349 = vpop.f32.mrf.mxu0
        %v2350 = vadd.f32 %v2261, %v2349
        %v2351 = vpop.f32.mrf.mxu0
        %v2352 = vadd.f32 %v2263, %v2351
        %2353 = vmatmul.bf16.gmra.mxu0 %v968
        %v2354 = vpop.f32.mrf.mxu0
        %v2355 = vadd.f32 %v2266, %v2354
        %v2356 = vpop.f32.mrf.mxu0
        %v2357 = vadd.f32 %v2268, %v2356
        %2358 = vmatmul.bf16.gmra.mxu0 %v971
        %v2359 = vpop.f32.mrf.mxu0
        %v2360 = vadd.f32 %v2271, %v2359
        %v2361 = vpop.f32.mrf.mxu0
        %v2362 = vadd.f32 %v2273, %v2361
        %2363 = vmatmul.bf16.gmra.mxu0 %v974
        %v2364 = vpop.f32.mrf.mxu0
        %v2365 = vadd.f32 %v2276, %v2364
        %v2366 = vpop.f32.mrf.mxu0
        %v2367 = vadd.f32 %v2278, %v2366
        %2368 = vmatmul.bf16.gmra.mxu0 %v977
        %v2369 = vpop.f32.mrf.mxu0
        %v2370 = vadd.f32 %v2281, %v2369
        %v2371 = vpop.f32.mrf.mxu0
        %v2372 = vadd.f32 %v2283, %v2371
        %2373 = vmatmul.bf16.gmra.mxu0 %v980
        %v2374 = vpop.f32.mrf.mxu0
        %v2375 = vadd.f32 %v2286, %v2374
        %v2376 = vpop.f32.mrf.mxu0
        %v2377 = vadd.f32 %v2288, %v2376
        %2378 = vmatmul.bf16.gmra.mxu0 %v983
        %v2379 = vpop.f32.mrf.mxu0
        %v2380 = vadd.f32 %v2291, %v2379
        %v2381 = vpop.f32.mrf.mxu0
        %v2382 = vadd.f32 %v2293, %v2381
        %2383 = vmatmul.bf16.gmra.mxu0 %v986
        %v2384 = vpop.f32.mrf.mxu0
        %v2385 = vadd.f32 %v2296, %v2384
        %v2386 = vpop.f32.mrf.mxu0
        %v2387 = vadd.f32 %v2298, %v2386
        %2388 = vmatmul.bf16.gmra.mxu0 %v1020
        %v2389 = vpop.f32.mrf.mxu0
        %v2390 = vadd.f32 %v2301, %v2389
        %v2391 = vpop.f32.mrf.mxu0
        %v2392 = vadd.f32 %v2303, %v2391
        %2393 = vmatmul.bf16.gmra.mxu0 %v941
        %v2394 = vpop.f32.mrf.mxu0
        %v2395 = vadd.f32 %v2306, %v2394
        %v2396 = vpop.f32.mrf.mxu0
        %v2397 = vadd.f32 %v2308, %v2396
        %2398 = vdwg.mxu0
        %v2399 = vld [vmem:[%s2] sm:$0x1]
        %v2401 = vperm.slane %v2399, 0
        %v2403 = vmul.f32 %v2320, %v2401
        %v2404 = vmul.f32 %v2322, %v2401
        %v2405 = vmul.f32 %v2325, %v2401
        %v2406 = vmul.f32 %v2327, %v2401
        %v2407 = vmul.f32 %v2330, %v2401
        %v2408 = vmul.f32 %v2332, %v2401
        %v2409 = vmul.f32 %v2335, %v2401
        %v2410 = vmul.f32 %v2337, %v2401
        %v2411 = vmul.f32 %v2340, %v2401
        %v2412 = vmul.f32 %v2342, %v2401
        %v2413 = vmul.f32 %v2345, %v2401
        %v2414 = vmul.f32 %v2347, %v2401
        %v2415 = vmul.f32 %v2350, %v2401
        %v2416 = vmul.f32 %v2352, %v2401
        %v2417 = vmul.f32 %v2355, %v2401
        %v2418 = vmul.f32 %v2357, %v2401
        %v2419 = vmul.f32 %v2360, %v2401
        %v2420 = vmul.f32 %v2362, %v2401
        %v2421 = vmul.f32 %v2365, %v2401
        %v2422 = vmul.f32 %v2367, %v2401
        %v2423 = vmul.f32 %v2370, %v2401
        %v2424 = vmul.f32 %v2372, %v2401
        %v2425 = vmul.f32 %v2375, %v2401
        %v2426 = vmul.f32 %v2377, %v2401
        %v2427 = vmul.f32 %v2380, %v2401
        %v2428 = vmul.f32 %v2382, %v2401
        %v2429 = vmul.f32 %v2385, %v2401
        %v2430 = vmul.f32 %v2387, %v2401
        %v2431 = vmul.f32 %v2390, %v2401
        %v2432 = vmul.f32 %v2392, %v2401
        %v2433 = vmul.f32 %v2395, %v2401
        %v2434 = vmul.f32 %v2397, %v2401
        %v2435 = vld [vmem:[%s3] sm:$0x1]
        %v2437 = vperm.slane %v2435, 0
        %v2439 = vadd.f32 %v2403, %v2437
        %v2440 = vadd.f32 %v2404, %v2437
        %v2441 = vadd.f32 %v2405, %v2437
        %v2442 = vadd.f32 %v2406, %v2437
        %v2443 = vadd.f32 %v2407, %v2437
        %v2444 = vadd.f32 %v2408, %v2437
        %v2445 = vadd.f32 %v2409, %v2437
        %v2446 = vadd.f32 %v2410, %v2437
        %v2447 = vadd.f32 %v2411, %v2437
        %v2448 = vadd.f32 %v2412, %v2437
        %v2449 = vadd.f32 %v2413, %v2437
        %v2450 = vadd.f32 %v2414, %v2437
        %v2451 = vadd.f32 %v2415, %v2437
        %v2452 = vadd.f32 %v2416, %v2437
        %v2453 = vadd.f32 %v2417, %v2437
        %v2454 = vadd.f32 %v2418, %v2437
        %v2455 = vadd.f32 %v2419, %v2437
        %v2456 = vadd.f32 %v2420, %v2437
        %v2457 = vadd.f32 %v2421, %v2437
        %v2458 = vadd.f32 %v2422, %v2437
        %v2459 = vadd.f32 %v2423, %v2437
        %v2460 = vadd.f32 %v2424, %v2437
        %v2461 = vadd.f32 %v2425, %v2437
        %v2462 = vadd.f32 %v2426, %v2437
        %v2463 = vadd.f32 %v2427, %v2437
        %v2464 = vadd.f32 %v2428, %v2437
        %v2465 = vadd.f32 %v2429, %v2437
        %v2466 = vadd.f32 %v2430, %v2437
        %v2467 = vadd.f32 %v2431, %v2437
        %v2468 = vadd.f32 %v2432, %v2437
        %v2469 = vadd.f32 %v2433, %v2437
        %v2470 = vadd.f32 %v2434, %v2437
        %v2471 = vmax.f32 %v2439, 0.0
        %v2472 = vmax.f32 %v2440, 0.0
        %v2473 = vmax.f32 %v2441, 0.0
        %v2474 = vmax.f32 %v2442, 0.0
        %v2475 = vmax.f32 %v2443, 0.0
        %v2476 = vmax.f32 %v2444, 0.0
        %v2477 = vmax.f32 %v2445, 0.0
        %v2478 = vmax.f32 %v2446, 0.0
        %v2479 = vmax.f32 %v2447, 0.0
        %v2480 = vmax.f32 %v2448, 0.0
        %v2481 = vmax.f32 %v2449, 0.0
        %v2482 = vmax.f32 %v2450, 0.0
        %v2483 = vmax.f32 %v2451, 0.0
        %v2484 = vmax.f32 %v2452, 0.0
        %v2485 = vmax.f32 %v2453, 0.0
        %v2486 = vmax.f32 %v2454, 0.0
        %v2487 = vmax.f32 %v2455, 0.0
        %v2488 = vmax.f32 %v2456, 0.0
        %v2489 = vmax.f32 %v2457, 0.0
        %v2490 = vmax.f32 %v2458, 0.0
        %v2491 = vmax.f32 %v2459, 0.0
        %v2492 = vmax.f32 %v2460, 0.0
        %v2493 = vmax.f32 %v2461, 0.0
        %v2494 = vmax.f32 %v2462, 0.0
        %v2495 = vmax.f32 %v2463, 0.0
        %v2496 = vmax.f32 %v2464, 0.0
        %v2497 = vmax.f32 %v2465, 0.0
        %v2498 = vmax.f32 %v2466, 0.0
        %v2499 = vmax.f32 %v2467, 0.0
        %v2500 = vmax.f32 %v2468, 0.0
        %v2501 = vmax.f32 %v2469, 0.0
        %v2502 = vmax.f32 %v2470, 0.0
        %v2503 = vpack.c.bf16 %v2471, %v2471
        %v2504 = vpack.c.bf16 %v2472, %v2472
        %v2505 = vpack.c.bf16 %v2473, %v2473
        %v2506 = vpack.c.bf16 %v2474, %v2474
        %v2507 = vpack.c.bf16 %v2475, %v2475
        %v2508 = vpack.c.bf16 %v2476, %v2476
        %v2509 = vpack.c.bf16 %v2477, %v2477
        %v2510 = vpack.c.bf16 %v2478, %v2478
        %v2511 = vpack.c.bf16 %v2479, %v2479
        %v2512 = vpack.c.bf16 %v2480, %v2480
        %v2513 = vpack.c.bf16 %v2481, %v2481
        %v2514 = vpack.c.bf16 %v2482, %v2482
        %v2515 = vpack.c.bf16 %v2483, %v2483
        %v2516 = vpack.c.bf16 %v2484, %v2484
        %v2517 = vpack.c.bf16 %v2485, %v2485
        %v2518 = vpack.c.bf16 %v2486, %v2486
        %v2519 = vpack.c.bf16 %v2487, %v2487
        %v2520 = vpack.c.bf16 %v2488, %v2488
        %v2521 = vpack.c.bf16 %v2489, %v2489
        %v2522 = vpack.c.bf16 %v2490, %v2490
        %v2523 = vpack.c.bf16 %v2491, %v2491
        %v2524 = vpack.c.bf16 %v2492, %v2492
        %v2525 = vpack.c.bf16 %v2493, %v2493
        %v2526 = vpack.c.bf16 %v2494, %v2494
        %v2527 = vpack.c.bf16 %v2495, %v2495
        %v2528 = vpack.c.bf16 %v2496, %v2496
        %v2529 = vpack.c.bf16 %v2497, %v2497
        %v2530 = vpack.c.bf16 %v2498, %v2498
        %v2531 = vpack.c.bf16 %v2499, %v2499
        %v2532 = vpack.c.bf16 %v2500, %v2500
        %v2533 = vpack.c.bf16 %v2501, %v2501
        %v2534 = vpack.c.bf16 %v2502, %v2502
        %v2567 = vunpack.c.l.b16 %v2503
        %v2568 = vunpack.c.l.b16 %v2504
        %v2569 = vunpack.c.l.b16 %v2505
        %v2570 = vunpack.c.l.b16 %v2506
        %v2571 = vunpack.c.l.b16 %v2507
        %v2572 = vunpack.c.l.b16 %v2508
        %v2573 = vunpack.c.l.b16 %v2509
        %v2574 = vunpack.c.l.b16 %v2510
        %v2575 = vunpack.c.l.b16 %v2511
        %v2576 = vunpack.c.l.b16 %v2512
        %v2577 = vunpack.c.l.b16 %v2513
        %v2578 = vunpack.c.l.b16 %v2514
        %v2579 = vunpack.c.l.b16 %v2515
        %v2580 = vunpack.c.l.b16 %v2516
        %v2581 = vunpack.c.l.b16 %v2517
        %v2582 = vunpack.c.l.b16 %v2518
        %v2583 = vunpack.c.l.b16 %v2519
        %v2584 = vunpack.c.l.b16 %v2520
        %v2585 = vunpack.c.l.b16 %v2521
        %v2586 = vunpack.c.l.b16 %v2522
        %v2587 = vunpack.c.l.b16 %v2523
        %v2588 = vunpack.c.l.b16 %v2524
        %v2589 = vunpack.c.l.b16 %v2525
        %v2590 = vunpack.c.l.b16 %v2526
        %v2591 = vunpack.c.l.b16 %v2527
        %v2592 = vunpack.c.l.b16 %v2528
        %v2593 = vunpack.c.l.b16 %v2529
        %v2594 = vunpack.c.l.b16 %v2530
        %v2595 = vunpack.c.l.b16 %v2531
        %v2596 = vunpack.c.l.b16 %v2532
        %v2597 = vunpack.c.l.b16 %v2533
        %v2598 = vunpack.c.l.b16 %v2534
        %v2599 = vpack.c.b16 %v2568, %v2567
        %v2600 = vpack.c.b16 %v2570, %v2569
        %v2601 = vpack.c.b16 %v2572, %v2571
        %v2602 = vpack.c.b16 %v2574, %v2573
        %v2603 = vpack.c.b16 %v2576, %v2575
        %v2604 = vpack.c.b16 %v2578, %v2577
        %v2605 = vpack.c.b16 %v2580, %v2579
        %v2606 = vpack.c.b16 %v2582, %v2581
        %v2607 = vpack.c.b16 %v2584, %v2583
        %v2608 = vpack.c.b16 %v2586, %v2585
        %v2609 = vpack.c.b16 %v2588, %v2587
        %v2610 = vpack.c.b16 %v2590, %v2589
        %v2611 = vpack.c.b16 %v2592, %v2591
        %v2612 = vpack.c.b16 %v2594, %v2593
        %v2613 = vpack.c.b16 %v2596, %v2595
        %v2614 = vpack.c.b16 %v2598, %v2597
        %v2616 = vshrl.u32 %v2599, 16
        %v2618 = vrot.slane %v2616, 7
        %v2619 = vshll.u32 %v2599, 16
        %v2621 = vor.u32 %v2618, %v2619
        %v2623 = vshrl.u32 %v2600, 16
        %v2625 = vrot.slane %v2623, 7
        %v2626 = vshll.u32 %v2600, 16
        %v2628 = vor.u32 %v2625, %v2626
        %v2630 = vshrl.u32 %v2601, 16
        %v2632 = vrot.slane %v2630, 7
        %v2633 = vshll.u32 %v2601, 16
        %v2635 = vor.u32 %v2632, %v2633
        %v2637 = vshrl.u32 %v2602, 16
        %v2639 = vrot.slane %v2637, 7
        %v2640 = vshll.u32 %v2602, 16
        %v2642 = vor.u32 %v2639, %v2640
        %v2644 = vshrl.u32 %v2603, 16
        %v2646 = vrot.slane %v2644, 7
        %v2647 = vshll.u32 %v2603, 16
        %v2649 = vor.u32 %v2646, %v2647
        %v2651 = vshrl.u32 %v2604, 16
        %v2653 = vrot.slane %v2651, 7
        %v2654 = vshll.u32 %v2604, 16
        %v2656 = vor.u32 %v2653, %v2654
        %v2658 = vshrl.u32 %v2605, 16
        %v2660 = vrot.slane %v2658, 7
        %v2661 = vshll.u32 %v2605, 16
        %v2663 = vor.u32 %v2660, %v2661
        %v2665 = vshrl.u32 %v2606, 16
        %v2667 = vrot.slane %v2665, 7
        %v2668 = vshll.u32 %v2606, 16
        %v2670 = vor.u32 %v2667, %v2668
        %v2672 = vshrl.u32 %v2607, 16
        %v2674 = vrot.slane %v2672, 7
        %v2675 = vshll.u32 %v2607, 16
        %v2677 = vor.u32 %v2674, %v2675
        %v2679 = vshrl.u32 %v2608, 16
        %v2681 = vrot.slane %v2679, 7
        %v2682 = vshll.u32 %v2608, 16
        %v2684 = vor.u32 %v2681, %v2682
        %v2686 = vshrl.u32 %v2609, 16
        %v2688 = vrot.slane %v2686, 7
        %v2689 = vshll.u32 %v2609, 16
        %v2691 = vor.u32 %v2688, %v2689
        %v2693 = vshrl.u32 %v2610, 16
        %v2695 = vrot.slane %v2693, 7
        %v2696 = vshll.u32 %v2610, 16
        %v2698 = vor.u32 %v2695, %v2696
        %v2700 = vshrl.u32 %v2611, 16
        %v2702 = vrot.slane %v2700, 7
        %v2703 = vshll.u32 %v2611, 16
        %v2705 = vor.u32 %v2702, %v2703
        %v2707 = vshrl.u32 %v2612, 16
        %v2709 = vrot.slane %v2707, 7
        %v2710 = vshll.u32 %v2612, 16
        %v2712 = vor.u32 %v2709, %v2710
        %v2714 = vshrl.u32 %v2613, 16
        %v2716 = vrot.slane %v2714, 7
        %v2717 = vshll.u32 %v2613, 16
        %v2719 = vor.u32 %v2716, %v2717
        %v2721 = vshrl.u32 %v2614, 16
        %v2723 = vrot.slane %v2721, 7
        %v2724 = vshll.u32 %v2614, 16
        %v2726 = vor.u32 %v2723, %v2724
        %v2759 = vsel %vm662, 0, %v2621
        %v2760 = vsel %vm662, 0, %v2628
        %v2761 = vsel %vm662, 0, %v2635
        %v2762 = vsel %vm662, 0, %v2642
        %v2763 = vsel %vm662, 0, %v2649
        %v2764 = vsel %vm662, 0, %v2656
        %v2765 = vsel %vm662, 0, %v2663
        %v2766 = vsel %vm662, 0, %v2670
        %v2767 = vsel %vm662, 0, %v2677
        %v2768 = vsel %vm662, 0, %v2684
        %v2769 = vsel %vm662, 0, %v2691
        %v2770 = vsel %vm662, 0, %v2698
        %v2771 = vsel %vm662, 0, %v2705
        %v2772 = vsel %vm662, 0, %v2712
        %v2773 = vsel %vm662, 0, %v2719
        %v2774 = vsel %vm662, 0, %v2726
        %v2775 = vsel %vm662, %v2618, 0
        %v2776 = vsel %vm662, %v2625, 0
        %v2777 = vsel %vm662, %v2632, 0
        %v2778 = vsel %vm662, %v2639, 0
        %v2779 = vsel %vm662, %v2646, 0
        %v2780 = vsel %vm662, %v2653, 0
        %v2781 = vsel %vm662, %v2660, 0
        %v2782 = vsel %vm662, %v2667, 0
        %v2783 = vsel %vm662, %v2674, 0
        %v2784 = vsel %vm662, %v2681, 0
        %v2785 = vsel %vm662, %v2688, 0
        %v2786 = vsel %vm662, %v2695, 0
        %v2787 = vsel %vm662, %v2702, 0
        %v2788 = vsel %vm662, %v2709, 0
        %v2789 = vsel %vm662, %v2716, 0
        %v2790 = vsel %vm662, %v2723, 0
        %v2792 = vshrl.u32 %v2759, 16
        %v2794 = vshll.u32 %v2759, 16
        %v2796 = vrot.slane %v2794, 1
        %v2797 = vor.u32 %v2792, %v2796
        %v2799 = vshll.u32 %v2775, 16
        %v2801 = vrot.slane %v2799, 1
        %v2802 = vsel %vm697, %v2797, %v2801
        %v2804 = vshrl.u32 %v2760, 16
        %v2806 = vshll.u32 %v2760, 16
        %v2808 = vrot.slane %v2806, 1
        %v2809 = vor.u32 %v2804, %v2808
        %v2811 = vshll.u32 %v2776, 16
        %v2813 = vrot.slane %v2811, 1
        %v2814 = vsel %vm697, %v2809, %v2813
        %v2816 = vshrl.u32 %v2761, 16
        %v2818 = vshll.u32 %v2761, 16
        %v2820 = vrot.slane %v2818, 1
        %v2821 = vor.u32 %v2816, %v2820
        %v2823 = vshll.u32 %v2777, 16
        %v2825 = vrot.slane %v2823, 1
        %v2826 = vsel %vm697, %v2821, %v2825
        %v2828 = vshrl.u32 %v2762, 16
        %v2830 = vshll.u32 %v2762, 16
        %v2832 = vrot.slane %v2830, 1
        %v2833 = vor.u32 %v2828, %v2832
        %v2835 = vshll.u32 %v2778, 16
        %v2837 = vrot.slane %v2835, 1
        %v2838 = vsel %vm697, %v2833, %v2837
        %v2840 = vshrl.u32 %v2763, 16
        %v2842 = vshll.u32 %v2763, 16
        %v2844 = vrot.slane %v2842, 1
        %v2845 = vor.u32 %v2840, %v2844
        %v2847 = vshll.u32 %v2779, 16
        %v2849 = vrot.slane %v2847, 1
        %v2850 = vsel %vm697, %v2845, %v2849
        %v2852 = vshrl.u32 %v2764, 16
        %v2854 = vshll.u32 %v2764, 16
        %v2856 = vrot.slane %v2854, 1
        %v2857 = vor.u32 %v2852, %v2856
        %v2859 = vshll.u32 %v2780, 16
        %v2861 = vrot.slane %v2859, 1
        %v2862 = vsel %vm697, %v2857, %v2861
        %v2864 = vshrl.u32 %v2765, 16
        %v2866 = vshll.u32 %v2765, 16
        %v2868 = vrot.slane %v2866, 1
        %v2869 = vor.u32 %v2864, %v2868
        %v2871 = vshll.u32 %v2781, 16
        %v2873 = vrot.slane %v2871, 1
        %v2874 = vsel %vm697, %v2869, %v2873
        %v2876 = vshrl.u32 %v2766, 16
        %v2878 = vshll.u32 %v2766, 16
        %v2880 = vrot.slane %v2878, 1
        %v2881 = vor.u32 %v2876, %v2880
        %v2883 = vshll.u32 %v2782, 16
        %v2885 = vrot.slane %v2883, 1
        %v2886 = vsel %vm697, %v2881, %v2885
        %v2888 = vshrl.u32 %v2767, 16
        %v2890 = vshll.u32 %v2767, 16
        %v2892 = vrot.slane %v2890, 1
        %v2893 = vor.u32 %v2888, %v2892
        %v2895 = vshll.u32 %v2783, 16
        %v2897 = vrot.slane %v2895, 1
        %v2898 = vsel %vm697, %v2893, %v2897
        %v2900 = vshrl.u32 %v2768, 16
        %v2902 = vshll.u32 %v2768, 16
        %v2904 = vrot.slane %v2902, 1
        %v2905 = vor.u32 %v2900, %v2904
        %v2907 = vshll.u32 %v2784, 16
        %v2909 = vrot.slane %v2907, 1
        %v2910 = vsel %vm697, %v2905, %v2909
        %v2912 = vshrl.u32 %v2769, 16
        %v2914 = vshll.u32 %v2769, 16
        %v2916 = vrot.slane %v2914, 1
        %v2917 = vor.u32 %v2912, %v2916
        %v2919 = vshll.u32 %v2785, 16
        %v2921 = vrot.slane %v2919, 1
        %v2922 = vsel %vm697, %v2917, %v2921
        %v2924 = vshrl.u32 %v2770, 16
        %v2926 = vshll.u32 %v2770, 16
        %v2928 = vrot.slane %v2926, 1
        %v2929 = vor.u32 %v2924, %v2928
        %v2931 = vshll.u32 %v2786, 16
        %v2933 = vrot.slane %v2931, 1
        %v2934 = vsel %vm697, %v2929, %v2933
        %v2936 = vshrl.u32 %v2771, 16
        %v2938 = vshll.u32 %v2771, 16
        %v2940 = vrot.slane %v2938, 1
        %v2941 = vor.u32 %v2936, %v2940
        %v2943 = vshll.u32 %v2787, 16
        %v2945 = vrot.slane %v2943, 1
        %v2946 = vsel %vm697, %v2941, %v2945
        %v2948 = vshrl.u32 %v2772, 16
        %v2950 = vshll.u32 %v2772, 16
        %v2952 = vrot.slane %v2950, 1
        %v2953 = vor.u32 %v2948, %v2952
        %v2955 = vshll.u32 %v2788, 16
        %v2957 = vrot.slane %v2955, 1
        %v2958 = vsel %vm697, %v2953, %v2957
        %v2960 = vshrl.u32 %v2773, 16
        %v2962 = vshll.u32 %v2773, 16
        %v2964 = vrot.slane %v2962, 1
        %v2965 = vor.u32 %v2960, %v2964
        %v2967 = vshll.u32 %v2789, 16
        %v2969 = vrot.slane %v2967, 1
        %v2970 = vsel %vm697, %v2965, %v2969
        %v3016 = vrot.slane %v2759, 1
        %v3017 = vrot.slane %v2775, 1
        %v3018 = vsel %vm938, %v3016, %v3017
        %v3019 = vrot.slane %v2760, 1
        %v3020 = vrot.slane %v2776, 1
        %v3021 = vsel %vm938, %v3019, %v3020
        %v3022 = vrot.slane %v2761, 1
        %v3023 = vrot.slane %v2777, 1
        %v3024 = vsel %vm938, %v3022, %v3023
        %v3025 = vrot.slane %v2762, 1
        %v3026 = vrot.slane %v2778, 1
        %v3027 = vsel %vm938, %v3025, %v3026
        %v3028 = vrot.slane %v2763, 1
        %v3029 = vrot.slane %v2779, 1
        %v3030 = vsel %vm938, %v3028, %v3029
        %v3031 = vrot.slane %v2764, 1
        %v3032 = vrot.slane %v2780, 1
        %v3033 = vsel %vm938, %v3031, %v3032
        %v3034 = vrot.slane %v2765, 1
        %v3035 = vrot.slane %v2781, 1
        %v3036 = vsel %vm938, %v3034, %v3035
        %v3037 = vrot.slane %v2766, 1
        %v3038 = vrot.slane %v2782, 1
        %v3039 = vsel %vm938, %v3037, %v3038
        %v3040 = vrot.slane %v2767, 1
        %v3041 = vrot.slane %v2783, 1
        %v3042 = vsel %vm938, %v3040, %v3041
        %v3043 = vrot.slane %v2768, 1
        %v3044 = vrot.slane %v2784, 1
        %v3045 = vsel %vm938, %v3043, %v3044
        %v3046 = vrot.slane %v2769, 1
        %v3047 = vrot.slane %v2785, 1
        %v3048 = vsel %vm938, %v3046, %v3047
        %v3049 = vrot.slane %v2770, 1
        %v3050 = vrot.slane %v2786, 1
        %v3051 = vsel %vm938, %v3049, %v3050
        %v3052 = vrot.slane %v2771, 1
        %v3053 = vrot.slane %v2787, 1
        %v3054 = vsel %vm938, %v3052, %v3053
        %v3055 = vrot.slane %v2772, 1
        %v3056 = vrot.slane %v2788, 1
        %v3057 = vsel %vm938, %v3055, %v3056
        %v3058 = vrot.slane %v2773, 1
        %v3059 = vrot.slane %v2789, 1
        %v3060 = vsel %vm938, %v3058, %v3059
        %v3077 = vshrl.u32 %v2774, 16
        %v3079 = vshll.u32 %v2774, 16
        %v3081 = vrot.slane %v3079, 1
        %v3082 = vor.u32 %v3077, %v3081
        %v3084 = vshll.u32 %v2790, 16
        %v3086 = vrot.slane %v3084, 1
        %v3087 = vsel %vm697, %v3082, %v3086
        %v3091 = vrot.slane %v2774, 1
        %v3092 = vrot.slane %v2790, 1
        %v3093 = vsel %vm938, %v3091, %v3092
        %v3095 = vld [vmem:[#allocation2] sm:$0xf]
        %v3096 = vld [vmem:[#allocation2 + $0x4] sm:$0xf]
        %v3097 = vld [vmem:[#allocation2 + $0x8] sm:$0xf]
        %v3098 = vld [vmem:[#allocation2 + $0xc] sm:$0xf]
        %v3099 = vld [vmem:[#allocation2 + $0x10] sm:$0xf]
        %v3100 = vld [vmem:[#allocation2 + $0x14] sm:$0xf]
        %v3101 = vld [vmem:[#allocation2 + $0x18] sm:$0xf]
        %v3102 = vld [vmem:[#allocation2 + $0x1c] sm:$0xf]
        %v3103 = vld [vmem:[#allocation2 + $0x20] sm:$0xf]
        %v3104 = vld [vmem:[#allocation2 + $0x24] sm:$0xf]
        %v3105 = vld [vmem:[#allocation2 + $0x28] sm:$0xf]
        %v3106 = vld [vmem:[#allocation2 + $0x2c] sm:$0xf]
        %v3107 = vld [vmem:[#allocation2 + $0x30] sm:$0xf]
        %v3108 = vld [vmem:[#allocation2 + $0x34] sm:$0xf]
        %v3109 = vld [vmem:[#allocation2 + $0x38] sm:$0xf]
        %v3110 = vld [vmem:[#allocation2 + $0x3c] sm:$0xf]
        %v3111 = vld [vmem:[#allocation2 + $0x40] sm:$0xf]
        %v3112 = vld [vmem:[#allocation2 + $0x44] sm:$0xf]
        %v3113 = vld [vmem:[#allocation2 + $0x48] sm:$0xf]
        %v3114 = vld [vmem:[#allocation2 + $0x4c] sm:$0xf]
        %v3115 = vld [vmem:[#allocation2 + $0x50] sm:$0xf]
        %v3116 = vld [vmem:[#allocation2 + $0x54] sm:$0xf]
        %v3117 = vld [vmem:[#allocation2 + $0x58] sm:$0xf]
        %v3118 = vld [vmem:[#allocation2 + $0x5c] sm:$0xf]
        %v3119 = vld [vmem:[#allocation2 + $0x60] sm:$0xf]
        %v3120 = vld [vmem:[#allocation2 + $0x64] sm:$0xf]
        %v3121 = vld [vmem:[#allocation2 + $0x68] sm:$0xf]
        %v3122 = vld [vmem:[#allocation2 + $0x6c] sm:$0xf]
        %v3123 = vld [vmem:[#allocation2 + $0x70] sm:$0xf]
        %v3124 = vld [vmem:[#allocation2 + $0x74] sm:$0xf]
        %v3125 = vld [vmem:[#allocation2 + $0x78] sm:$0xf]
        %v3126 = vld [vmem:[#allocation2 + $0x7c] sm:$0xf]
        %v3127 = vld [vmem:[#allocation2 + $0x80] sm:$0xf]
        %v3128 = vld [vmem:[#allocation2 + $0x84] sm:$0xf]
        %v3129 = vld [vmem:[#allocation2 + $0x88] sm:$0xf]
        %v3130 = vld [vmem:[#allocation2 + $0x8c] sm:$0xf]
        %v3131 = vld [vmem:[#allocation2 + $0x90] sm:$0xf]
        %v3132 = vld [vmem:[#allocation2 + $0x94] sm:$0xf]
        %v3133 = vld [vmem:[#allocation2 + $0x98] sm:$0xf]
        %v3134 = vld [vmem:[#allocation2 + $0x9c] sm:$0xf]
        %v3135 = vld [vmem:[#allocation2 + $0xa0] sm:$0xf]
        %v3136 = vld [vmem:[#allocation2 + $0xa4] sm:$0xf]
        %v3137 = vld [vmem:[#allocation2 + $0xa8] sm:$0xf]
        %v3138 = vld [vmem:[#allocation2 + $0xac] sm:$0xf]
        %v3139 = vld [vmem:[#allocation2 + $0xb0] sm:$0xf]
        %v3140 = vld [vmem:[#allocation2 + $0xb4] sm:$0xf]
        %v3141 = vld [vmem:[#allocation2 + $0xb8] sm:$0xf]
        %v3142 = vld [vmem:[#allocation2 + $0xbc] sm:$0xf]
        %v3143 = vld [vmem:[#allocation2 + $0xc0] sm:$0xf]
        %v3144 = vld [vmem:[#allocation2 + $0xc4] sm:$0xf]
        %v3145 = vld [vmem:[#allocation2 + $0xc8] sm:$0xf]
        %v3146 = vld [vmem:[#allocation2 + $0xcc] sm:$0xf]
        %v3147 = vld [vmem:[#allocation2 + $0xd0] sm:$0xf]
        %v3148 = vld [vmem:[#allocation2 + $0xd4] sm:$0xf]
        %v3149 = vld [vmem:[#allocation2 + $0xd8] sm:$0xf]
        %v3150 = vld [vmem:[#allocation2 + $0xdc] sm:$0xf]
        %v3151 = vld [vmem:[#allocation2 + $0xe0] sm:$0xf]
        %v3152 = vld [vmem:[#allocation2 + $0xe4] sm:$0xf]
        %v3153 = vld [vmem:[#allocation2 + $0xe8] sm:$0xf]
        %v3154 = vld [vmem:[#allocation2 + $0xec] sm:$0xf]
        %v3155 = vld [vmem:[#allocation2 + $0xf0] sm:$0xf]
        %v3156 = vld [vmem:[#allocation2 + $0xf4] sm:$0xf]
        %v3157 = vld [vmem:[#allocation2 + $0xf8] sm:$0xf]
        %v3158 = vld [vmem:[#allocation2 + $0xfc] sm:$0xf]
        %v3159 = vld [vmem:[#allocation2 + $0x100] sm:$0xf]
        %v3160 = vld [vmem:[#allocation2 + $0x104] sm:$0xf]
        %v3161 = vld [vmem:[#allocation2 + $0x108] sm:$0xf]
        %v3162 = vld [vmem:[#allocation2 + $0x10c] sm:$0xf]
        %v3163 = vld [vmem:[#allocation2 + $0x110] sm:$0xf]
        %v3164 = vld [vmem:[#allocation2 + $0x114] sm:$0xf]
        %v3165 = vld [vmem:[#allocation2 + $0x118] sm:$0xf]
        %v3166 = vld [vmem:[#allocation2 + $0x11c] sm:$0xf]
        %v3167 = vld [vmem:[#allocation2 + $0x120] sm:$0xf]
        %v3168 = vld [vmem:[#allocation2 + $0x124] sm:$0xf]
        %v3169 = vld [vmem:[#allocation2 + $0x128] sm:$0xf]
        %v3170 = vld [vmem:[#allocation2 + $0x12c] sm:$0xf]
        %v3171 = vld [vmem:[#allocation2 + $0x130] sm:$0xf]
        %v3172 = vld [vmem:[#allocation2 + $0x134] sm:$0xf]
        %v3173 = vld [vmem:[#allocation2 + $0x138] sm:$0xf]
        %v3174 = vld [vmem:[#allocation2 + $0x13c] sm:$0xf]
        %v3175 = vld [vmem:[#allocation2 + $0x140] sm:$0xf]
        %v3176 = vld [vmem:[#allocation2 + $0x144] sm:$0xf]
        %v3177 = vld [vmem:[#allocation2 + $0x148] sm:$0xf]
        %v3178 = vld [vmem:[#allocation2 + $0x14c] sm:$0xf]
        %v3179 = vld [vmem:[#allocation2 + $0x150] sm:$0xf]
        %v3180 = vld [vmem:[#allocation2 + $0x154] sm:$0xf]
        %v3181 = vld [vmem:[#allocation2 + $0x158] sm:$0xf]
        %v3182 = vld [vmem:[#allocation2 + $0x15c] sm:$0xf]
        %v3183 = vld [vmem:[#allocation2 + $0x160] sm:$0xf]
        %v3184 = vld [vmem:[#allocation2 + $0x164] sm:$0xf]
        %v3185 = vld [vmem:[#allocation2 + $0x168] sm:$0xf]
        %v3186 = vld [vmem:[#allocation2 + $0x16c] sm:$0xf]
        %v3187 = vld [vmem:[#allocation2 + $0x170] sm:$0xf]
        %v3188 = vld [vmem:[#allocation2 + $0x174] sm:$0xf]
        %v3189 = vld [vmem:[#allocation2 + $0x178] sm:$0xf]
        %v3190 = vld [vmem:[#allocation2 + $0x17c] sm:$0xf]
        %v3191 = vld [vmem:[#allocation2 + $0x180] sm:$0xf]
        %v3192 = vld [vmem:[#allocation2 + $0x184] sm:$0xf]
        %v3193 = vld [vmem:[#allocation2 + $0x188] sm:$0xf]
        %v3194 = vld [vmem:[#allocation2 + $0x18c] sm:$0xf]
        %v3195 = vld [vmem:[#allocation2 + $0x190] sm:$0xf]
        %v3196 = vld [vmem:[#allocation2 + $0x194] sm:$0xf]
        %v3197 = vld [vmem:[#allocation2 + $0x198] sm:$0xf]
        %v3198 = vld [vmem:[#allocation2 + $0x19c] sm:$0xf]
        %v3199 = vld [vmem:[#allocation2 + $0x1a0] sm:$0xf]
        %v3200 = vld [vmem:[#allocation2 + $0x1a4] sm:$0xf]
        %v3201 = vld [vmem:[#allocation2 + $0x1a8] sm:$0xf]
        %v3202 = vld [vmem:[#allocation2 + $0x1ac] sm:$0xf]
        %v3203 = vld [vmem:[#allocation2 + $0x1b0] sm:$0xf]
        %v3204 = vld [vmem:[#allocation2 + $0x1b4] sm:$0xf]
        %v3205 = vld [vmem:[#allocation2 + $0x1b8] sm:$0xf]
        %v3206 = vld [vmem:[#allocation2 + $0x1bc] sm:$0xf]
        %v3207 = vld [vmem:[#allocation2 + $0x1c0] sm:$0xf]
        %v3208 = vld [vmem:[#allocation2 + $0x1c4] sm:$0xf]
        %v3209 = vld [vmem:[#allocation2 + $0x1c8] sm:$0xf]
        %v3210 = vld [vmem:[#allocation2 + $0x1cc] sm:$0xf]
        %v3211 = vld [vmem:[#allocation2 + $0x1d0] sm:$0xf]
        %v3212 = vld [vmem:[#allocation2 + $0x1d4] sm:$0xf]
        %v3213 = vld [vmem:[#allocation2 + $0x1d8] sm:$0xf]
        %v3214 = vld [vmem:[#allocation2 + $0x1dc] sm:$0xf]
        %v3215 = vld [vmem:[#allocation2 + $0x1e0] sm:$0xf]
        %v3216 = vld [vmem:[#allocation2 + $0x1e4] sm:$0xf]
        %v3217 = vld [vmem:[#allocation2 + $0x1e8] sm:$0xf]
        %v3218 = vld [vmem:[#allocation2 + $0x1ec] sm:$0xf]
        %v3219 = vld [vmem:[#allocation2 + $0x1f0] sm:$0xf]
        %v3220 = vld [vmem:[#allocation2 + $0x1f4] sm:$0xf]
        %v3221 = vld [vmem:[#allocation2 + $0x1f8] sm:$0xf]
        %v3222 = vld [vmem:[#allocation2 + $0x1fc] sm:$0xf]
        %v3223 = vld [vmem:[#allocation2 + $0x200] sm:$0xf]
        %v3224 = vld [vmem:[#allocation2 + $0x204] sm:$0xf]
        %v3225 = vld [vmem:[#allocation2 + $0x208] sm:$0xf]
        %v3226 = vld [vmem:[#allocation2 + $0x20c] sm:$0xf]
        %v3227 = vld [vmem:[#allocation2 + $0x210] sm:$0xf]
        %v3228 = vld [vmem:[#allocation2 + $0x214] sm:$0xf]
        %v3229 = vld [vmem:[#allocation2 + $0x218] sm:$0xf]
        %v3230 = vld [vmem:[#allocation2 + $0x21c] sm:$0xf]
        %v3231 = vld [vmem:[#allocation2 + $0x220] sm:$0xf]
        %v3232 = vld [vmem:[#allocation2 + $0x224] sm:$0xf]
        %v3233 = vld [vmem:[#allocation2 + $0x228] sm:$0xf]
        %v3234 = vld [vmem:[#allocation2 + $0x22c] sm:$0xf]
        %v3235 = vld [vmem:[#allocation2 + $0x230] sm:$0xf]
        %v3236 = vld [vmem:[#allocation2 + $0x234] sm:$0xf]
        %v3237 = vld [vmem:[#allocation2 + $0x238] sm:$0xf]
        %v3238 = vld [vmem:[#allocation2 + $0x23c] sm:$0xf]
        %v3383 = vunpack.c.l.b16 %v3095
        %v3384 = vunpack.c.l.b16 %v3096
        %v3385 = vunpack.c.l.b16 %v3097
        %v3386 = vunpack.c.l.b16 %v3098
        %v3387 = vunpack.c.l.b16 %v3099
        %v3388 = vunpack.c.l.b16 %v3100
        %v3389 = vunpack.c.l.b16 %v3101
        %v3390 = vunpack.c.l.b16 %v3102
        %v3391 = vunpack.c.l.b16 %v3103
        %v3392 = vunpack.c.l.b16 %v3104
        %v3393 = vunpack.c.l.b16 %v3105
        %v3394 = vunpack.c.l.b16 %v3106
        %v3395 = vunpack.c.l.b16 %v3107
        %v3396 = vunpack.c.l.b16 %v3108
        %v3397 = vunpack.c.l.b16 %v3109
        %v3398 = vunpack.c.l.b16 %v3110
        %v3399 = vunpack.c.l.b16 %v3111
        %v3400 = vunpack.c.l.b16 %v3112
        %v3401 = vunpack.c.l.b16 %v3113
        %v3402 = vunpack.c.l.b16 %v3114
        %v3403 = vunpack.c.l.b16 %v3115
        %v3404 = vunpack.c.l.b16 %v3116
        %v3405 = vunpack.c.l.b16 %v3117
        %v3406 = vunpack.c.l.b16 %v3118
        %v3407 = vunpack.c.l.b16 %v3119
        %v3408 = vunpack.c.l.b16 %v3120
        %v3409 = vunpack.c.l.b16 %v3121
        %v3410 = vunpack.c.l.b16 %v3122
        %v3411 = vunpack.c.l.b16 %v3123
        %v3412 = vunpack.c.l.b16 %v3124
        %v3413 = vunpack.c.l.b16 %v3125
        %v3414 = vunpack.c.l.b16 %v3126
        %v3415 = vunpack.c.l.b16 %v3127
        %v3416 = vunpack.c.l.b16 %v3128
        %v3417 = vunpack.c.l.b16 %v3129
        %v3418 = vunpack.c.l.b16 %v3130
        %v3419 = vunpack.c.l.b16 %v3131
        %v3420 = vunpack.c.l.b16 %v3132
        %v3421 = vunpack.c.l.b16 %v3133
        %v3422 = vunpack.c.l.b16 %v3134
        %v3423 = vunpack.c.l.b16 %v3135
        %v3424 = vunpack.c.l.b16 %v3136
        %v3425 = vunpack.c.l.b16 %v3137
        %v3426 = vunpack.c.l.b16 %v3138
        %v3427 = vunpack.c.l.b16 %v3139
        %v3428 = vunpack.c.l.b16 %v3140
        %v3429 = vunpack.c.l.b16 %v3141
        %v3430 = vunpack.c.l.b16 %v3142
        %v3431 = vunpack.c.l.b16 %v3143
        %v3432 = vunpack.c.l.b16 %v3144
        %v3433 = vunpack.c.l.b16 %v3145
        %v3434 = vunpack.c.l.b16 %v3146
        %v3435 = vunpack.c.l.b16 %v3147
        %v3436 = vunpack.c.l.b16 %v3148
        %v3437 = vunpack.c.l.b16 %v3149
        %v3438 = vunpack.c.l.b16 %v3150
        %v3439 = vunpack.c.l.b16 %v3151
        %v3440 = vunpack.c.l.b16 %v3152
        %v3441 = vunpack.c.l.b16 %v3153
        %v3442 = vunpack.c.l.b16 %v3154
        %v3443 = vunpack.c.l.b16 %v3155
        %v3444 = vunpack.c.l.b16 %v3156
        %v3445 = vunpack.c.l.b16 %v3157
        %v3446 = vunpack.c.l.b16 %v3158
        %v3447 = vunpack.c.l.b16 %v3159
        %v3448 = vunpack.c.l.b16 %v3160
        %v3449 = vunpack.c.l.b16 %v3161
        %v3450 = vunpack.c.l.b16 %v3162
        %v3451 = vunpack.c.l.b16 %v3163
        %v3452 = vunpack.c.l.b16 %v3164
        %v3453 = vunpack.c.l.b16 %v3165
        %v3454 = vunpack.c.l.b16 %v3166
        %v3455 = vunpack.c.l.b16 %v3167
        %v3456 = vunpack.c.l.b16 %v3168
        %v3457 = vunpack.c.l.b16 %v3169
        %v3458 = vunpack.c.l.b16 %v3170
        %v3459 = vunpack.c.l.b16 %v3171
        %v3460 = vunpack.c.l.b16 %v3172
        %v3461 = vunpack.c.l.b16 %v3173
        %v3462 = vunpack.c.l.b16 %v3174
        %v3463 = vunpack.c.l.b16 %v3175
        %v3464 = vunpack.c.l.b16 %v3176
        %v3465 = vunpack.c.l.b16 %v3177
        %v3466 = vunpack.c.l.b16 %v3178
        %v3467 = vunpack.c.l.b16 %v3179
        %v3468 = vunpack.c.l.b16 %v3180
        %v3469 = vunpack.c.l.b16 %v3181
        %v3470 = vunpack.c.l.b16 %v3182
        %v3471 = vunpack.c.l.b16 %v3183
        %v3472 = vunpack.c.l.b16 %v3184
        %v3473 = vunpack.c.l.b16 %v3185
        %v3474 = vunpack.c.l.b16 %v3186
        %v3475 = vunpack.c.l.b16 %v3187
        %v3476 = vunpack.c.l.b16 %v3188
        %v3477 = vunpack.c.l.b16 %v3189
        %v3478 = vunpack.c.l.b16 %v3190
        %v3479 = vunpack.c.l.b16 %v3191
        %v3480 = vunpack.c.l.b16 %v3192
        %v3481 = vunpack.c.l.b16 %v3193
        %v3482 = vunpack.c.l.b16 %v3194
        %v3483 = vunpack.c.l.b16 %v3195
        %v3484 = vunpack.c.l.b16 %v3196
        %v3485 = vunpack.c.l.b16 %v3197
        %v3486 = vunpack.c.l.b16 %v3198
        %v3487 = vunpack.c.l.b16 %v3199
        %v3488 = vunpack.c.l.b16 %v3200
        %v3489 = vunpack.c.l.b16 %v3201
        %v3490 = vunpack.c.l.b16 %v3202
        %v3491 = vunpack.c.l.b16 %v3203
        %v3492 = vunpack.c.l.b16 %v3204
        %v3493 = vunpack.c.l.b16 %v3205
        %v3494 = vunpack.c.l.b16 %v3206
        %v3495 = vunpack.c.l.b16 %v3207
        %v3496 = vunpack.c.l.b16 %v3208
        %v3497 = vunpack.c.l.b16 %v3209
        %v3498 = vunpack.c.l.b16 %v3210
        %v3499 = vunpack.c.l.b16 %v3211
        %v3500 = vunpack.c.l.b16 %v3212
        %v3501 = vunpack.c.l.b16 %v3213
        %v3502 = vunpack.c.l.b16 %v3214
        %v3503 = vunpack.c.l.b16 %v3215
        %v3504 = vunpack.c.l.b16 %v3216
        %v3505 = vunpack.c.l.b16 %v3217
        %v3506 = vunpack.c.l.b16 %v3218
        %v3507 = vunpack.c.l.b16 %v3219
        %v3508 = vunpack.c.l.b16 %v3220
        %v3509 = vunpack.c.l.b16 %v3221
        %v3510 = vunpack.c.l.b16 %v3222
        %v3511 = vunpack.c.l.b16 %v3223
        %v3512 = vunpack.c.l.b16 %v3224
        %v3513 = vunpack.c.l.b16 %v3225
        %v3514 = vunpack.c.l.b16 %v3226
        %v3515 = vunpack.c.l.b16 %v3227
        %v3516 = vunpack.c.l.b16 %v3228
        %v3517 = vunpack.c.l.b16 %v3229
        %v3518 = vunpack.c.l.b16 %v3230
        %v3519 = vunpack.c.l.b16 %v3231
        %v3520 = vunpack.c.l.b16 %v3232
        %v3521 = vunpack.c.l.b16 %v3233
        %v3522 = vunpack.c.l.b16 %v3234
        %v3523 = vunpack.c.l.b16 %v3235
        %v3524 = vunpack.c.l.b16 %v3236
        %v3525 = vunpack.c.l.b16 %v3237
        %v3526 = vunpack.c.l.b16 %v3238
        %v3527 = vpack.c.b16 %v3384, %v3383
        %v3528 = vpack.c.b16 %v3386, %v3385
        %v3529 = vpack.c.b16 %v3388, %v3387
        %v3530 = vpack.c.b16 %v3390, %v3389
        %v3531 = vpack.c.b16 %v3392, %v3391
        %v3532 = vpack.c.b16 %v3394, %v3393
        %v3533 = vpack.c.b16 %v3396, %v3395
        %v3534 = vpack.c.b16 %v3398, %v3397
        %v3535 = vpack.c.b16 %v3400, %v3399
        %v3536 = vpack.c.b16 %v3402, %v3401
        %v3537 = vpack.c.b16 %v3404, %v3403
        %v3538 = vpack.c.b16 %v3406, %v3405
        %v3539 = vpack.c.b16 %v3408, %v3407
        %v3540 = vpack.c.b16 %v3410, %v3409
        %v3541 = vpack.c.b16 %v3412, %v3411
        %v3542 = vpack.c.b16 %v3414, %v3413
        %v3543 = vpack.c.b16 %v3416, %v3415
        %v3544 = vpack.c.b16 %v3418, %v3417
        %v3545 = vpack.c.b16 %v3420, %v3419
        %v3546 = vpack.c.b16 %v3422, %v3421
        %v3547 = vpack.c.b16 %v3424, %v3423
        %v3548 = vpack.c.b16 %v3426, %v3425
        %v3549 = vpack.c.b16 %v3428, %v3427
        %v3550 = vpack.c.b16 %v3430, %v3429
        %v3551 = vpack.c.b16 %v3432, %v3431
        %v3552 = vpack.c.b16 %v3434, %v3433
        %v3553 = vpack.c.b16 %v3436, %v3435
        %v3554 = vpack.c.b16 %v3438, %v3437
        %v3555 = vpack.c.b16 %v3440, %v3439
        %v3556 = vpack.c.b16 %v3442, %v3441
        %v3557 = vpack.c.b16 %v3444, %v3443
        %v3558 = vpack.c.b16 %v3446, %v3445
        %v3559 = vpack.c.b16 %v3448, %v3447
        %v3560 = vpack.c.b16 %v3450, %v3449
        %v3561 = vpack.c.b16 %v3452, %v3451
        %v3562 = vpack.c.b16 %v3454, %v3453
        %v3563 = vpack.c.b16 %v3456, %v3455
        %v3564 = vpack.c.b16 %v3458, %v3457
        %v3565 = vpack.c.b16 %v3460, %v3459
        %v3566 = vpack.c.b16 %v3462, %v3461
        %v3567 = vpack.c.b16 %v3464, %v3463
        %v3568 = vpack.c.b16 %v3466, %v3465
        %v3569 = vpack.c.b16 %v3468, %v3467
        %v3570 = vpack.c.b16 %v3470, %v3469
        %v3571 = vpack.c.b16 %v3472, %v3471
        %v3572 = vpack.c.b16 %v3474, %v3473
        %v3573 = vpack.c.b16 %v3476, %v3475
        %v3574 = vpack.c.b16 %v3478, %v3477
        %v3575 = vpack.c.b16 %v3480, %v3479
        %v3576 = vpack.c.b16 %v3482, %v3481
        %v3577 = vpack.c.b16 %v3484, %v3483
        %v3578 = vpack.c.b16 %v3486, %v3485
        %v3579 = vpack.c.b16 %v3488, %v3487
        %v3580 = vpack.c.b16 %v3490, %v3489
        %v3581 = vpack.c.b16 %v3492, %v3491
        %v3582 = vpack.c.b16 %v3494, %v3493
        %v3583 = vpack.c.b16 %v3496, %v3495
        %v3584 = vpack.c.b16 %v3498, %v3497
        %v3585 = vpack.c.b16 %v3500, %v3499
        %v3586 = vpack.c.b16 %v3502, %v3501
        %v3587 = vpack.c.b16 %v3504, %v3503
        %v3588 = vpack.c.b16 %v3506, %v3505
        %v3589 = vpack.c.b16 %v3508, %v3507
        %v3590 = vpack.c.b16 %v3510, %v3509
        %v3591 = vpack.c.b16 %v3512, %v3511
        %v3592 = vpack.c.b16 %v3514, %v3513
        %v3593 = vpack.c.b16 %v3516, %v3515
        %v3594 = vpack.c.b16 %v3518, %v3517
        %v3595 = vpack.c.b16 %v3520, %v3519
        %v3596 = vpack.c.b16 %v3522, %v3521
        %v3597 = vpack.c.b16 %v3524, %v3523
        %v3598 = vpack.c.b16 %v3526, %v3525
        %3671 = vmatpush.bf16.msra.mxu0 %v3534
        %3672 = vmatpush.bf16.msra.mxu0 %v3533
        %3673 = vmatpush.bf16.msra.mxu0 %v3532
        %3674 = vmatpush.bf16.msra.mxu0 %v3531
        %3675 = vmatpush.bf16.msra.mxu0 %v3530
        %3676 = vmatpush.bf16.msra.mxu0 %v3529
        %3677 = vmatpush.bf16.msra.mxu0 %v3528
        %3678 = vmatpush.bf16.msra.mxu0 %v3527
        %3679 = vmatmul.bf16.gmra.mxu0 %v663
        %v3680 = vpop.f32.mrf.mxu0
        %v3681 = vadd.f32 0.0, %v3680
        %v3682 = vpop.f32.mrf.mxu0
        %v3683 = vadd.f32 0.0, %v3682
        %3684 = vmatmul.bf16.gmra.mxu0 %v2759
        %v3685 = vpop.f32.mrf.mxu0
        %v3686 = vadd.f32 0.0, %v3685
        %v3687 = vpop.f32.mrf.mxu0
        %v3688 = vadd.f32 0.0, %v3687
        %3689 = vmatmul.bf16.gmra.mxu0 %v2760
        %v3690 = vpop.f32.mrf.mxu0
        %v3691 = vadd.f32 0.0, %v3690
        %v3692 = vpop.f32.mrf.mxu0
        %v3693 = vadd.f32 0.0, %v3692
        %3694 = vmatmul.bf16.gmra.mxu0 %v2761
        %v3695 = vpop.f32.mrf.mxu0
        %v3696 = vadd.f32 0.0, %v3695
        %v3697 = vpop.f32.mrf.mxu0
        %v3698 = vadd.f32 0.0, %v3697
        %3699 = vmatmul.bf16.gmra.mxu0 %v2762
        %v3700 = vpop.f32.mrf.mxu0
        %v3701 = vadd.f32 0.0, %v3700
        %v3702 = vpop.f32.mrf.mxu0
        %v3703 = vadd.f32 0.0, %v3702
        %3704 = vmatmul.bf16.gmra.mxu0 %v2763
        %v3705 = vpop.f32.mrf.mxu0
        %v3706 = vadd.f32 0.0, %v3705
        %v3707 = vpop.f32.mrf.mxu0
        %v3708 = vadd.f32 0.0, %v3707
        %3709 = vmatmul.bf16.gmra.mxu0 %v2764
        %v3710 = vpop.f32.mrf.mxu0
        %v3711 = vadd.f32 0.0, %v3710
        %v3712 = vpop.f32.mrf.mxu0
        %v3713 = vadd.f32 0.0, %v3712
        %3714 = vmatmul.bf16.gmra.mxu0 %v2765
        %v3715 = vpop.f32.mrf.mxu0
        %v3716 = vadd.f32 0.0, %v3715
        %v3717 = vpop.f32.mrf.mxu0
        %v3718 = vadd.f32 0.0, %v3717
        %3719 = vmatmul.bf16.gmra.mxu0 %v2766
        %v3720 = vpop.f32.mrf.mxu0
        %v3721 = vadd.f32 0.0, %v3720
        %v3722 = vpop.f32.mrf.mxu0
        %v3723 = vadd.f32 0.0, %v3722
        %3724 = vmatmul.bf16.gmra.mxu0 %v2767
        %v3725 = vpop.f32.mrf.mxu0
        %v3726 = vadd.f32 0.0, %v3725
        %v3727 = vpop.f32.mrf.mxu0
        %v3728 = vadd.f32 0.0, %v3727
        %3729 = vmatmul.bf16.gmra.mxu0 %v2768
        %v3730 = vpop.f32.mrf.mxu0
        %v3731 = vadd.f32 0.0, %v3730
        %v3732 = vpop.f32.mrf.mxu0
        %v3733 = vadd.f32 0.0, %v3732
        %3734 = vmatmul.bf16.gmra.mxu0 %v2769
        %v3735 = vpop.f32.mrf.mxu0
        %v3736 = vadd.f32 0.0, %v3735
        %v3737 = vpop.f32.mrf.mxu0
        %v3738 = vadd.f32 0.0, %v3737
        %3739 = vmatmul.bf16.gmra.mxu0 %v2770
        %v3740 = vpop.f32.mrf.mxu0
        %v3741 = vadd.f32 0.0, %v3740
        %v3742 = vpop.f32.mrf.mxu0
        %v3743 = vadd.f32 0.0, %v3742
        %3744 = vmatmul.bf16.gmra.mxu0 %v2771
        %v3745 = vpop.f32.mrf.mxu0
        %v3746 = vadd.f32 0.0, %v3745
        %v3747 = vpop.f32.mrf.mxu0
        %v3748 = vadd.f32 0.0, %v3747
        %3749 = vmatmul.bf16.gmra.mxu0 %v2772
        %v3750 = vpop.f32.mrf.mxu0
        %v3751 = vadd.f32 0.0, %v3750
        %v3752 = vpop.f32.mrf.mxu0
        %v3753 = vadd.f32 0.0, %v3752
        %3754 = vmatmul.bf16.gmra.mxu0 %v2773
        %v3755 = vpop.f32.mrf.mxu0
        %v3756 = vadd.f32 0.0, %v3755
        %v3757 = vpop.f32.mrf.mxu0
        %v3758 = vadd.f32 0.0, %v3757
        %3759 = vdwg.mxu0
        %3760 = vmatpush.bf16.msra.mxu0 %v3542
        %3761 = vmatpush.bf16.msra.mxu0 %v3541
        %3762 = vmatpush.bf16.msra.mxu0 %v3540
        %3763 = vmatpush.bf16.msra.mxu0 %v3539
        %3764 = vmatpush.bf16.msra.mxu0 %v3538
        %3765 = vmatpush.bf16.msra.mxu0 %v3537
        %3766 = vmatpush.bf16.msra.mxu0 %v3536
        %3767 = vmatpush.bf16.msra.mxu0 %v3535
        %3768 = vmatmul.bf16.gmra.mxu0 %v709
        %v3769 = vpop.f32.mrf.mxu0
        %v3770 = vadd.f32 %v3681, %v3769
        %v3771 = vpop.f32.mrf.mxu0
        %v3772 = vadd.f32 %v3683, %v3771
        %3773 = vmatmul.bf16.gmra.mxu0 %v2802
        %v3774 = vpop.f32.mrf.mxu0
        %v3775 = vadd.f32 %v3686, %v3774
        %v3776 = vpop.f32.mrf.mxu0
        %v3777 = vadd.f32 %v3688, %v3776
        %3778 = vmatmul.bf16.gmra.mxu0 %v2814
        %v3779 = vpop.f32.mrf.mxu0
        %v3780 = vadd.f32 %v3691, %v3779
        %v3781 = vpop.f32.mrf.mxu0
        %v3782 = vadd.f32 %v3693, %v3781
        %3783 = vmatmul.bf16.gmra.mxu0 %v2826
        %v3784 = vpop.f32.mrf.mxu0
        %v3785 = vadd.f32 %v3696, %v3784
        %v3786 = vpop.f32.mrf.mxu0
        %v3787 = vadd.f32 %v3698, %v3786
        %3788 = vmatmul.bf16.gmra.mxu0 %v2838
        %v3789 = vpop.f32.mrf.mxu0
        %v3790 = vadd.f32 %v3701, %v3789
        %v3791 = vpop.f32.mrf.mxu0
        %v3792 = vadd.f32 %v3703, %v3791
        %3793 = vmatmul.bf16.gmra.mxu0 %v2850
        %v3794 = vpop.f32.mrf.mxu0
        %v3795 = vadd.f32 %v3706, %v3794
        %v3796 = vpop.f32.mrf.mxu0
        %v3797 = vadd.f32 %v3708, %v3796
        %3798 = vmatmul.bf16.gmra.mxu0 %v2862
        %v3799 = vpop.f32.mrf.mxu0
        %v3800 = vadd.f32 %v3711, %v3799
        %v3801 = vpop.f32.mrf.mxu0
        %v3802 = vadd.f32 %v3713, %v3801
        %3803 = vmatmul.bf16.gmra.mxu0 %v2874
        %v3804 = vpop.f32.mrf.mxu0
        %v3805 = vadd.f32 %v3716, %v3804
        %v3806 = vpop.f32.mrf.mxu0
        %v3807 = vadd.f32 %v3718, %v3806
        %3808 = vmatmul.bf16.gmra.mxu0 %v2886
        %v3809 = vpop.f32.mrf.mxu0
        %v3810 = vadd.f32 %v3721, %v3809
        %v3811 = vpop.f32.mrf.mxu0
        %v3812 = vadd.f32 %v3723, %v3811
        %3813 = vmatmul.bf16.gmra.mxu0 %v2898
        %v3814 = vpop.f32.mrf.mxu0
        %v3815 = vadd.f32 %v3726, %v3814
        %v3816 = vpop.f32.mrf.mxu0
        %v3817 = vadd.f32 %v3728, %v3816
        %3818 = vmatmul.bf16.gmra.mxu0 %v2910
        %v3819 = vpop.f32.mrf.mxu0
        %v3820 = vadd.f32 %v3731, %v3819
        %v3821 = vpop.f32.mrf.mxu0
        %v3822 = vadd.f32 %v3733, %v3821
        %3823 = vmatmul.bf16.gmra.mxu0 %v2922
        %v3824 = vpop.f32.mrf.mxu0
        %v3825 = vadd.f32 %v3736, %v3824
        %v3826 = vpop.f32.mrf.mxu0
        %v3827 = vadd.f32 %v3738, %v3826
        %3828 = vmatmul.bf16.gmra.mxu0 %v2934
        %v3829 = vpop.f32.mrf.mxu0
        %v3830 = vadd.f32 %v3741, %v3829
        %v3831 = vpop.f32.mrf.mxu0
        %v3832 = vadd.f32 %v3743, %v3831
        %3833 = vmatmul.bf16.gmra.mxu0 %v2946
        %v3834 = vpop.f32.mrf.mxu0
        %v3835 = vadd.f32 %v3746, %v3834
        %v3836 = vpop.f32.mrf.mxu0
        %v3837 = vadd.f32 %v3748, %v3836
        %3838 = vmatmul.bf16.gmra.mxu0 %v2958
        %v3839 = vpop.f32.mrf.mxu0
        %v3840 = vadd.f32 %v3751, %v3839
        %v3841 = vpop.f32.mrf.mxu0
        %v3842 = vadd.f32 %v3753, %v3841
        %3843 = vmatmul.bf16.gmra.mxu0 %v2970
        %v3844 = vpop.f32.mrf.mxu0
        %v3845 = vadd.f32 %v3756, %v3844
        %v3846 = vpop.f32.mrf.mxu0
        %v3847 = vadd.f32 %v3758, %v3846
        %3848 = vdwg.mxu0
        %3849 = vmatpush.bf16.msra.mxu0 %v3550
        %3850 = vmatpush.bf16.msra.mxu0 %v3549
        %3851 = vmatpush.bf16.msra.mxu0 %v3548
        %3852 = vmatpush.bf16.msra.mxu0 %v3547
        %3853 = vmatpush.bf16.msra.mxu0 %v3546
        %3854 = vmatpush.bf16.msra.mxu0 %v3545
        %3855 = vmatpush.bf16.msra.mxu0 %v3544
        %3856 = vmatpush.bf16.msra.mxu0 %v3543
        %3857 = vmatmul.bf16.gmra.mxu0 %v941
        %v3858 = vpop.f32.mrf.mxu0
        %v3859 = vadd.f32 %v3770, %v3858
        %v3860 = vpop.f32.mrf.mxu0
        %v3861 = vadd.f32 %v3772, %v3860
        %3862 = vmatmul.bf16.gmra.mxu0 %v3018
        %v3863 = vpop.f32.mrf.mxu0
        %v3864 = vadd.f32 %v3775, %v3863
        %v3865 = vpop.f32.mrf.mxu0
        %v3866 = vadd.f32 %v3777, %v3865
        %3867 = vmatmul.bf16.gmra.mxu0 %v3021
        %v3868 = vpop.f32.mrf.mxu0
        %v3869 = vadd.f32 %v3780, %v3868
        %v3870 = vpop.f32.mrf.mxu0
        %v3871 = vadd.f32 %v3782, %v3870
        %3872 = vmatmul.bf16.gmra.mxu0 %v3024
        %v3873 = vpop.f32.mrf.mxu0
        %v3874 = vadd.f32 %v3785, %v3873
        %v3875 = vpop.f32.mrf.mxu0
        %v3876 = vadd.f32 %v3787, %v3875
        %3877 = vmatmul.bf16.gmra.mxu0 %v3027
        %v3878 = vpop.f32.mrf.mxu0
        %v3879 = vadd.f32 %v3790, %v3878
        %v3880 = vpop.f32.mrf.mxu0
        %v3881 = vadd.f32 %v3792, %v3880
        %3882 = vmatmul.bf16.gmra.mxu0 %v3030
        %v3883 = vpop.f32.mrf.mxu0
        %v3884 = vadd.f32 %v3795, %v3883
        %v3885 = vpop.f32.mrf.mxu0
        %v3886 = vadd.f32 %v3797, %v3885
        %3887 = vmatmul.bf16.gmra.mxu0 %v3033
        %v3888 = vpop.f32.mrf.mxu0
        %v3889 = vadd.f32 %v3800, %v3888
        %v3890 = vpop.f32.mrf.mxu0
        %v3891 = vadd.f32 %v3802, %v3890
        %3892 = vmatmul.bf16.gmra.mxu0 %v3036
        %v3893 = vpop.f32.mrf.mxu0
        %v3894 = vadd.f32 %v3805, %v3893
        %v3895 = vpop.f32.mrf.mxu0
        %v3896 = vadd.f32 %v3807, %v3895
        %3897 = vmatmul.bf16.gmra.mxu0 %v3039
        %v3898 = vpop.f32.mrf.mxu0
        %v3899 = vadd.f32 %v3810, %v3898
        %v3900 = vpop.f32.mrf.mxu0
        %v3901 = vadd.f32 %v3812, %v3900
        %3902 = vmatmul.bf16.gmra.mxu0 %v3042
        %v3903 = vpop.f32.mrf.mxu0
        %v3904 = vadd.f32 %v3815, %v3903
        %v3905 = vpop.f32.mrf.mxu0
        %v3906 = vadd.f32 %v3817, %v3905
        %3907 = vmatmul.bf16.gmra.mxu0 %v3045
        %v3908 = vpop.f32.mrf.mxu0
        %v3909 = vadd.f32 %v3820, %v3908
        %v3910 = vpop.f32.mrf.mxu0
        %v3911 = vadd.f32 %v3822, %v3910
        %3912 = vmatmul.bf16.gmra.mxu0 %v3048
        %v3913 = vpop.f32.mrf.mxu0
        %v3914 = vadd.f32 %v3825, %v3913
        %v3915 = vpop.f32.mrf.mxu0
        %v3916 = vadd.f32 %v3827, %v3915
        %3917 = vmatmul.bf16.gmra.mxu0 %v3051
        %v3918 = vpop.f32.mrf.mxu0
        %v3919 = vadd.f32 %v3830, %v3918
        %v3920 = vpop.f32.mrf.mxu0
        %v3921 = vadd.f32 %v3832, %v3920
        %3922 = vmatmul.bf16.gmra.mxu0 %v3054
        %v3923 = vpop.f32.mrf.mxu0
        %v3924 = vadd.f32 %v3835, %v3923
        %v3925 = vpop.f32.mrf.mxu0
        %v3926 = vadd.f32 %v3837, %v3925
        %3927 = vmatmul.bf16.gmra.mxu0 %v3057
        %v3928 = vpop.f32.mrf.mxu0
        %v3929 = vadd.f32 %v3840, %v3928
        %v3930 = vpop.f32.mrf.mxu0
        %v3931 = vadd.f32 %v3842, %v3930
        %3932 = vmatmul.bf16.gmra.mxu0 %v3060
        %v3933 = vpop.f32.mrf.mxu0
        %v3934 = vadd.f32 %v3845, %v3933
        %v3935 = vpop.f32.mrf.mxu0
        %v3936 = vadd.f32 %v3847, %v3935
        %3937 = vdwg.mxu0
        %3938 = vmatpush.bf16.msra.mxu0 %v3558
        %3939 = vmatpush.bf16.msra.mxu0 %v3557
        %3940 = vmatpush.bf16.msra.mxu0 %v3556
        %3941 = vmatpush.bf16.msra.mxu0 %v3555
        %3942 = vmatpush.bf16.msra.mxu0 %v3554
        %3943 = vmatpush.bf16.msra.mxu0 %v3553
        %3944 = vmatpush.bf16.msra.mxu0 %v3552
        %3945 = vmatpush.bf16.msra.mxu0 %v3551
        %3946 = vmatmul.bf16.gmra.mxu0 %v2759
        %v3947 = vpop.f32.mrf.mxu0
        %v3948 = vadd.f32 %v3859, %v3947
        %v3949 = vpop.f32.mrf.mxu0
        %v3950 = vadd.f32 %v3861, %v3949
        %3951 = vmatmul.bf16.gmra.mxu0 %v2760
        %v3952 = vpop.f32.mrf.mxu0
        %v3953 = vadd.f32 %v3864, %v3952
        %v3954 = vpop.f32.mrf.mxu0
        %v3955 = vadd.f32 %v3866, %v3954
        %3956 = vmatmul.bf16.gmra.mxu0 %v2761
        %v3957 = vpop.f32.mrf.mxu0
        %v3958 = vadd.f32 %v3869, %v3957
        %v3959 = vpop.f32.mrf.mxu0
        %v3960 = vadd.f32 %v3871, %v3959
        %3961 = vmatmul.bf16.gmra.mxu0 %v2762
        %v3962 = vpop.f32.mrf.mxu0
        %v3963 = vadd.f32 %v3874, %v3962
        %v3964 = vpop.f32.mrf.mxu0
        %v3965 = vadd.f32 %v3876, %v3964
        %3966 = vmatmul.bf16.gmra.mxu0 %v2763
        %v3967 = vpop.f32.mrf.mxu0
        %v3968 = vadd.f32 %v3879, %v3967
        %v3969 = vpop.f32.mrf.mxu0
        %v3970 = vadd.f32 %v3881, %v3969
        %3971 = vmatmul.bf16.gmra.mxu0 %v2764
        %v3972 = vpop.f32.mrf.mxu0
        %v3973 = vadd.f32 %v3884, %v3972
        %v3974 = vpop.f32.mrf.mxu0
        %v3975 = vadd.f32 %v3886, %v3974
        %3976 = vmatmul.bf16.gmra.mxu0 %v2765
        %v3977 = vpop.f32.mrf.mxu0
        %v3978 = vadd.f32 %v3889, %v3977
        %v3979 = vpop.f32.mrf.mxu0
        %v3980 = vadd.f32 %v3891, %v3979
        %3981 = vmatmul.bf16.gmra.mxu0 %v2766
        %v3982 = vpop.f32.mrf.mxu0
        %v3983 = vadd.f32 %v3894, %v3982
        %v3984 = vpop.f32.mrf.mxu0
        %v3985 = vadd.f32 %v3896, %v3984
        %3986 = vmatmul.bf16.gmra.mxu0 %v2767
        %v3987 = vpop.f32.mrf.mxu0
        %v3988 = vadd.f32 %v3899, %v3987
        %v3989 = vpop.f32.mrf.mxu0
        %v3990 = vadd.f32 %v3901, %v3989
        %3991 = vmatmul.bf16.gmra.mxu0 %v2768
        %v3992 = vpop.f32.mrf.mxu0
        %v3993 = vadd.f32 %v3904, %v3992
        %v3994 = vpop.f32.mrf.mxu0
        %v3995 = vadd.f32 %v3906, %v3994
        %3996 = vmatmul.bf16.gmra.mxu0 %v2769
        %v3997 = vpop.f32.mrf.mxu0
        %v3998 = vadd.f32 %v3909, %v3997
        %v3999 = vpop.f32.mrf.mxu0
        %v4000 = vadd.f32 %v3911, %v3999
        %4001 = vmatmul.bf16.gmra.mxu0 %v2770
        %v4002 = vpop.f32.mrf.mxu0
        %v4003 = vadd.f32 %v3914, %v4002
        %v4004 = vpop.f32.mrf.mxu0
        %v4005 = vadd.f32 %v3916, %v4004
        %4006 = vmatmul.bf16.gmra.mxu0 %v2771
        %v4007 = vpop.f32.mrf.mxu0
        %v4008 = vadd.f32 %v3919, %v4007
        %v4009 = vpop.f32.mrf.mxu0
        %v4010 = vadd.f32 %v3921, %v4009
        %4011 = vmatmul.bf16.gmra.mxu0 %v2772
        %v4012 = vpop.f32.mrf.mxu0
        %v4013 = vadd.f32 %v3924, %v4012
        %v4014 = vpop.f32.mrf.mxu0
        %v4015 = vadd.f32 %v3926, %v4014
        %4016 = vmatmul.bf16.gmra.mxu0 %v2773
        %v4017 = vpop.f32.mrf.mxu0
        %v4018 = vadd.f32 %v3929, %v4017
        %v4019 = vpop.f32.mrf.mxu0
        %v4020 = vadd.f32 %v3931, %v4019
        %4021 = vmatmul.bf16.gmra.mxu0 %v2774
        %v4022 = vpop.f32.mrf.mxu0
        %v4023 = vadd.f32 %v3934, %v4022
        %v4024 = vpop.f32.mrf.mxu0
        %v4025 = vadd.f32 %v3936, %v4024
        %4026 = vdwg.mxu0
        %4027 = vmatpush.bf16.msra.mxu0 %v3566
        %4028 = vmatpush.bf16.msra.mxu0 %v3565
        %4029 = vmatpush.bf16.msra.mxu0 %v3564
        %4030 = vmatpush.bf16.msra.mxu0 %v3563
        %4031 = vmatpush.bf16.msra.mxu0 %v3562
        %4032 = vmatpush.bf16.msra.mxu0 %v3561
        %4033 = vmatpush.bf16.msra.mxu0 %v3560
        %4034 = vmatpush.bf16.msra.mxu0 %v3559
        %4035 = vmatmul.bf16.gmra.mxu0 %v2802
        %v4036 = vpop.f32.mrf.mxu0
        %v4037 = vadd.f32 %v3948, %v4036
        %v4038 = vpop.f32.mrf.mxu0
        %v4039 = vadd.f32 %v3950, %v4038
        %4040 = vmatmul.bf16.gmra.mxu0 %v2814
        %v4041 = vpop.f32.mrf.mxu0
        %v4042 = vadd.f32 %v3953, %v4041
        %v4043 = vpop.f32.mrf.mxu0
        %v4044 = vadd.f32 %v3955, %v4043
        %4045 = vmatmul.bf16.gmra.mxu0 %v2826
        %v4046 = vpop.f32.mrf.mxu0
        %v4047 = vadd.f32 %v3958, %v4046
        %v4048 = vpop.f32.mrf.mxu0
        %v4049 = vadd.f32 %v3960, %v4048
        %4050 = vmatmul.bf16.gmra.mxu0 %v2838
        %v4051 = vpop.f32.mrf.mxu0
        %v4052 = vadd.f32 %v3963, %v4051
        %v4053 = vpop.f32.mrf.mxu0
        %v4054 = vadd.f32 %v3965, %v4053
        %4055 = vmatmul.bf16.gmra.mxu0 %v2850
        %v4056 = vpop.f32.mrf.mxu0
        %v4057 = vadd.f32 %v3968, %v4056
        %v4058 = vpop.f32.mrf.mxu0
        %v4059 = vadd.f32 %v3970, %v4058
        %4060 = vmatmul.bf16.gmra.mxu0 %v2862
        %v4061 = vpop.f32.mrf.mxu0
        %v4062 = vadd.f32 %v3973, %v4061
        %v4063 = vpop.f32.mrf.mxu0
        %v4064 = vadd.f32 %v3975, %v4063
        %4065 = vmatmul.bf16.gmra.mxu0 %v2874
        %v4066 = vpop.f32.mrf.mxu0
        %v4067 = vadd.f32 %v3978, %v4066
        %v4068 = vpop.f32.mrf.mxu0
        %v4069 = vadd.f32 %v3980, %v4068
        %4070 = vmatmul.bf16.gmra.mxu0 %v2886
        %v4071 = vpop.f32.mrf.mxu0
        %v4072 = vadd.f32 %v3983, %v4071
        %v4073 = vpop.f32.mrf.mxu0
        %v4074 = vadd.f32 %v3985, %v4073
        %4075 = vmatmul.bf16.gmra.mxu0 %v2898
        %v4076 = vpop.f32.mrf.mxu0
        %v4077 = vadd.f32 %v3988, %v4076
        %v4078 = vpop.f32.mrf.mxu0
        %v4079 = vadd.f32 %v3990, %v4078
        %4080 = vmatmul.bf16.gmra.mxu0 %v2910
        %v4081 = vpop.f32.mrf.mxu0
        %v4082 = vadd.f32 %v3993, %v4081
        %v4083 = vpop.f32.mrf.mxu0
        %v4084 = vadd.f32 %v3995, %v4083
        %4085 = vmatmul.bf16.gmra.mxu0 %v2922
        %v4086 = vpop.f32.mrf.mxu0
        %v4087 = vadd.f32 %v3998, %v4086
        %v4088 = vpop.f32.mrf.mxu0
        %v4089 = vadd.f32 %v4000, %v4088
        %4090 = vmatmul.bf16.gmra.mxu0 %v2934
        %v4091 = vpop.f32.mrf.mxu0
        %v4092 = vadd.f32 %v4003, %v4091
        %v4093 = vpop.f32.mrf.mxu0
        %v4094 = vadd.f32 %v4005, %v4093
        %4095 = vmatmul.bf16.gmra.mxu0 %v2946
        %v4096 = vpop.f32.mrf.mxu0
        %v4097 = vadd.f32 %v4008, %v4096
        %v4098 = vpop.f32.mrf.mxu0
        %v4099 = vadd.f32 %v4010, %v4098
        %4100 = vmatmul.bf16.gmra.mxu0 %v2958
        %v4101 = vpop.f32.mrf.mxu0
        %v4102 = vadd.f32 %v4013, %v4101
        %v4103 = vpop.f32.mrf.mxu0
        %v4104 = vadd.f32 %v4015, %v4103
        %4105 = vmatmul.bf16.gmra.mxu0 %v2970
        %v4106 = vpop.f32.mrf.mxu0
        %v4107 = vadd.f32 %v4018, %v4106
        %v4108 = vpop.f32.mrf.mxu0
        %v4109 = vadd.f32 %v4020, %v4108
        %4110 = vmatmul.bf16.gmra.mxu0 %v3087
        %v4111 = vpop.f32.mrf.mxu0
        %v4112 = vadd.f32 %v4023, %v4111
        %v4113 = vpop.f32.mrf.mxu0
        %v4114 = vadd.f32 %v4025, %v4113
        %4115 = vdwg.mxu0
        %4116 = vmatpush.bf16.msra.mxu0 %v3574
        %4117 = vmatpush.bf16.msra.mxu0 %v3573
        %4118 = vmatpush.bf16.msra.mxu0 %v3572
        %4119 = vmatpush.bf16.msra.mxu0 %v3571
        %4120 = vmatpush.bf16.msra.mxu0 %v3570
        %4121 = vmatpush.bf16.msra.mxu0 %v3569
        %4122 = vmatpush.bf16.msra.mxu0 %v3568
        %4123 = vmatpush.bf16.msra.mxu0 %v3567
        %4124 = vmatmul.bf16.gmra.mxu0 %v3018
        %v4125 = vpop.f32.mrf.mxu0
        %v4126 = vadd.f32 %v4037, %v4125
        %v4127 = vpop.f32.mrf.mxu0
        %v4128 = vadd.f32 %v4039, %v4127
        %4129 = vmatmul.bf16.gmra.mxu0 %v3021
        %v4130 = vpop.f32.mrf.mxu0
        %v4131 = vadd.f32 %v4042, %v4130
        %v4132 = vpop.f32.mrf.mxu0
        %v4133 = vadd.f32 %v4044, %v4132
        %4134 = vmatmul.bf16.gmra.mxu0 %v3024
        %v4135 = vpop.f32.mrf.mxu0
        %v4136 = vadd.f32 %v4047, %v4135
        %v4137 = vpop.f32.mrf.mxu0
        %v4138 = vadd.f32 %v4049, %v4137
        %4139 = vmatmul.bf16.gmra.mxu0 %v3027
        %v4140 = vpop.f32.mrf.mxu0
        %v4141 = vadd.f32 %v4052, %v4140
        %v4142 = vpop.f32.mrf.mxu0
        %v4143 = vadd.f32 %v4054, %v4142
        %4144 = vmatmul.bf16.gmra.mxu0 %v3030
        %v4145 = vpop.f32.mrf.mxu0
        %v4146 = vadd.f32 %v4057, %v4145
        %v4147 = vpop.f32.mrf.mxu0
        %v4148 = vadd.f32 %v4059, %v4147
        %4149 = vmatmul.bf16.gmra.mxu0 %v3033
        %v4150 = vpop.f32.mrf.mxu0
        %v4151 = vadd.f32 %v4062, %v4150
        %v4152 = vpop.f32.mrf.mxu0
        %v4153 = vadd.f32 %v4064, %v4152
        %4154 = vmatmul.bf16.gmra.mxu0 %v3036
        %v4155 = vpop.f32.mrf.mxu0
        %v4156 = vadd.f32 %v4067, %v4155
        %v4157 = vpop.f32.mrf.mxu0
        %v4158 = vadd.f32 %v4069, %v4157
        %4159 = vmatmul.bf16.gmra.mxu0 %v3039
        %v4160 = vpop.f32.mrf.mxu0
        %v4161 = vadd.f32 %v4072, %v4160
        %v4162 = vpop.f32.mrf.mxu0
        %v4163 = vadd.f32 %v4074, %v4162
        %4164 = vmatmul.bf16.gmra.mxu0 %v3042
        %v4165 = vpop.f32.mrf.mxu0
        %v4166 = vadd.f32 %v4077, %v4165
        %v4167 = vpop.f32.mrf.mxu0
        %v4168 = vadd.f32 %v4079, %v4167
        %4169 = vmatmul.bf16.gmra.mxu0 %v3045
        %v4170 = vpop.f32.mrf.mxu0
        %v4171 = vadd.f32 %v4082, %v4170
        %v4172 = vpop.f32.mrf.mxu0
        %v4173 = vadd.f32 %v4084, %v4172
        %4174 = vmatmul.bf16.gmra.mxu0 %v3048
        %v4175 = vpop.f32.mrf.mxu0
        %v4176 = vadd.f32 %v4087, %v4175
        %v4177 = vpop.f32.mrf.mxu0
        %v4178 = vadd.f32 %v4089, %v4177
        %4179 = vmatmul.bf16.gmra.mxu0 %v3051
        %v4180 = vpop.f32.mrf.mxu0
        %v4181 = vadd.f32 %v4092, %v4180
        %v4182 = vpop.f32.mrf.mxu0
        %v4183 = vadd.f32 %v4094, %v4182
        %4184 = vmatmul.bf16.gmra.mxu0 %v3054
        %v4185 = vpop.f32.mrf.mxu0
        %v4186 = vadd.f32 %v4097, %v4185
        %v4187 = vpop.f32.mrf.mxu0
        %v4188 = vadd.f32 %v4099, %v4187
        %4189 = vmatmul.bf16.gmra.mxu0 %v3057
        %v4190 = vpop.f32.mrf.mxu0
        %v4191 = vadd.f32 %v4102, %v4190
        %v4192 = vpop.f32.mrf.mxu0
        %v4193 = vadd.f32 %v4104, %v4192
        %4194 = vmatmul.bf16.gmra.mxu0 %v3060
        %v4195 = vpop.f32.mrf.mxu0
        %v4196 = vadd.f32 %v4107, %v4195
        %v4197 = vpop.f32.mrf.mxu0
        %v4198 = vadd.f32 %v4109, %v4197
        %4199 = vmatmul.bf16.gmra.mxu0 %v3093
        %v4200 = vpop.f32.mrf.mxu0
        %v4201 = vadd.f32 %v4112, %v4200
        %v4202 = vpop.f32.mrf.mxu0
        %v4203 = vadd.f32 %v4114, %v4202
        %4204 = vdwg.mxu0
        %4205 = vmatpush.bf16.msra.mxu0 %v3582
        %4206 = vmatpush.bf16.msra.mxu0 %v3581
        %4207 = vmatpush.bf16.msra.mxu0 %v3580
        %4208 = vmatpush.bf16.msra.mxu0 %v3579
        %4209 = vmatpush.bf16.msra.mxu0 %v3578
        %4210 = vmatpush.bf16.msra.mxu0 %v3577
        %4211 = vmatpush.bf16.msra.mxu0 %v3576
        %4212 = vmatpush.bf16.msra.mxu0 %v3575
        %4213 = vmatmul.bf16.gmra.mxu0 %v2760
        %v4214 = vpop.f32.mrf.mxu0
        %v4215 = vadd.f32 %v4126, %v4214
        %v4216 = vpop.f32.mrf.mxu0
        %v4217 = vadd.f32 %v4128, %v4216
        %4218 = vmatmul.bf16.gmra.mxu0 %v2761
        %v4219 = vpop.f32.mrf.mxu0
        %v4220 = vadd.f32 %v4131, %v4219
        %v4221 = vpop.f32.mrf.mxu0
        %v4222 = vadd.f32 %v4133, %v4221
        %4223 = vmatmul.bf16.gmra.mxu0 %v2762
        %v4224 = vpop.f32.mrf.mxu0
        %v4225 = vadd.f32 %v4136, %v4224
        %v4226 = vpop.f32.mrf.mxu0
        %v4227 = vadd.f32 %v4138, %v4226
        %4228 = vmatmul.bf16.gmra.mxu0 %v2763
        %v4229 = vpop.f32.mrf.mxu0
        %v4230 = vadd.f32 %v4141, %v4229
        %v4231 = vpop.f32.mrf.mxu0
        %v4232 = vadd.f32 %v4143, %v4231
        %4233 = vmatmul.bf16.gmra.mxu0 %v2764
        %v4234 = vpop.f32.mrf.mxu0
        %v4235 = vadd.f32 %v4146, %v4234
        %v4236 = vpop.f32.mrf.mxu0
        %v4237 = vadd.f32 %v4148, %v4236
        %4238 = vmatmul.bf16.gmra.mxu0 %v2765
        %v4239 = vpop.f32.mrf.mxu0
        %v4240 = vadd.f32 %v4151, %v4239
        %v4241 = vpop.f32.mrf.mxu0
        %v4242 = vadd.f32 %v4153, %v4241
        %4243 = vmatmul.bf16.gmra.mxu0 %v2766
        %v4244 = vpop.f32.mrf.mxu0
        %v4245 = vadd.f32 %v4156, %v4244
        %v4246 = vpop.f32.mrf.mxu0
        %v4247 = vadd.f32 %v4158, %v4246
        %4248 = vmatmul.bf16.gmra.mxu0 %v2767
        %v4249 = vpop.f32.mrf.mxu0
        %v4250 = vadd.f32 %v4161, %v4249
        %v4251 = vpop.f32.mrf.mxu0
        %v4252 = vadd.f32 %v4163, %v4251
        %4253 = vmatmul.bf16.gmra.mxu0 %v2768
        %v4254 = vpop.f32.mrf.mxu0
        %v4255 = vadd.f32 %v4166, %v4254
        %v4256 = vpop.f32.mrf.mxu0
        %v4257 = vadd.f32 %v4168, %v4256
        %4258 = vmatmul.bf16.gmra.mxu0 %v2769
        %v4259 = vpop.f32.mrf.mxu0
        %v4260 = vadd.f32 %v4171, %v4259
        %v4261 = vpop.f32.mrf.mxu0
        %v4262 = vadd.f32 %v4173, %v4261
        %4263 = vmatmul.bf16.gmra.mxu0 %v2770
        %v4264 = vpop.f32.mrf.mxu0
        %v4265 = vadd.f32 %v4176, %v4264
        %v4266 = vpop.f32.mrf.mxu0
        %v4267 = vadd.f32 %v4178, %v4266
        %4268 = vmatmul.bf16.gmra.mxu0 %v2771
        %v4269 = vpop.f32.mrf.mxu0
        %v4270 = vadd.f32 %v4181, %v4269
        %v4271 = vpop.f32.mrf.mxu0
        %v4272 = vadd.f32 %v4183, %v4271
        %4273 = vmatmul.bf16.gmra.mxu0 %v2772
        %v4274 = vpop.f32.mrf.mxu0
        %v4275 = vadd.f32 %v4186, %v4274
        %v4276 = vpop.f32.mrf.mxu0
        %v4277 = vadd.f32 %v4188, %v4276
        %4278 = vmatmul.bf16.gmra.mxu0 %v2773
        %v4279 = vpop.f32.mrf.mxu0
        %v4280 = vadd.f32 %v4191, %v4279
        %v4281 = vpop.f32.mrf.mxu0
        %v4282 = vadd.f32 %v4193, %v4281
        %4283 = vmatmul.bf16.gmra.mxu0 %v2774
        %v4284 = vpop.f32.mrf.mxu0
        %v4285 = vadd.f32 %v4196, %v4284
        %v4286 = vpop.f32.mrf.mxu0
        %v4287 = vadd.f32 %v4198, %v4286
        %4288 = vmatmul.bf16.gmra.mxu0 %v663
        %v4289 = vpop.f32.mrf.mxu0
        %v4290 = vadd.f32 %v4201, %v4289
        %v4291 = vpop.f32.mrf.mxu0
        %v4292 = vadd.f32 %v4203, %v4291
        %4293 = vdwg.mxu0
        %4294 = vmatpush.bf16.msra.mxu0 %v3590
        %4295 = vmatpush.bf16.msra.mxu0 %v3589
        %4296 = vmatpush.bf16.msra.mxu0 %v3588
        %4297 = vmatpush.bf16.msra.mxu0 %v3587
        %4298 = vmatpush.bf16.msra.mxu0 %v3586
        %4299 = vmatpush.bf16.msra.mxu0 %v3585
        %4300 = vmatpush.bf16.msra.mxu0 %v3584
        %4301 = vmatpush.bf16.msra.mxu0 %v3583
        %4302 = vmatmul.bf16.gmra.mxu0 %v2814
        %v4303 = vpop.f32.mrf.mxu0
        %v4304 = vadd.f32 %v4215, %v4303
        %v4305 = vpop.f32.mrf.mxu0
        %v4306 = vadd.f32 %v4217, %v4305
        %4307 = vmatmul.bf16.gmra.mxu0 %v2826
        %v4308 = vpop.f32.mrf.mxu0
        %v4309 = vadd.f32 %v4220, %v4308
        %v4310 = vpop.f32.mrf.mxu0
        %v4311 = vadd.f32 %v4222, %v4310
        %4312 = vmatmul.bf16.gmra.mxu0 %v2838
        %v4313 = vpop.f32.mrf.mxu0
        %v4314 = vadd.f32 %v4225, %v4313
        %v4315 = vpop.f32.mrf.mxu0
        %v4316 = vadd.f32 %v4227, %v4315
        %4317 = vmatmul.bf16.gmra.mxu0 %v2850
        %v4318 = vpop.f32.mrf.mxu0
        %v4319 = vadd.f32 %v4230, %v4318
        %v4320 = vpop.f32.mrf.mxu0
        %v4321 = vadd.f32 %v4232, %v4320
        %4322 = vmatmul.bf16.gmra.mxu0 %v2862
        %v4323 = vpop.f32.mrf.mxu0
        %v4324 = vadd.f32 %v4235, %v4323
        %v4325 = vpop.f32.mrf.mxu0
        %v4326 = vadd.f32 %v4237, %v4325
        %4327 = vmatmul.bf16.gmra.mxu0 %v2874
        %v4328 = vpop.f32.mrf.mxu0
        %v4329 = vadd.f32 %v4240, %v4328
        %v4330 = vpop.f32.mrf.mxu0
        %v4331 = vadd.f32 %v4242, %v4330
        %4332 = vmatmul.bf16.gmra.mxu0 %v2886
        %v4333 = vpop.f32.mrf.mxu0
        %v4334 = vadd.f32 %v4245, %v4333
        %v4335 = vpop.f32.mrf.mxu0
        %v4336 = vadd.f32 %v4247, %v4335
        %4337 = vmatmul.bf16.gmra.mxu0 %v2898
        %v4338 = vpop.f32.mrf.mxu0
        %v4339 = vadd.f32 %v4250, %v4338
        %v4340 = vpop.f32.mrf.mxu0
        %v4341 = vadd.f32 %v4252, %v4340
        %4342 = vmatmul.bf16.gmra.mxu0 %v2910
        %v4343 = vpop.f32.mrf.mxu0
        %v4344 = vadd.f32 %v4255, %v4343
        %v4345 = vpop.f32.mrf.mxu0
        %v4346 = vadd.f32 %v4257, %v4345
        %4347 = vmatmul.bf16.gmra.mxu0 %v2922
        %v4348 = vpop.f32.mrf.mxu0
        %v4349 = vadd.f32 %v4260, %v4348
        %v4350 = vpop.f32.mrf.mxu0
        %v4351 = vadd.f32 %v4262, %v4350
        %4352 = vmatmul.bf16.gmra.mxu0 %v2934
        %v4353 = vpop.f32.mrf.mxu0
        %v4354 = vadd.f32 %v4265, %v4353
        %v4355 = vpop.f32.mrf.mxu0
        %v4356 = vadd.f32 %v4267, %v4355
        %4357 = vmatmul.bf16.gmra.mxu0 %v2946
        %v4358 = vpop.f32.mrf.mxu0
        %v4359 = vadd.f32 %v4270, %v4358
        %v4360 = vpop.f32.mrf.mxu0
        %v4361 = vadd.f32 %v4272, %v4360
        %4362 = vmatmul.bf16.gmra.mxu0 %v2958
        %v4363 = vpop.f32.mrf.mxu0
        %v4364 = vadd.f32 %v4275, %v4363
        %v4365 = vpop.f32.mrf.mxu0
        %v4366 = vadd.f32 %v4277, %v4365
        %4367 = vmatmul.bf16.gmra.mxu0 %v2970
        %v4368 = vpop.f32.mrf.mxu0
        %v4369 = vadd.f32 %v4280, %v4368
        %v4370 = vpop.f32.mrf.mxu0
        %v4371 = vadd.f32 %v4282, %v4370
        %4372 = vmatmul.bf16.gmra.mxu0 %v3087
        %v4373 = vpop.f32.mrf.mxu0
        %v4374 = vadd.f32 %v4285, %v4373
        %v4375 = vpop.f32.mrf.mxu0
        %v4376 = vadd.f32 %v4287, %v4375
        %4377 = vmatmul.bf16.gmra.mxu0 %v709
        %v4378 = vpop.f32.mrf.mxu0
        %v4379 = vadd.f32 %v4290, %v4378
        %v4380 = vpop.f32.mrf.mxu0
        %v4381 = vadd.f32 %v4292, %v4380
        %4382 = vdwg.mxu0
        %4383 = vmatpush.bf16.msra.mxu0 %v3598
        %4384 = vmatpush.bf16.msra.mxu0 %v3597
        %4385 = vmatpush.bf16.msra.mxu0 %v3596
        %4386 = vmatpush.bf16.msra.mxu0 %v3595
        %4387 = vmatpush.bf16.msra.mxu0 %v3594
        %4388 = vmatpush.bf16.msra.mxu0 %v3593
        %4389 = vmatpush.bf16.msra.mxu0 %v3592
        %4390 = vmatpush.bf16.msra.mxu0 %v3591
        %4391 = vmatmul.bf16.gmra.mxu0 %v3021
        %v4392 = vpop.f32.mrf.mxu0
        %v4393 = vadd.f32 %v4304, %v4392
        %v4394 = vpop.f32.mrf.mxu0
        %v4395 = vadd.f32 %v4306, %v4394
        %4396 = vmatmul.bf16.gmra.mxu0 %v3024
        %v4397 = vpop.f32.mrf.mxu0
        %v4398 = vadd.f32 %v4309, %v4397
        %v4399 = vpop.f32.mrf.mxu0
        %v4400 = vadd.f32 %v4311, %v4399
        %4401 = vmatmul.bf16.gmra.mxu0 %v3027
        %v4402 = vpop.f32.mrf.mxu0
        %v4403 = vadd.f32 %v4314, %v4402
        %v4404 = vpop.f32.mrf.mxu0
        %v4405 = vadd.f32 %v4316, %v4404
        %4406 = vmatmul.bf16.gmra.mxu0 %v3030
        %v4407 = vpop.f32.mrf.mxu0
        %v4408 = vadd.f32 %v4319, %v4407
        %v4409 = vpop.f32.mrf.mxu0
        %v4410 = vadd.f32 %v4321, %v4409
        %4411 = vmatmul.bf16.gmra.mxu0 %v3033
        %v4412 = vpop.f32.mrf.mxu0
        %v4413 = vadd.f32 %v4324, %v4412
        %v4414 = vpop.f32.mrf.mxu0
        %v4415 = vadd.f32 %v4326, %v4414
        %4416 = vmatmul.bf16.gmra.mxu0 %v3036
        %v4417 = vpop.f32.mrf.mxu0
        %v4418 = vadd.f32 %v4329, %v4417
        %v4419 = vpop.f32.mrf.mxu0
        %v4420 = vadd.f32 %v4331, %v4419
        %4421 = vmatmul.bf16.gmra.mxu0 %v3039
        %v4422 = vpop.f32.mrf.mxu0
        %v4423 = vadd.f32 %v4334, %v4422
        %v4424 = vpop.f32.mrf.mxu0
        %v4425 = vadd.f32 %v4336, %v4424
        %4426 = vmatmul.bf16.gmra.mxu0 %v3042
        %v4427 = vpop.f32.mrf.mxu0
        %v4428 = vadd.f32 %v4339, %v4427
        %v4429 = vpop.f32.mrf.mxu0
        %v4430 = vadd.f32 %v4341, %v4429
        %4431 = vmatmul.bf16.gmra.mxu0 %v3045
        %v4432 = vpop.f32.mrf.mxu0
        %v4433 = vadd.f32 %v4344, %v4432
        %v4434 = vpop.f32.mrf.mxu0
        %v4435 = vadd.f32 %v4346, %v4434
        %4436 = vmatmul.bf16.gmra.mxu0 %v3048
        %v4437 = vpop.f32.mrf.mxu0
        %v4438 = vadd.f32 %v4349, %v4437
        %v4439 = vpop.f32.mrf.mxu0
        %v4440 = vadd.f32 %v4351, %v4439
        %4441 = vmatmul.bf16.gmra.mxu0 %v3051
        %v4442 = vpop.f32.mrf.mxu0
        %v4443 = vadd.f32 %v4354, %v4442
        %v4444 = vpop.f32.mrf.mxu0
        %v4445 = vadd.f32 %v4356, %v4444
        %4446 = vmatmul.bf16.gmra.mxu0 %v3054
        %v4447 = vpop.f32.mrf.mxu0
        %v4448 = vadd.f32 %v4359, %v4447
        %v4449 = vpop.f32.mrf.mxu0
        %v4450 = vadd.f32 %v4361, %v4449
        %4451 = vmatmul.bf16.gmra.mxu0 %v3057
        %v4452 = vpop.f32.mrf.mxu0
        %v4453 = vadd.f32 %v4364, %v4452
        %v4454 = vpop.f32.mrf.mxu0
        %v4455 = vadd.f32 %v4366, %v4454
        %4456 = vmatmul.bf16.gmra.mxu0 %v3060
        %v4457 = vpop.f32.mrf.mxu0
        %v4458 = vadd.f32 %v4369, %v4457
        %v4459 = vpop.f32.mrf.mxu0
        %v4460 = vadd.f32 %v4371, %v4459
        %4461 = vmatmul.bf16.gmra.mxu0 %v3093
        %v4462 = vpop.f32.mrf.mxu0
        %v4463 = vadd.f32 %v4374, %v4462
        %v4464 = vpop.f32.mrf.mxu0
        %v4465 = vadd.f32 %v4376, %v4464
        %4466 = vmatmul.bf16.gmra.mxu0 %v941
        %v4467 = vpop.f32.mrf.mxu0
        %v4468 = vadd.f32 %v4379, %v4467
        %v4469 = vpop.f32.mrf.mxu0
        %v4470 = vadd.f32 %v4381, %v4469
        %4471 = vdwg.mxu0
        %v4472 = vld [vmem:[%s5] sm:$0x1]
        %v4474 = vperm.slane %v4472, 0
        %v4476 = vmul.f32 %v4393, %v4474
        %v4477 = vmul.f32 %v4395, %v4474
        %v4478 = vmul.f32 %v4398, %v4474
        %v4479 = vmul.f32 %v4400, %v4474
        %v4480 = vmul.f32 %v4403, %v4474
        %v4481 = vmul.f32 %v4405, %v4474
        %v4482 = vmul.f32 %v4408, %v4474
        %v4483 = vmul.f32 %v4410, %v4474
        %v4484 = vmul.f32 %v4413, %v4474
        %v4485 = vmul.f32 %v4415, %v4474
        %v4486 = vmul.f32 %v4418, %v4474
        %v4487 = vmul.f32 %v4420, %v4474
        %v4488 = vmul.f32 %v4423, %v4474
        %v4489 = vmul.f32 %v4425, %v4474
        %v4490 = vmul.f32 %v4428, %v4474
        %v4491 = vmul.f32 %v4430, %v4474
        %v4492 = vmul.f32 %v4433, %v4474
        %v4493 = vmul.f32 %v4435, %v4474
        %v4494 = vmul.f32 %v4438, %v4474
        %v4495 = vmul.f32 %v4440, %v4474
        %v4496 = vmul.f32 %v4443, %v4474
        %v4497 = vmul.f32 %v4445, %v4474
        %v4498 = vmul.f32 %v4448, %v4474
        %v4499 = vmul.f32 %v4450, %v4474
        %v4500 = vmul.f32 %v4453, %v4474
        %v4501 = vmul.f32 %v4455, %v4474
        %v4502 = vmul.f32 %v4458, %v4474
        %v4503 = vmul.f32 %v4460, %v4474
        %v4504 = vmul.f32 %v4463, %v4474
        %v4505 = vmul.f32 %v4465, %v4474
        %v4506 = vmul.f32 %v4468, %v4474
        %v4507 = vmul.f32 %v4470, %v4474
        %v4508 = vld [vmem:[%s6] sm:$0x1]
        %v4510 = vperm.slane %v4508, 0
        %v4512 = vadd.f32 %v4476, %v4510
        %v4513 = vadd.f32 %v4477, %v4510
        %v4514 = vadd.f32 %v4478, %v4510
        %v4515 = vadd.f32 %v4479, %v4510
        %v4516 = vadd.f32 %v4480, %v4510
        %v4517 = vadd.f32 %v4481, %v4510
        %v4518 = vadd.f32 %v4482, %v4510
        %v4519 = vadd.f32 %v4483, %v4510
        %v4520 = vadd.f32 %v4484, %v4510
        %v4521 = vadd.f32 %v4485, %v4510
        %v4522 = vadd.f32 %v4486, %v4510
        %v4523 = vadd.f32 %v4487, %v4510
        %v4524 = vadd.f32 %v4488, %v4510
        %v4525 = vadd.f32 %v4489, %v4510
        %v4526 = vadd.f32 %v4490, %v4510
        %v4527 = vadd.f32 %v4491, %v4510
        %v4528 = vadd.f32 %v4492, %v4510
        %v4529 = vadd.f32 %v4493, %v4510
        %v4530 = vadd.f32 %v4494, %v4510
        %v4531 = vadd.f32 %v4495, %v4510
        %v4532 = vadd.f32 %v4496, %v4510
        %v4533 = vadd.f32 %v4497, %v4510
        %v4534 = vadd.f32 %v4498, %v4510
        %v4535 = vadd.f32 %v4499, %v4510
        %v4536 = vadd.f32 %v4500, %v4510
        %v4537 = vadd.f32 %v4501, %v4510
        %v4538 = vadd.f32 %v4502, %v4510
        %v4539 = vadd.f32 %v4503, %v4510
        %v4540 = vadd.f32 %v4504, %v4510
        %v4541 = vadd.f32 %v4505, %v4510
        %v4542 = vadd.f32 %v4506, %v4510
        %v4543 = vadd.f32 %v4507, %v4510
        %v4544 = vmax.f32 %v4512, 0.0
        %v4545 = vmax.f32 %v4513, 0.0
        %v4546 = vmax.f32 %v4514, 0.0
        %v4547 = vmax.f32 %v4515, 0.0
        %v4548 = vmax.f32 %v4516, 0.0
        %v4549 = vmax.f32 %v4517, 0.0
        %v4550 = vmax.f32 %v4518, 0.0
        %v4551 = vmax.f32 %v4519, 0.0
        %v4552 = vmax.f32 %v4520, 0.0
        %v4553 = vmax.f32 %v4521, 0.0
        %v4554 = vmax.f32 %v4522, 0.0
        %v4555 = vmax.f32 %v4523, 0.0
        %v4556 = vmax.f32 %v4524, 0.0
        %v4557 = vmax.f32 %v4525, 0.0
        %v4558 = vmax.f32 %v4526, 0.0
        %v4559 = vmax.f32 %v4527, 0.0
        %v4560 = vmax.f32 %v4528, 0.0
        %v4561 = vmax.f32 %v4529, 0.0
        %v4562 = vmax.f32 %v4530, 0.0
        %v4563 = vmax.f32 %v4531, 0.0
        %v4564 = vmax.f32 %v4532, 0.0
        %v4565 = vmax.f32 %v4533, 0.0
        %v4566 = vmax.f32 %v4534, 0.0
        %v4567 = vmax.f32 %v4535, 0.0
        %v4568 = vmax.f32 %v4536, 0.0
        %v4569 = vmax.f32 %v4537, 0.0
        %v4570 = vmax.f32 %v4538, 0.0
        %v4571 = vmax.f32 %v4539, 0.0
        %v4572 = vmax.f32 %v4540, 0.0
        %v4573 = vmax.f32 %v4541, 0.0
        %v4574 = vmax.f32 %v4542, 0.0
        %v4575 = vmax.f32 %v4543, 0.0
        %v4576 = vpack.c.bf16 %v4544, %v4544
        %v4577 = vpack.c.bf16 %v4545, %v4545
        %v4578 = vpack.c.bf16 %v4546, %v4546
        %v4579 = vpack.c.bf16 %v4547, %v4547
        %v4580 = vpack.c.bf16 %v4548, %v4548
        %v4581 = vpack.c.bf16 %v4549, %v4549
        %v4582 = vpack.c.bf16 %v4550, %v4550
        %v4583 = vpack.c.bf16 %v4551, %v4551
        %v4584 = vpack.c.bf16 %v4552, %v4552
        %v4585 = vpack.c.bf16 %v4553, %v4553
        %v4586 = vpack.c.bf16 %v4554, %v4554
        %v4587 = vpack.c.bf16 %v4555, %v4555
        %v4588 = vpack.c.bf16 %v4556, %v4556
        %v4589 = vpack.c.bf16 %v4557, %v4557
        %v4590 = vpack.c.bf16 %v4558, %v4558
        %v4591 = vpack.c.bf16 %v4559, %v4559
        %v4592 = vpack.c.bf16 %v4560, %v4560
        %v4593 = vpack.c.bf16 %v4561, %v4561
        %v4594 = vpack.c.bf16 %v4562, %v4562
        %v4595 = vpack.c.bf16 %v4563, %v4563
        %v4596 = vpack.c.bf16 %v4564, %v4564
        %v4597 = vpack.c.bf16 %v4565, %v4565
        %v4598 = vpack.c.bf16 %v4566, %v4566
        %v4599 = vpack.c.bf16 %v4567, %v4567
        %v4600 = vpack.c.bf16 %v4568, %v4568
        %v4601 = vpack.c.bf16 %v4569, %v4569
        %v4602 = vpack.c.bf16 %v4570, %v4570
        %v4603 = vpack.c.bf16 %v4571, %v4571
        %v4604 = vpack.c.bf16 %v4572, %v4572
        %v4605 = vpack.c.bf16 %v4573, %v4573
        %v4606 = vpack.c.bf16 %v4574, %v4574
        %v4607 = vpack.c.bf16 %v4575, %v4575
        %v4640 = vunpack.c.l.b16 %v4576
        %v4641 = vunpack.c.l.b16 %v4577
        %v4642 = vunpack.c.l.b16 %v4578
        %v4643 = vunpack.c.l.b16 %v4579
        %v4644 = vunpack.c.l.b16 %v4580
        %v4645 = vunpack.c.l.b16 %v4581
        %v4646 = vunpack.c.l.b16 %v4582
        %v4647 = vunpack.c.l.b16 %v4583
        %v4648 = vunpack.c.l.b16 %v4584
        %v4649 = vunpack.c.l.b16 %v4585
        %v4650 = vunpack.c.l.b16 %v4586
        %v4651 = vunpack.c.l.b16 %v4587
        %v4652 = vunpack.c.l.b16 %v4588
        %v4653 = vunpack.c.l.b16 %v4589
        %v4654 = vunpack.c.l.b16 %v4590
        %v4655 = vunpack.c.l.b16 %v4591
        %v4656 = vunpack.c.l.b16 %v4592
        %v4657 = vunpack.c.l.b16 %v4593
        %v4658 = vunpack.c.l.b16 %v4594
        %v4659 = vunpack.c.l.b16 %v4595
        %v4660 = vunpack.c.l.b16 %v4596
        %v4661 = vunpack.c.l.b16 %v4597
        %v4662 = vunpack.c.l.b16 %v4598
        %v4663 = vunpack.c.l.b16 %v4599
        %v4664 = vunpack.c.l.b16 %v4600
        %v4665 = vunpack.c.l.b16 %v4601
        %v4666 = vunpack.c.l.b16 %v4602
        %v4667 = vunpack.c.l.b16 %v4603
        %v4668 = vunpack.c.l.b16 %v4604
        %v4669 = vunpack.c.l.b16 %v4605
        %v4670 = vunpack.c.l.b16 %v4606
        %v4671 = vunpack.c.l.b16 %v4607
        %v4672 = vpack.c.b16 %v4641, %v4640
        %v4673 = vpack.c.b16 %v4643, %v4642
        %v4674 = vpack.c.b16 %v4645, %v4644
        %v4675 = vpack.c.b16 %v4647, %v4646
        %v4676 = vpack.c.b16 %v4649, %v4648
        %v4677 = vpack.c.b16 %v4651, %v4650
        %v4678 = vpack.c.b16 %v4653, %v4652
        %v4679 = vpack.c.b16 %v4655, %v4654
        %v4680 = vpack.c.b16 %v4657, %v4656
        %v4681 = vpack.c.b16 %v4659, %v4658
        %v4682 = vpack.c.b16 %v4661, %v4660
        %v4683 = vpack.c.b16 %v4663, %v4662
        %v4684 = vpack.c.b16 %v4665, %v4664
        %v4685 = vpack.c.b16 %v4667, %v4666
        %v4686 = vpack.c.b16 %v4669, %v4668
        %v4687 = vpack.c.b16 %v4671, %v4670
        %v4689 = vshrl.u32 %v4672, 16
        %v4691 = vrot.slane %v4689, 7
        %v4692 = vshll.u32 %v4672, 16
        %v4694 = vor.u32 %v4691, %v4692
        %v4696 = vshrl.u32 %v4673, 16
        %v4698 = vrot.slane %v4696, 7
        %v4699 = vshll.u32 %v4673, 16
        %v4701 = vor.u32 %v4698, %v4699
        %v4703 = vshrl.u32 %v4674, 16
        %v4705 = vrot.slane %v4703, 7
        %v4706 = vshll.u32 %v4674, 16
        %v4708 = vor.u32 %v4705, %v4706
        %v4710 = vshrl.u32 %v4675, 16
        %v4712 = vrot.slane %v4710, 7
        %v4713 = vshll.u32 %v4675, 16
        %v4715 = vor.u32 %v4712, %v4713
        %v4717 = vshrl.u32 %v4676, 16
        %v4719 = vrot.slane %v4717, 7
        %v4720 = vshll.u32 %v4676, 16
        %v4722 = vor.u32 %v4719, %v4720
        %v4724 = vshrl.u32 %v4677, 16
        %v4726 = vrot.slane %v4724, 7
        %v4727 = vshll.u32 %v4677, 16
        %v4729 = vor.u32 %v4726, %v4727
        %v4731 = vshrl.u32 %v4678, 16
        %v4733 = vrot.slane %v4731, 7
        %v4734 = vshll.u32 %v4678, 16
        %v4736 = vor.u32 %v4733, %v4734
        %v4738 = vshrl.u32 %v4679, 16
        %v4740 = vrot.slane %v4738, 7
        %v4741 = vshll.u32 %v4679, 16
        %v4743 = vor.u32 %v4740, %v4741
        %v4745 = vshrl.u32 %v4680, 16
        %v4747 = vrot.slane %v4745, 7
        %v4748 = vshll.u32 %v4680, 16
        %v4750 = vor.u32 %v4747, %v4748
        %v4752 = vshrl.u32 %v4681, 16
        %v4754 = vrot.slane %v4752, 7
        %v4755 = vshll.u32 %v4681, 16
        %v4757 = vor.u32 %v4754, %v4755
        %v4759 = vshrl.u32 %v4682, 16
        %v4761 = vrot.slane %v4759, 7
        %v4762 = vshll.u32 %v4682, 16
        %v4764 = vor.u32 %v4761, %v4762
        %v4766 = vshrl.u32 %v4683, 16
        %v4768 = vrot.slane %v4766, 7
        %v4769 = vshll.u32 %v4683, 16
        %v4771 = vor.u32 %v4768, %v4769
        %v4773 = vshrl.u32 %v4684, 16
        %v4775 = vrot.slane %v4773, 7
        %v4776 = vshll.u32 %v4684, 16
        %v4778 = vor.u32 %v4775, %v4776
        %v4780 = vshrl.u32 %v4685, 16
        %v4782 = vrot.slane %v4780, 7
        %v4783 = vshll.u32 %v4685, 16
        %v4785 = vor.u32 %v4782, %v4783
        %v4787 = vshrl.u32 %v4686, 16
        %v4789 = vrot.slane %v4787, 7
        %v4790 = vshll.u32 %v4686, 16
        %v4792 = vor.u32 %v4789, %v4790
        %v4794 = vshrl.u32 %v4687, 16
        %v4796 = vrot.slane %v4794, 7
        %v4797 = vshll.u32 %v4687, 16
        %v4799 = vor.u32 %v4796, %v4797
        %v4832 = vsel %vm662, 0, %v4694
        %v4833 = vsel %vm662, 0, %v4701
        %v4834 = vsel %vm662, 0, %v4708
        %v4835 = vsel %vm662, 0, %v4715
        %v4836 = vsel %vm662, 0, %v4722
        %v4837 = vsel %vm662, 0, %v4729
        %v4838 = vsel %vm662, 0, %v4736
        %v4839 = vsel %vm662, 0, %v4743
        %v4840 = vsel %vm662, 0, %v4750
        %v4841 = vsel %vm662, 0, %v4757
        %v4842 = vsel %vm662, 0, %v4764
        %v4843 = vsel %vm662, 0, %v4771
        %v4844 = vsel %vm662, 0, %v4778
        %v4845 = vsel %vm662, 0, %v4785
        %v4846 = vsel %vm662, 0, %v4792
        %v4847 = vsel %vm662, 0, %v4799
        %v4848 = vsel %vm662, %v4691, 0
        %v4849 = vsel %vm662, %v4698, 0
        %v4850 = vsel %vm662, %v4705, 0
        %v4851 = vsel %vm662, %v4712, 0
        %v4852 = vsel %vm662, %v4719, 0
        %v4853 = vsel %vm662, %v4726, 0
        %v4854 = vsel %vm662, %v4733, 0
        %v4855 = vsel %vm662, %v4740, 0
        %v4856 = vsel %vm662, %v4747, 0
        %v4857 = vsel %vm662, %v4754, 0
        %v4858 = vsel %vm662, %v4761, 0
        %v4859 = vsel %vm662, %v4768, 0
        %v4860 = vsel %vm662, %v4775, 0
        %v4861 = vsel %vm662, %v4782, 0
        %v4862 = vsel %vm662, %v4789, 0
        %v4863 = vsel %vm662, %v4796, 0
        %v4865 = vshrl.u32 %v4832, 16
        %v4867 = vshll.u32 %v4832, 16
        %v4869 = vrot.slane %v4867, 1
        %v4870 = vor.u32 %v4865, %v4869
        %v4872 = vshll.u32 %v4848, 16
        %v4874 = vrot.slane %v4872, 1
        %v4875 = vsel %vm697, %v4870, %v4874
        %v4877 = vshrl.u32 %v4833, 16
        %v4879 = vshll.u32 %v4833, 16
        %v4881 = vrot.slane %v4879, 1
        %v4882 = vor.u32 %v4877, %v4881
        %v4884 = vshll.u32 %v4849, 16
        %v4886 = vrot.slane %v4884, 1
        %v4887 = vsel %vm697, %v4882, %v4886
        %v4889 = vshrl.u32 %v4834, 16
        %v4891 = vshll.u32 %v4834, 16
        %v4893 = vrot.slane %v4891, 1
        %v4894 = vor.u32 %v4889, %v4893
        %v4896 = vshll.u32 %v4850, 16
        %v4898 = vrot.slane %v4896, 1
        %v4899 = vsel %vm697, %v4894, %v4898
        %v4901 = vshrl.u32 %v4835, 16
        %v4903 = vshll.u32 %v4835, 16
        %v4905 = vrot.slane %v4903, 1
        %v4906 = vor.u32 %v4901, %v4905
        %v4908 = vshll.u32 %v4851, 16
        %v4910 = vrot.slane %v4908, 1
        %v4911 = vsel %vm697, %v4906, %v4910
        %v4913 = vshrl.u32 %v4836, 16
        %v4915 = vshll.u32 %v4836, 16
        %v4917 = vrot.slane %v4915, 1
        %v4918 = vor.u32 %v4913, %v4917
        %v4920 = vshll.u32 %v4852, 16
        %v4922 = vrot.slane %v4920, 1
        %v4923 = vsel %vm697, %v4918, %v4922
        %v4925 = vshrl.u32 %v4837, 16
        %v4927 = vshll.u32 %v4837, 16
        %v4929 = vrot.slane %v4927, 1
        %v4930 = vor.u32 %v4925, %v4929
        %v4932 = vshll.u32 %v4853, 16
        %v4934 = vrot.slane %v4932, 1
        %v4935 = vsel %vm697, %v4930, %v4934
        %v4937 = vshrl.u32 %v4838, 16
        %v4939 = vshll.u32 %v4838, 16
        %v4941 = vrot.slane %v4939, 1
        %v4942 = vor.u32 %v4937, %v4941
        %v4944 = vshll.u32 %v4854, 16
        %v4946 = vrot.slane %v4944, 1
        %v4947 = vsel %vm697, %v4942, %v4946
        %v4949 = vshrl.u32 %v4839, 16
        %v4951 = vshll.u32 %v4839, 16
        %v4953 = vrot.slane %v4951, 1
        %v4954 = vor.u32 %v4949, %v4953
        %v4956 = vshll.u32 %v4855, 16
        %v4958 = vrot.slane %v4956, 1
        %v4959 = vsel %vm697, %v4954, %v4958
        %v4961 = vshrl.u32 %v4840, 16
        %v4963 = vshll.u32 %v4840, 16
        %v4965 = vrot.slane %v4963, 1
        %v4966 = vor.u32 %v4961, %v4965
        %v4968 = vshll.u32 %v4856, 16
        %v4970 = vrot.slane %v4968, 1
        %v4971 = vsel %vm697, %v4966, %v4970
        %v4973 = vshrl.u32 %v4841, 16
        %v4975 = vshll.u32 %v4841, 16
        %v4977 = vrot.slane %v4975, 1
        %v4978 = vor.u32 %v4973, %v4977
        %v4980 = vshll.u32 %v4857, 16
        %v4982 = vrot.slane %v4980, 1
        %v4983 = vsel %vm697, %v4978, %v4982
        %v4985 = vshrl.u32 %v4842, 16
        %v4987 = vshll.u32 %v4842, 16
        %v4989 = vrot.slane %v4987, 1
        %v4990 = vor.u32 %v4985, %v4989
        %v4992 = vshll.u32 %v4858, 16
        %v4994 = vrot.slane %v4992, 1
        %v4995 = vsel %vm697, %v4990, %v4994
        %v4997 = vshrl.u32 %v4843, 16
        %v4999 = vshll.u32 %v4843, 16
        %v5001 = vrot.slane %v4999, 1
        %v5002 = vor.u32 %v4997, %v5001
        %v5004 = vshll.u32 %v4859, 16
        %v5006 = vrot.slane %v5004, 1
        %v5007 = vsel %vm697, %v5002, %v5006
        %v5009 = vshrl.u32 %v4844, 16
        %v5011 = vshll.u32 %v4844, 16
        %v5013 = vrot.slane %v5011, 1
        %v5014 = vor.u32 %v5009, %v5013
        %v5016 = vshll.u32 %v4860, 16
        %v5018 = vrot.slane %v5016, 1
        %v5019 = vsel %vm697, %v5014, %v5018
        %v5021 = vshrl.u32 %v4845, 16
        %v5023 = vshll.u32 %v4845, 16
        %v5025 = vrot.slane %v5023, 1
        %v5026 = vor.u32 %v5021, %v5025
        %v5028 = vshll.u32 %v4861, 16
        %v5030 = vrot.slane %v5028, 1
        %v5031 = vsel %vm697, %v5026, %v5030
        %v5033 = vshrl.u32 %v4846, 16
        %v5035 = vshll.u32 %v4846, 16
        %v5037 = vrot.slane %v5035, 1
        %v5038 = vor.u32 %v5033, %v5037
        %v5040 = vshll.u32 %v4862, 16
        %v5042 = vrot.slane %v5040, 1
        %v5043 = vsel %vm697, %v5038, %v5042
        %v5089 = vrot.slane %v4832, 1
        %v5090 = vrot.slane %v4848, 1
        %v5091 = vsel %vm938, %v5089, %v5090
        %v5092 = vrot.slane %v4833, 1
        %v5093 = vrot.slane %v4849, 1
        %v5094 = vsel %vm938, %v5092, %v5093
        %v5095 = vrot.slane %v4834, 1
        %v5096 = vrot.slane %v4850, 1
        %v5097 = vsel %vm938, %v5095, %v5096
        %v5098 = vrot.slane %v4835, 1
        %v5099 = vrot.slane %v4851, 1
        %v5100 = vsel %vm938, %v5098, %v5099
        %v5101 = vrot.slane %v4836, 1
        %v5102 = vrot.slane %v4852, 1
        %v5103 = vsel %vm938, %v5101, %v5102
        %v5104 = vrot.slane %v4837, 1
        %v5105 = vrot.slane %v4853, 1
        %v5106 = vsel %vm938, %v5104, %v5105
        %v5107 = vrot.slane %v4838, 1
        %v5108 = vrot.slane %v4854, 1
        %v5109 = vsel %vm938, %v5107, %v5108
        %v5110 = vrot.slane %v4839, 1
        %v5111 = vrot.slane %v4855, 1
        %v5112 = vsel %vm938, %v5110, %v5111
        %v5113 = vrot.slane %v4840, 1
        %v5114 = vrot.slane %v4856, 1
        %v5115 = vsel %vm938, %v5113, %v5114
        %v5116 = vrot.slane %v4841, 1
        %v5117 = vrot.slane %v4857, 1
        %v5118 = vsel %vm938, %v5116, %v5117
        %v5119 = vrot.slane %v4842, 1
        %v5120 = vrot.slane %v4858, 1
        %v5121 = vsel %vm938, %v5119, %v5120
        %v5122 = vrot.slane %v4843, 1
        %v5123 = vrot.slane %v4859, 1
        %v5124 = vsel %vm938, %v5122, %v5123
        %v5125 = vrot.slane %v4844, 1
        %v5126 = vrot.slane %v4860, 1
        %v5127 = vsel %vm938, %v5125, %v5126
        %v5128 = vrot.slane %v4845, 1
        %v5129 = vrot.slane %v4861, 1
        %v5130 = vsel %vm938, %v5128, %v5129
        %v5131 = vrot.slane %v4846, 1
        %v5132 = vrot.slane %v4862, 1
        %v5133 = vsel %vm938, %v5131, %v5132
        %v5150 = vshrl.u32 %v4847, 16
        %v5152 = vshll.u32 %v4847, 16
        %v5154 = vrot.slane %v5152, 1
        %v5155 = vor.u32 %v5150, %v5154
        %v5157 = vshll.u32 %v4863, 16
        %v5159 = vrot.slane %v5157, 1
        %v5160 = vsel %vm697, %v5155, %v5159
        %v5164 = vrot.slane %v4847, 1
        %v5165 = vrot.slane %v4863, 1
        %v5166 = vsel %vm938, %v5164, %v5165
        %v5168 = vld [vmem:[#allocation4] sm:$0xf]
        %v5169 = vld [vmem:[#allocation4 + $0x4] sm:$0xf]
        %v5170 = vld [vmem:[#allocation4 + $0x8] sm:$0xf]
        %v5171 = vld [vmem:[#allocation4 + $0xc] sm:$0xf]
        %v5172 = vld [vmem:[#allocation4 + $0x10] sm:$0xf]
        %v5173 = vld [vmem:[#allocation4 + $0x14] sm:$0xf]
        %v5174 = vld [vmem:[#allocation4 + $0x18] sm:$0xf]
        %v5175 = vld [vmem:[#allocation4 + $0x1c] sm:$0xf]
        %v5176 = vld [vmem:[#allocation4 + $0x20] sm:$0xf]
        %v5177 = vld [vmem:[#allocation4 + $0x24] sm:$0xf]
        %v5178 = vld [vmem:[#allocation4 + $0x28] sm:$0xf]
        %v5179 = vld [vmem:[#allocation4 + $0x2c] sm:$0xf]
        %v5180 = vld [vmem:[#allocation4 + $0x30] sm:$0xf]
        %v5181 = vld [vmem:[#allocation4 + $0x34] sm:$0xf]
        %v5182 = vld [vmem:[#allocation4 + $0x38] sm:$0xf]
        %v5183 = vld [vmem:[#allocation4 + $0x3c] sm:$0xf]
        %v5184 = vld [vmem:[#allocation4 + $0x40] sm:$0xf]
        %v5185 = vld [vmem:[#allocation4 + $0x44] sm:$0xf]
        %v5186 = vld [vmem:[#allocation4 + $0x48] sm:$0xf]
        %v5187 = vld [vmem:[#allocation4 + $0x4c] sm:$0xf]
        %v5188 = vld [vmem:[#allocation4 + $0x50] sm:$0xf]
        %v5189 = vld [vmem:[#allocation4 + $0x54] sm:$0xf]
        %v5190 = vld [vmem:[#allocation4 + $0x58] sm:$0xf]
        %v5191 = vld [vmem:[#allocation4 + $0x5c] sm:$0xf]
        %v5192 = vld [vmem:[#allocation4 + $0x60] sm:$0xf]
        %v5193 = vld [vmem:[#allocation4 + $0x64] sm:$0xf]
        %v5194 = vld [vmem:[#allocation4 + $0x68] sm:$0xf]
        %v5195 = vld [vmem:[#allocation4 + $0x6c] sm:$0xf]
        %v5196 = vld [vmem:[#allocation4 + $0x70] sm:$0xf]
        %v5197 = vld [vmem:[#allocation4 + $0x74] sm:$0xf]
        %v5198 = vld [vmem:[#allocation4 + $0x78] sm:$0xf]
        %v5199 = vld [vmem:[#allocation4 + $0x7c] sm:$0xf]
        %v5200 = vld [vmem:[#allocation4 + $0x80] sm:$0xf]
        %v5201 = vld [vmem:[#allocation4 + $0x84] sm:$0xf]
        %v5202 = vld [vmem:[#allocation4 + $0x88] sm:$0xf]
        %v5203 = vld [vmem:[#allocation4 + $0x8c] sm:$0xf]
        %v5204 = vld [vmem:[#allocation4 + $0x90] sm:$0xf]
        %v5205 = vld [vmem:[#allocation4 + $0x94] sm:$0xf]
        %v5206 = vld [vmem:[#allocation4 + $0x98] sm:$0xf]
        %v5207 = vld [vmem:[#allocation4 + $0x9c] sm:$0xf]
        %v5208 = vld [vmem:[#allocation4 + $0xa0] sm:$0xf]
        %v5209 = vld [vmem:[#allocation4 + $0xa4] sm:$0xf]
        %v5210 = vld [vmem:[#allocation4 + $0xa8] sm:$0xf]
        %v5211 = vld [vmem:[#allocation4 + $0xac] sm:$0xf]
        %v5212 = vld [vmem:[#allocation4 + $0xb0] sm:$0xf]
        %v5213 = vld [vmem:[#allocation4 + $0xb4] sm:$0xf]
        %v5214 = vld [vmem:[#allocation4 + $0xb8] sm:$0xf]
        %v5215 = vld [vmem:[#allocation4 + $0xbc] sm:$0xf]
        %v5216 = vld [vmem:[#allocation4 + $0xc0] sm:$0xf]
        %v5217 = vld [vmem:[#allocation4 + $0xc4] sm:$0xf]
        %v5218 = vld [vmem:[#allocation4 + $0xc8] sm:$0xf]
        %v5219 = vld [vmem:[#allocation4 + $0xcc] sm:$0xf]
        %v5220 = vld [vmem:[#allocation4 + $0xd0] sm:$0xf]
        %v5221 = vld [vmem:[#allocation4 + $0xd4] sm:$0xf]
        %v5222 = vld [vmem:[#allocation4 + $0xd8] sm:$0xf]
        %v5223 = vld [vmem:[#allocation4 + $0xdc] sm:$0xf]
        %v5224 = vld [vmem:[#allocation4 + $0xe0] sm:$0xf]
        %v5225 = vld [vmem:[#allocation4 + $0xe4] sm:$0xf]
        %v5226 = vld [vmem:[#allocation4 + $0xe8] sm:$0xf]
        %v5227 = vld [vmem:[#allocation4 + $0xec] sm:$0xf]
        %v5228 = vld [vmem:[#allocation4 + $0xf0] sm:$0xf]
        %v5229 = vld [vmem:[#allocation4 + $0xf4] sm:$0xf]
        %v5230 = vld [vmem:[#allocation4 + $0xf8] sm:$0xf]
        %v5231 = vld [vmem:[#allocation4 + $0xfc] sm:$0xf]
        %v5232 = vld [vmem:[#allocation4 + $0x100] sm:$0xf]
        %v5233 = vld [vmem:[#allocation4 + $0x104] sm:$0xf]
        %v5234 = vld [vmem:[#allocation4 + $0x108] sm:$0xf]
        %v5235 = vld [vmem:[#allocation4 + $0x10c] sm:$0xf]
        %v5236 = vld [vmem:[#allocation4 + $0x110] sm:$0xf]
        %v5237 = vld [vmem:[#allocation4 + $0x114] sm:$0xf]
        %v5238 = vld [vmem:[#allocation4 + $0x118] sm:$0xf]
        %v5239 = vld [vmem:[#allocation4 + $0x11c] sm:$0xf]
        %v5240 = vld [vmem:[#allocation4 + $0x120] sm:$0xf]
        %v5241 = vld [vmem:[#allocation4 + $0x124] sm:$0xf]
        %v5242 = vld [vmem:[#allocation4 + $0x128] sm:$0xf]
        %v5243 = vld [vmem:[#allocation4 + $0x12c] sm:$0xf]
        %v5244 = vld [vmem:[#allocation4 + $0x130] sm:$0xf]
        %v5245 = vld [vmem:[#allocation4 + $0x134] sm:$0xf]
        %v5246 = vld [vmem:[#allocation4 + $0x138] sm:$0xf]
        %v5247 = vld [vmem:[#allocation4 + $0x13c] sm:$0xf]
        %v5248 = vld [vmem:[#allocation4 + $0x140] sm:$0xf]
        %v5249 = vld [vmem:[#allocation4 + $0x144] sm:$0xf]
        %v5250 = vld [vmem:[#allocation4 + $0x148] sm:$0xf]
        %v5251 = vld [vmem:[#allocation4 + $0x14c] sm:$0xf]
        %v5252 = vld [vmem:[#allocation4 + $0x150] sm:$0xf]
        %v5253 = vld [vmem:[#allocation4 + $0x154] sm:$0xf]
        %v5254 = vld [vmem:[#allocation4 + $0x158] sm:$0xf]
        %v5255 = vld [vmem:[#allocation4 + $0x15c] sm:$0xf]
        %v5256 = vld [vmem:[#allocation4 + $0x160] sm:$0xf]
        %v5257 = vld [vmem:[#allocation4 + $0x164] sm:$0xf]
        %v5258 = vld [vmem:[#allocation4 + $0x168] sm:$0xf]
        %v5259 = vld [vmem:[#allocation4 + $0x16c] sm:$0xf]
        %v5260 = vld [vmem:[#allocation4 + $0x170] sm:$0xf]
        %v5261 = vld [vmem:[#allocation4 + $0x174] sm:$0xf]
        %v5262 = vld [vmem:[#allocation4 + $0x178] sm:$0xf]
        %v5263 = vld [vmem:[#allocation4 + $0x17c] sm:$0xf]
        %v5264 = vld [vmem:[#allocation4 + $0x180] sm:$0xf]
        %v5265 = vld [vmem:[#allocation4 + $0x184] sm:$0xf]
        %v5266 = vld [vmem:[#allocation4 + $0x188] sm:$0xf]
        %v5267 = vld [vmem:[#allocation4 + $0x18c] sm:$0xf]
        %v5268 = vld [vmem:[#allocation4 + $0x190] sm:$0xf]
        %v5269 = vld [vmem:[#allocation4 + $0x194] sm:$0xf]
        %v5270 = vld [vmem:[#allocation4 + $0x198] sm:$0xf]
        %v5271 = vld [vmem:[#allocation4 + $0x19c] sm:$0xf]
        %v5272 = vld [vmem:[#allocation4 + $0x1a0] sm:$0xf]
        %v5273 = vld [vmem:[#allocation4 + $0x1a4] sm:$0xf]
        %v5274 = vld [vmem:[#allocation4 + $0x1a8] sm:$0xf]
        %v5275 = vld [vmem:[#allocation4 + $0x1ac] sm:$0xf]
        %v5276 = vld [vmem:[#allocation4 + $0x1b0] sm:$0xf]
        %v5277 = vld [vmem:[#allocation4 + $0x1b4] sm:$0xf]
        %v5278 = vld [vmem:[#allocation4 + $0x1b8] sm:$0xf]
        %v5279 = vld [vmem:[#allocation4 + $0x1bc] sm:$0xf]
        %v5280 = vld [vmem:[#allocation4 + $0x1c0] sm:$0xf]
        %v5281 = vld [vmem:[#allocation4 + $0x1c4] sm:$0xf]
        %v5282 = vld [vmem:[#allocation4 + $0x1c8] sm:$0xf]
        %v5283 = vld [vmem:[#allocation4 + $0x1cc] sm:$0xf]
        %v5284 = vld [vmem:[#allocation4 + $0x1d0] sm:$0xf]
        %v5285 = vld [vmem:[#allocation4 + $0x1d4] sm:$0xf]
        %v5286 = vld [vmem:[#allocation4 + $0x1d8] sm:$0xf]
        %v5287 = vld [vmem:[#allocation4 + $0x1dc] sm:$0xf]
        %v5288 = vld [vmem:[#allocation4 + $0x1e0] sm:$0xf]
        %v5289 = vld [vmem:[#allocation4 + $0x1e4] sm:$0xf]
        %v5290 = vld [vmem:[#allocation4 + $0x1e8] sm:$0xf]
        %v5291 = vld [vmem:[#allocation4 + $0x1ec] sm:$0xf]
        %v5292 = vld [vmem:[#allocation4 + $0x1f0] sm:$0xf]
        %v5293 = vld [vmem:[#allocation4 + $0x1f4] sm:$0xf]
        %v5294 = vld [vmem:[#allocation4 + $0x1f8] sm:$0xf]
        %v5295 = vld [vmem:[#allocation4 + $0x1fc] sm:$0xf]
        %v5296 = vld [vmem:[#allocation4 + $0x200] sm:$0xf]
        %v5297 = vld [vmem:[#allocation4 + $0x204] sm:$0xf]
        %v5298 = vld [vmem:[#allocation4 + $0x208] sm:$0xf]
        %v5299 = vld [vmem:[#allocation4 + $0x20c] sm:$0xf]
        %v5300 = vld [vmem:[#allocation4 + $0x210] sm:$0xf]
        %v5301 = vld [vmem:[#allocation4 + $0x214] sm:$0xf]
        %v5302 = vld [vmem:[#allocation4 + $0x218] sm:$0xf]
        %v5303 = vld [vmem:[#allocation4 + $0x21c] sm:$0xf]
        %v5304 = vld [vmem:[#allocation4 + $0x220] sm:$0xf]
        %v5305 = vld [vmem:[#allocation4 + $0x224] sm:$0xf]
        %v5306 = vld [vmem:[#allocation4 + $0x228] sm:$0xf]
        %v5307 = vld [vmem:[#allocation4 + $0x22c] sm:$0xf]
        %v5308 = vld [vmem:[#allocation4 + $0x230] sm:$0xf]
        %v5309 = vld [vmem:[#allocation4 + $0x234] sm:$0xf]
        %v5310 = vld [vmem:[#allocation4 + $0x238] sm:$0xf]
        %v5311 = vld [vmem:[#allocation4 + $0x23c] sm:$0xf]
        %v5456 = vunpack.c.l.b16 %v5168
        %v5457 = vunpack.c.l.b16 %v5169
        %v5458 = vunpack.c.l.b16 %v5170
        %v5459 = vunpack.c.l.b16 %v5171
        %v5460 = vunpack.c.l.b16 %v5172
        %v5461 = vunpack.c.l.b16 %v5173
        %v5462 = vunpack.c.l.b16 %v5174
        %v5463 = vunpack.c.l.b16 %v5175
        %v5464 = vunpack.c.l.b16 %v5176
        %v5465 = vunpack.c.l.b16 %v5177
        %v5466 = vunpack.c.l.b16 %v5178
        %v5467 = vunpack.c.l.b16 %v5179
        %v5468 = vunpack.c.l.b16 %v5180
        %v5469 = vunpack.c.l.b16 %v5181
        %v5470 = vunpack.c.l.b16 %v5182
        %v5471 = vunpack.c.l.b16 %v5183
        %v5472 = vunpack.c.l.b16 %v5184
        %v5473 = vunpack.c.l.b16 %v5185
        %v5474 = vunpack.c.l.b16 %v5186
        %v5475 = vunpack.c.l.b16 %v5187
        %v5476 = vunpack.c.l.b16 %v5188
        %v5477 = vunpack.c.l.b16 %v5189
        %v5478 = vunpack.c.l.b16 %v5190
        %v5479 = vunpack.c.l.b16 %v5191
        %v5480 = vunpack.c.l.b16 %v5192
        %v5481 = vunpack.c.l.b16 %v5193
        %v5482 = vunpack.c.l.b16 %v5194
        %v5483 = vunpack.c.l.b16 %v5195
        %v5484 = vunpack.c.l.b16 %v5196
        %v5485 = vunpack.c.l.b16 %v5197
        %v5486 = vunpack.c.l.b16 %v5198
        %v5487 = vunpack.c.l.b16 %v5199
        %v5488 = vunpack.c.l.b16 %v5200
        %v5489 = vunpack.c.l.b16 %v5201
        %v5490 = vunpack.c.l.b16 %v5202
        %v5491 = vunpack.c.l.b16 %v5203
        %v5492 = vunpack.c.l.b16 %v5204
        %v5493 = vunpack.c.l.b16 %v5205
        %v5494 = vunpack.c.l.b16 %v5206
        %v5495 = vunpack.c.l.b16 %v5207
        %v5496 = vunpack.c.l.b16 %v5208
        %v5497 = vunpack.c.l.b16 %v5209
        %v5498 = vunpack.c.l.b16 %v5210
        %v5499 = vunpack.c.l.b16 %v5211
        %v5500 = vunpack.c.l.b16 %v5212
        %v5501 = vunpack.c.l.b16 %v5213
        %v5502 = vunpack.c.l.b16 %v5214
        %v5503 = vunpack.c.l.b16 %v5215
        %v5504 = vunpack.c.l.b16 %v5216
        %v5505 = vunpack.c.l.b16 %v5217
        %v5506 = vunpack.c.l.b16 %v5218
        %v5507 = vunpack.c.l.b16 %v5219
        %v5508 = vunpack.c.l.b16 %v5220
        %v5509 = vunpack.c.l.b16 %v5221
        %v5510 = vunpack.c.l.b16 %v5222
        %v5511 = vunpack.c.l.b16 %v5223
        %v5512 = vunpack.c.l.b16 %v5224
        %v5513 = vunpack.c.l.b16 %v5225
        %v5514 = vunpack.c.l.b16 %v5226
        %v5515 = vunpack.c.l.b16 %v5227
        %v5516 = vunpack.c.l.b16 %v5228
        %v5517 = vunpack.c.l.b16 %v5229
        %v5518 = vunpack.c.l.b16 %v5230
        %v5519 = vunpack.c.l.b16 %v5231
        %v5520 = vunpack.c.l.b16 %v5232
        %v5521 = vunpack.c.l.b16 %v5233
        %v5522 = vunpack.c.l.b16 %v5234
        %v5523 = vunpack.c.l.b16 %v5235
        %v5524 = vunpack.c.l.b16 %v5236
        %v5525 = vunpack.c.l.b16 %v5237
        %v5526 = vunpack.c.l.b16 %v5238
        %v5527 = vunpack.c.l.b16 %v5239
        %v5528 = vunpack.c.l.b16 %v5240
        %v5529 = vunpack.c.l.b16 %v5241
        %v5530 = vunpack.c.l.b16 %v5242
        %v5531 = vunpack.c.l.b16 %v5243
        %v5532 = vunpack.c.l.b16 %v5244
        %v5533 = vunpack.c.l.b16 %v5245
        %v5534 = vunpack.c.l.b16 %v5246
        %v5535 = vunpack.c.l.b16 %v5247
        %v5536 = vunpack.c.l.b16 %v5248
        %v5537 = vunpack.c.l.b16 %v5249
        %v5538 = vunpack.c.l.b16 %v5250
        %v5539 = vunpack.c.l.b16 %v5251
        %v5540 = vunpack.c.l.b16 %v5252
        %v5541 = vunpack.c.l.b16 %v5253
        %v5542 = vunpack.c.l.b16 %v5254
        %v5543 = vunpack.c.l.b16 %v5255
        %v5544 = vunpack.c.l.b16 %v5256
        %v5545 = vunpack.c.l.b16 %v5257
        %v5546 = vunpack.c.l.b16 %v5258
        %v5547 = vunpack.c.l.b16 %v5259
        %v5548 = vunpack.c.l.b16 %v5260
        %v5549 = vunpack.c.l.b16 %v5261
        %v5550 = vunpack.c.l.b16 %v5262
        %v5551 = vunpack.c.l.b16 %v5263
        %v5552 = vunpack.c.l.b16 %v5264
        %v5553 = vunpack.c.l.b16 %v5265
        %v5554 = vunpack.c.l.b16 %v5266
        %v5555 = vunpack.c.l.b16 %v5267
        %v5556 = vunpack.c.l.b16 %v5268
        %v5557 = vunpack.c.l.b16 %v5269
        %v5558 = vunpack.c.l.b16 %v5270
        %v5559 = vunpack.c.l.b16 %v5271
        %v5560 = vunpack.c.l.b16 %v5272
        %v5561 = vunpack.c.l.b16 %v5273
        %v5562 = vunpack.c.l.b16 %v5274
        %v5563 = vunpack.c.l.b16 %v5275
        %v5564 = vunpack.c.l.b16 %v5276
        %v5565 = vunpack.c.l.b16 %v5277
        %v5566 = vunpack.c.l.b16 %v5278
        %v5567 = vunpack.c.l.b16 %v5279
        %v5568 = vunpack.c.l.b16 %v5280
        %v5569 = vunpack.c.l.b16 %v5281
        %v5570 = vunpack.c.l.b16 %v5282
        %v5571 = vunpack.c.l.b16 %v5283
        %v5572 = vunpack.c.l.b16 %v5284
        %v5573 = vunpack.c.l.b16 %v5285
        %v5574 = vunpack.c.l.b16 %v5286
        %v5575 = vunpack.c.l.b16 %v5287
        %v5576 = vunpack.c.l.b16 %v5288
        %v5577 = vunpack.c.l.b16 %v5289
        %v5578 = vunpack.c.l.b16 %v5290
        %v5579 = vunpack.c.l.b16 %v5291
        %v5580 = vunpack.c.l.b16 %v5292
        %v5581 = vunpack.c.l.b16 %v5293
        %v5582 = vunpack.c.l.b16 %v5294
        %v5583 = vunpack.c.l.b16 %v5295
        %v5584 = vunpack.c.l.b16 %v5296
        %v5585 = vunpack.c.l.b16 %v5297
        %v5586 = vunpack.c.l.b16 %v5298
        %v5587 = vunpack.c.l.b16 %v5299
        %v5588 = vunpack.c.l.b16 %v5300
        %v5589 = vunpack.c.l.b16 %v5301
        %v5590 = vunpack.c.l.b16 %v5302
        %v5591 = vunpack.c.l.b16 %v5303
        %v5592 = vunpack.c.l.b16 %v5304
        %v5593 = vunpack.c.l.b16 %v5305
        %v5594 = vunpack.c.l.b16 %v5306
        %v5595 = vunpack.c.l.b16 %v5307
        %v5596 = vunpack.c.l.b16 %v5308
        %v5597 = vunpack.c.l.b16 %v5309
        %v5598 = vunpack.c.l.b16 %v5310
        %v5599 = vunpack.c.l.b16 %v5311
        %v5600 = vpack.c.b16 %v5457, %v5456
        %v5601 = vpack.c.b16 %v5459, %v5458
        %v5602 = vpack.c.b16 %v5461, %v5460
        %v5603 = vpack.c.b16 %v5463, %v5462
        %v5604 = vpack.c.b16 %v5465, %v5464
        %v5605 = vpack.c.b16 %v5467, %v5466
        %v5606 = vpack.c.b16 %v5469, %v5468
        %v5607 = vpack.c.b16 %v5471, %v5470
        %v5608 = vpack.c.b16 %v5473, %v5472
        %v5609 = vpack.c.b16 %v5475, %v5474
        %v5610 = vpack.c.b16 %v5477, %v5476
        %v5611 = vpack.c.b16 %v5479, %v5478
        %v5612 = vpack.c.b16 %v5481, %v5480
        %v5613 = vpack.c.b16 %v5483, %v5482
        %v5614 = vpack.c.b16 %v5485, %v5484
        %v5615 = vpack.c.b16 %v5487, %v5486
        %v5616 = vpack.c.b16 %v5489, %v5488
        %v5617 = vpack.c.b16 %v5491, %v5490
        %v5618 = vpack.c.b16 %v5493, %v5492
        %v5619 = vpack.c.b16 %v5495, %v5494
        %v5620 = vpack.c.b16 %v5497, %v5496
        %v5621 = vpack.c.b16 %v5499, %v5498
        %v5622 = vpack.c.b16 %v5501, %v5500
        %v5623 = vpack.c.b16 %v5503, %v5502
        %v5624 = vpack.c.b16 %v5505, %v5504
        %v5625 = vpack.c.b16 %v5507, %v5506
        %v5626 = vpack.c.b16 %v5509, %v5508
        %v5627 = vpack.c.b16 %v5511, %v5510
        %v5628 = vpack.c.b16 %v5513, %v5512
        %v5629 = vpack.c.b16 %v5515, %v5514
        %v5630 = vpack.c.b16 %v5517, %v5516
        %v5631 = vpack.c.b16 %v5519, %v5518
        %v5632 = vpack.c.b16 %v5521, %v5520
        %v5633 = vpack.c.b16 %v5523, %v5522
        %v5634 = vpack.c.b16 %v5525, %v5524
        %v5635 = vpack.c.b16 %v5527, %v5526
        %v5636 = vpack.c.b16 %v5529, %v5528
        %v5637 = vpack.c.b16 %v5531, %v5530
        %v5638 = vpack.c.b16 %v5533, %v5532
        %v5639 = vpack.c.b16 %v5535, %v5534
        %v5640 = vpack.c.b16 %v5537, %v5536
        %v5641 = vpack.c.b16 %v5539, %v5538
        %v5642 = vpack.c.b16 %v5541, %v5540
        %v5643 = vpack.c.b16 %v5543, %v5542
        %v5644 = vpack.c.b16 %v5545, %v5544
        %v5645 = vpack.c.b16 %v5547, %v5546
        %v5646 = vpack.c.b16 %v5549, %v5548
        %v5647 = vpack.c.b16 %v5551, %v5550
        %v5648 = vpack.c.b16 %v5553, %v5552
        %v5649 = vpack.c.b16 %v5555, %v5554
        %v5650 = vpack.c.b16 %v5557, %v5556
        %v5651 = vpack.c.b16 %v5559, %v5558
        %v5652 = vpack.c.b16 %v5561, %v5560
        %v5653 = vpack.c.b16 %v5563, %v5562
        %v5654 = vpack.c.b16 %v5565, %v5564
        %v5655 = vpack.c.b16 %v5567, %v5566
        %v5656 = vpack.c.b16 %v5569, %v5568
        %v5657 = vpack.c.b16 %v5571, %v5570
        %v5658 = vpack.c.b16 %v5573, %v5572
        %v5659 = vpack.c.b16 %v5575, %v5574
        %v5660 = vpack.c.b16 %v5577, %v5576
        %v5661 = vpack.c.b16 %v5579, %v5578
        %v5662 = vpack.c.b16 %v5581, %v5580
        %v5663 = vpack.c.b16 %v5583, %v5582
        %v5664 = vpack.c.b16 %v5585, %v5584
        %v5665 = vpack.c.b16 %v5587, %v5586
        %v5666 = vpack.c.b16 %v5589, %v5588
        %v5667 = vpack.c.b16 %v5591, %v5590
        %v5668 = vpack.c.b16 %v5593, %v5592
        %v5669 = vpack.c.b16 %v5595, %v5594
        %v5670 = vpack.c.b16 %v5597, %v5596
        %v5671 = vpack.c.b16 %v5599, %v5598
        %5744 = vmatpush.bf16.msra.mxu0 %v5607
        %5745 = vmatpush.bf16.msra.mxu0 %v5606
        %5746 = vmatpush.bf16.msra.mxu0 %v5605
        %5747 = vmatpush.bf16.msra.mxu0 %v5604
        %5748 = vmatpush.bf16.msra.mxu0 %v5603
        %5749 = vmatpush.bf16.msra.mxu0 %v5602
        %5750 = vmatpush.bf16.msra.mxu0 %v5601
        %5751 = vmatpush.bf16.msra.mxu0 %v5600
        %5752 = vmatmul.bf16.gmra.mxu0 %v663
        %v5753 = vpop.f32.mrf.mxu0
        %v5754 = vadd.f32 0.0, %v5753
        %v5755 = vpop.f32.mrf.mxu0
        %v5756 = vadd.f32 0.0, %v5755
        %5757 = vmatmul.bf16.gmra.mxu0 %v4832
        %v5758 = vpop.f32.mrf.mxu0
        %v5759 = vadd.f32 0.0, %v5758
        %v5760 = vpop.f32.mrf.mxu0
        %v5761 = vadd.f32 0.0, %v5760
        %5762 = vmatmul.bf16.gmra.mxu0 %v4833
        %v5763 = vpop.f32.mrf.mxu0
        %v5764 = vadd.f32 0.0, %v5763
        %v5765 = vpop.f32.mrf.mxu0
        %v5766 = vadd.f32 0.0, %v5765
        %5767 = vmatmul.bf16.gmra.mxu0 %v4834
        %v5768 = vpop.f32.mrf.mxu0
        %v5769 = vadd.f32 0.0, %v5768
        %v5770 = vpop.f32.mrf.mxu0
        %v5771 = vadd.f32 0.0, %v5770
        %5772 = vmatmul.bf16.gmra.mxu0 %v4835
        %v5773 = vpop.f32.mrf.mxu0
        %v5774 = vadd.f32 0.0, %v5773
        %v5775 = vpop.f32.mrf.mxu0
        %v5776 = vadd.f32 0.0, %v5775
        %5777 = vmatmul.bf16.gmra.mxu0 %v4836
        %v5778 = vpop.f32.mrf.mxu0
        %v5779 = vadd.f32 0.0, %v5778
        %v5780 = vpop.f32.mrf.mxu0
        %v5781 = vadd.f32 0.0, %v5780
        %5782 = vmatmul.bf16.gmra.mxu0 %v4837
        %v5783 = vpop.f32.mrf.mxu0
        %v5784 = vadd.f32 0.0, %v5783
        %v5785 = vpop.f32.mrf.mxu0
        %v5786 = vadd.f32 0.0, %v5785
        %5787 = vmatmul.bf16.gmra.mxu0 %v4838
        %v5788 = vpop.f32.mrf.mxu0
        %v5789 = vadd.f32 0.0, %v5788
        %v5790 = vpop.f32.mrf.mxu0
        %v5791 = vadd.f32 0.0, %v5790
        %5792 = vmatmul.bf16.gmra.mxu0 %v4839
        %v5793 = vpop.f32.mrf.mxu0
        %v5794 = vadd.f32 0.0, %v5793
        %v5795 = vpop.f32.mrf.mxu0
        %v5796 = vadd.f32 0.0, %v5795
        %5797 = vmatmul.bf16.gmra.mxu0 %v4840
        %v5798 = vpop.f32.mrf.mxu0
        %v5799 = vadd.f32 0.0, %v5798
        %v5800 = vpop.f32.mrf.mxu0
        %v5801 = vadd.f32 0.0, %v5800
        %5802 = vmatmul.bf16.gmra.mxu0 %v4841
        %v5803 = vpop.f32.mrf.mxu0
        %v5804 = vadd.f32 0.0, %v5803
        %v5805 = vpop.f32.mrf.mxu0
        %v5806 = vadd.f32 0.0, %v5805
        %5807 = vmatmul.bf16.gmra.mxu0 %v4842
        %v5808 = vpop.f32.mrf.mxu0
        %v5809 = vadd.f32 0.0, %v5808
        %v5810 = vpop.f32.mrf.mxu0
        %v5811 = vadd.f32 0.0, %v5810
        %5812 = vmatmul.bf16.gmra.mxu0 %v4843
        %v5813 = vpop.f32.mrf.mxu0
        %v5814 = vadd.f32 0.0, %v5813
        %v5815 = vpop.f32.mrf.mxu0
        %v5816 = vadd.f32 0.0, %v5815
        %5817 = vmatmul.bf16.gmra.mxu0 %v4844
        %v5818 = vpop.f32.mrf.mxu0
        %v5819 = vadd.f32 0.0, %v5818
        %v5820 = vpop.f32.mrf.mxu0
        %v5821 = vadd.f32 0.0, %v5820
        %5822 = vmatmul.bf16.gmra.mxu0 %v4845
        %v5823 = vpop.f32.mrf.mxu0
        %v5824 = vadd.f32 0.0, %v5823
        %v5825 = vpop.f32.mrf.mxu0
        %v5826 = vadd.f32 0.0, %v5825
        %5827 = vmatmul.bf16.gmra.mxu0 %v4846
        %v5828 = vpop.f32.mrf.mxu0
        %v5829 = vadd.f32 0.0, %v5828
        %v5830 = vpop.f32.mrf.mxu0
        %v5831 = vadd.f32 0.0, %v5830
        %5832 = vdwg.mxu0
        %5833 = vmatpush.bf16.msra.mxu0 %v5615
        %5834 = vmatpush.bf16.msra.mxu0 %v5614
        %5835 = vmatpush.bf16.msra.mxu0 %v5613
        %5836 = vmatpush.bf16.msra.mxu0 %v5612
        %5837 = vmatpush.bf16.msra.mxu0 %v5611
        %5838 = vmatpush.bf16.msra.mxu0 %v5610
        %5839 = vmatpush.bf16.msra.mxu0 %v5609
        %5840 = vmatpush.bf16.msra.mxu0 %v5608
        %5841 = vmatmul.bf16.gmra.mxu0 %v709
        %v5842 = vpop.f32.mrf.mxu0
        %v5843 = vadd.f32 %v5754, %v5842
        %v5844 = vpop.f32.mrf.mxu0
        %v5845 = vadd.f32 %v5756, %v5844
        %5846 = vmatmul.bf16.gmra.mxu0 %v4875
        %v5847 = vpop.f32.mrf.mxu0
        %v5848 = vadd.f32 %v5759, %v5847
        %v5849 = vpop.f32.mrf.mxu0
        %v5850 = vadd.f32 %v5761, %v5849
        %5851 = vmatmul.bf16.gmra.mxu0 %v4887
        %v5852 = vpop.f32.mrf.mxu0
        %v5853 = vadd.f32 %v5764, %v5852
        %v5854 = vpop.f32.mrf.mxu0
        %v5855 = vadd.f32 %v5766, %v5854
        %5856 = vmatmul.bf16.gmra.mxu0 %v4899
        %v5857 = vpop.f32.mrf.mxu0
        %v5858 = vadd.f32 %v5769, %v5857
        %v5859 = vpop.f32.mrf.mxu0
        %v5860 = vadd.f32 %v5771, %v5859
        %5861 = vmatmul.bf16.gmra.mxu0 %v4911
        %v5862 = vpop.f32.mrf.mxu0
        %v5863 = vadd.f32 %v5774, %v5862
        %v5864 = vpop.f32.mrf.mxu0
        %v5865 = vadd.f32 %v5776, %v5864
        %5866 = vmatmul.bf16.gmra.mxu0 %v4923
        %v5867 = vpop.f32.mrf.mxu0
        %v5868 = vadd.f32 %v5779, %v5867
        %v5869 = vpop.f32.mrf.mxu0
        %v5870 = vadd.f32 %v5781, %v5869
        %5871 = vmatmul.bf16.gmra.mxu0 %v4935
        %v5872 = vpop.f32.mrf.mxu0
        %v5873 = vadd.f32 %v5784, %v5872
        %v5874 = vpop.f32.mrf.mxu0
        %v5875 = vadd.f32 %v5786, %v5874
        %5876 = vmatmul.bf16.gmra.mxu0 %v4947
        %v5877 = vpop.f32.mrf.mxu0
        %v5878 = vadd.f32 %v5789, %v5877
        %v5879 = vpop.f32.mrf.mxu0
        %v5880 = vadd.f32 %v5791, %v5879
        %5881 = vmatmul.bf16.gmra.mxu0 %v4959
        %v5882 = vpop.f32.mrf.mxu0
        %v5883 = vadd.f32 %v5794, %v5882
        %v5884 = vpop.f32.mrf.mxu0
        %v5885 = vadd.f32 %v5796, %v5884
        %5886 = vmatmul.bf16.gmra.mxu0 %v4971
        %v5887 = vpop.f32.mrf.mxu0
        %v5888 = vadd.f32 %v5799, %v5887
        %v5889 = vpop.f32.mrf.mxu0
        %v5890 = vadd.f32 %v5801, %v5889
        %5891 = vmatmul.bf16.gmra.mxu0 %v4983
        %v5892 = vpop.f32.mrf.mxu0
        %v5893 = vadd.f32 %v5804, %v5892
        %v5894 = vpop.f32.mrf.mxu0
        %v5895 = vadd.f32 %v5806, %v5894
        %5896 = vmatmul.bf16.gmra.mxu0 %v4995
        %v5897 = vpop.f32.mrf.mxu0
        %v5898 = vadd.f32 %v5809, %v5897
        %v5899 = vpop.f32.mrf.mxu0
        %v5900 = vadd.f32 %v5811, %v5899
        %5901 = vmatmul.bf16.gmra.mxu0 %v5007
        %v5902 = vpop.f32.mrf.mxu0
        %v5903 = vadd.f32 %v5814, %v5902
        %v5904 = vpop.f32.mrf.mxu0
        %v5905 = vadd.f32 %v5816, %v5904
        %5906 = vmatmul.bf16.gmra.mxu0 %v5019
        %v5907 = vpop.f32.mrf.mxu0
        %v5908 = vadd.f32 %v5819, %v5907
        %v5909 = vpop.f32.mrf.mxu0
        %v5910 = vadd.f32 %v5821, %v5909
        %5911 = vmatmul.bf16.gmra.mxu0 %v5031
        %v5912 = vpop.f32.mrf.mxu0
        %v5913 = vadd.f32 %v5824, %v5912
        %v5914 = vpop.f32.mrf.mxu0
        %v5915 = vadd.f32 %v5826, %v5914
        %5916 = vmatmul.bf16.gmra.mxu0 %v5043
        %v5917 = vpop.f32.mrf.mxu0
        %v5918 = vadd.f32 %v5829, %v5917
        %v5919 = vpop.f32.mrf.mxu0
        %v5920 = vadd.f32 %v5831, %v5919
        %5921 = vdwg.mxu0
        %5922 = vmatpush.bf16.msra.mxu0 %v5623
        %5923 = vmatpush.bf16.msra.mxu0 %v5622
        %5924 = vmatpush.bf16.msra.mxu0 %v5621
        %5925 = vmatpush.bf16.msra.mxu0 %v5620
        %5926 = vmatpush.bf16.msra.mxu0 %v5619
        %5927 = vmatpush.bf16.msra.mxu0 %v5618
        %5928 = vmatpush.bf16.msra.mxu0 %v5617
        %5929 = vmatpush.bf16.msra.mxu0 %v5616
        %5930 = vmatmul.bf16.gmra.mxu0 %v941
        %v5931 = vpop.f32.mrf.mxu0
        %v5932 = vadd.f32 %v5843, %v5931
        %v5933 = vpop.f32.mrf.mxu0
        %v5934 = vadd.f32 %v5845, %v5933
        %5935 = vmatmul.bf16.gmra.mxu0 %v5091
        %v5936 = vpop.f32.mrf.mxu0
        %v5937 = vadd.f32 %v5848, %v5936
        %v5938 = vpop.f32.mrf.mxu0
        %v5939 = vadd.f32 %v5850, %v5938
        %5940 = vmatmul.bf16.gmra.mxu0 %v5094
        %v5941 = vpop.f32.mrf.mxu0
        %v5942 = vadd.f32 %v5853, %v5941
        %v5943 = vpop.f32.mrf.mxu0
        %v5944 = vadd.f32 %v5855, %v5943
        %5945 = vmatmul.bf16.gmra.mxu0 %v5097
        %v5946 = vpop.f32.mrf.mxu0
        %v5947 = vadd.f32 %v5858, %v5946
        %v5948 = vpop.f32.mrf.mxu0
        %v5949 = vadd.f32 %v5860, %v5948
        %5950 = vmatmul.bf16.gmra.mxu0 %v5100
        %v5951 = vpop.f32.mrf.mxu0
        %v5952 = vadd.f32 %v5863, %v5951
        %v5953 = vpop.f32.mrf.mxu0
        %v5954 = vadd.f32 %v5865, %v5953
        %5955 = vmatmul.bf16.gmra.mxu0 %v5103
        %v5956 = vpop.f32.mrf.mxu0
        %v5957 = vadd.f32 %v5868, %v5956
        %v5958 = vpop.f32.mrf.mxu0
        %v5959 = vadd.f32 %v5870, %v5958
        %5960 = vmatmul.bf16.gmra.mxu0 %v5106
        %v5961 = vpop.f32.mrf.mxu0
        %v5962 = vadd.f32 %v5873, %v5961
        %v5963 = vpop.f32.mrf.mxu0
        %v5964 = vadd.f32 %v5875, %v5963
        %5965 = vmatmul.bf16.gmra.mxu0 %v5109
        %v5966 = vpop.f32.mrf.mxu0
        %v5967 = vadd.f32 %v5878, %v5966
        %v5968 = vpop.f32.mrf.mxu0
        %v5969 = vadd.f32 %v5880, %v5968
        %5970 = vmatmul.bf16.gmra.mxu0 %v5112
        %v5971 = vpop.f32.mrf.mxu0
        %v5972 = vadd.f32 %v5883, %v5971
        %v5973 = vpop.f32.mrf.mxu0
        %v5974 = vadd.f32 %v5885, %v5973
        %5975 = vmatmul.bf16.gmra.mxu0 %v5115
        %v5976 = vpop.f32.mrf.mxu0
        %v5977 = vadd.f32 %v5888, %v5976
        %v5978 = vpop.f32.mrf.mxu0
        %v5979 = vadd.f32 %v5890, %v5978
        %5980 = vmatmul.bf16.gmra.mxu0 %v5118
        %v5981 = vpop.f32.mrf.mxu0
        %v5982 = vadd.f32 %v5893, %v5981
        %v5983 = vpop.f32.mrf.mxu0
        %v5984 = vadd.f32 %v5895, %v5983
        %5985 = vmatmul.bf16.gmra.mxu0 %v5121
        %v5986 = vpop.f32.mrf.mxu0
        %v5987 = vadd.f32 %v5898, %v5986
        %v5988 = vpop.f32.mrf.mxu0
        %v5989 = vadd.f32 %v5900, %v5988
        %5990 = vmatmul.bf16.gmra.mxu0 %v5124
        %v5991 = vpop.f32.mrf.mxu0
        %v5992 = vadd.f32 %v5903, %v5991
        %v5993 = vpop.f32.mrf.mxu0
        %v5994 = vadd.f32 %v5905, %v5993
        %5995 = vmatmul.bf16.gmra.mxu0 %v5127
        %v5996 = vpop.f32.mrf.mxu0
        %v5997 = vadd.f32 %v5908, %v5996
        %v5998 = vpop.f32.mrf.mxu0
        %v5999 = vadd.f32 %v5910, %v5998
        %6000 = vmatmul.bf16.gmra.mxu0 %v5130
        %v6001 = vpop.f32.mrf.mxu0
        %v6002 = vadd.f32 %v5913, %v6001
        %v6003 = vpop.f32.mrf.mxu0
        %v6004 = vadd.f32 %v5915, %v6003
        %6005 = vmatmul.bf16.gmra.mxu0 %v5133
        %v6006 = vpop.f32.mrf.mxu0
        %v6007 = vadd.f32 %v5918, %v6006
        %v6008 = vpop.f32.mrf.mxu0
        %v6009 = vadd.f32 %v5920, %v6008
        %6010 = vdwg.mxu0
        %6011 = vmatpush.bf16.msra.mxu0 %v5631
        %6012 = vmatpush.bf16.msra.mxu0 %v5630
        %6013 = vmatpush.bf16.msra.mxu0 %v5629
        %6014 = vmatpush.bf16.msra.mxu0 %v5628
        %6015 = vmatpush.bf16.msra.mxu0 %v5627
        %6016 = vmatpush.bf16.msra.mxu0 %v5626
        %6017 = vmatpush.bf16.msra.mxu0 %v5625
        %6018 = vmatpush.bf16.msra.mxu0 %v5624
        %6019 = vmatmul.bf16.gmra.mxu0 %v4832
        %v6020 = vpop.f32.mrf.mxu0
        %v6021 = vadd.f32 %v5932, %v6020
        %v6022 = vpop.f32.mrf.mxu0
        %v6023 = vadd.f32 %v5934, %v6022
        %6024 = vmatmul.bf16.gmra.mxu0 %v4833
        %v6025 = vpop.f32.mrf.mxu0
        %v6026 = vadd.f32 %v5937, %v6025
        %v6027 = vpop.f32.mrf.mxu0
        %v6028 = vadd.f32 %v5939, %v6027
        %6029 = vmatmul.bf16.gmra.mxu0 %v4834
        %v6030 = vpop.f32.mrf.mxu0
        %v6031 = vadd.f32 %v5942, %v6030
        %v6032 = vpop.f32.mrf.mxu0
        %v6033 = vadd.f32 %v5944, %v6032
        %6034 = vmatmul.bf16.gmra.mxu0 %v4835
        %v6035 = vpop.f32.mrf.mxu0
        %v6036 = vadd.f32 %v5947, %v6035
        %v6037 = vpop.f32.mrf.mxu0
        %v6038 = vadd.f32 %v5949, %v6037
        %6039 = vmatmul.bf16.gmra.mxu0 %v4836
        %v6040 = vpop.f32.mrf.mxu0
        %v6041 = vadd.f32 %v5952, %v6040
        %v6042 = vpop.f32.mrf.mxu0
        %v6043 = vadd.f32 %v5954, %v6042
        %6044 = vmatmul.bf16.gmra.mxu0 %v4837
        %v6045 = vpop.f32.mrf.mxu0
        %v6046 = vadd.f32 %v5957, %v6045
        %v6047 = vpop.f32.mrf.mxu0
        %v6048 = vadd.f32 %v5959, %v6047
        %6049 = vmatmul.bf16.gmra.mxu0 %v4838
        %v6050 = vpop.f32.mrf.mxu0
        %v6051 = vadd.f32 %v5962, %v6050
        %v6052 = vpop.f32.mrf.mxu0
        %v6053 = vadd.f32 %v5964, %v6052
        %6054 = vmatmul.bf16.gmra.mxu0 %v4839
        %v6055 = vpop.f32.mrf.mxu0
        %v6056 = vadd.f32 %v5967, %v6055
        %v6057 = vpop.f32.mrf.mxu0
        %v6058 = vadd.f32 %v5969, %v6057
        %6059 = vmatmul.bf16.gmra.mxu0 %v4840
        %v6060 = vpop.f32.mrf.mxu0
        %v6061 = vadd.f32 %v5972, %v6060
        %v6062 = vpop.f32.mrf.mxu0
        %v6063 = vadd.f32 %v5974, %v6062
        %6064 = vmatmul.bf16.gmra.mxu0 %v4841
        %v6065 = vpop.f32.mrf.mxu0
        %v6066 = vadd.f32 %v5977, %v6065
        %v6067 = vpop.f32.mrf.mxu0
        %v6068 = vadd.f32 %v5979, %v6067
        %6069 = vmatmul.bf16.gmra.mxu0 %v4842
        %v6070 = vpop.f32.mrf.mxu0
        %v6071 = vadd.f32 %v5982, %v6070
        %v6072 = vpop.f32.mrf.mxu0
        %v6073 = vadd.f32 %v5984, %v6072
        %6074 = vmatmul.bf16.gmra.mxu0 %v4843
        %v6075 = vpop.f32.mrf.mxu0
        %v6076 = vadd.f32 %v5987, %v6075
        %v6077 = vpop.f32.mrf.mxu0
        %v6078 = vadd.f32 %v5989, %v6077
        %6079 = vmatmul.bf16.gmra.mxu0 %v4844
        %v6080 = vpop.f32.mrf.mxu0
        %v6081 = vadd.f32 %v5992, %v6080
        %v6082 = vpop.f32.mrf.mxu0
        %v6083 = vadd.f32 %v5994, %v6082
        %6084 = vmatmul.bf16.gmra.mxu0 %v4845
        %v6085 = vpop.f32.mrf.mxu0
        %v6086 = vadd.f32 %v5997, %v6085
        %v6087 = vpop.f32.mrf.mxu0
        %v6088 = vadd.f32 %v5999, %v6087
        %6089 = vmatmul.bf16.gmra.mxu0 %v4846
        %v6090 = vpop.f32.mrf.mxu0
        %v6091 = vadd.f32 %v6002, %v6090
        %v6092 = vpop.f32.mrf.mxu0
        %v6093 = vadd.f32 %v6004, %v6092
        %6094 = vmatmul.bf16.gmra.mxu0 %v4847
        %v6095 = vpop.f32.mrf.mxu0
        %v6096 = vadd.f32 %v6007, %v6095
        %v6097 = vpop.f32.mrf.mxu0
        %v6098 = vadd.f32 %v6009, %v6097
        %6099 = vdwg.mxu0
        %6100 = vmatpush.bf16.msra.mxu0 %v5639
        %6101 = vmatpush.bf16.msra.mxu0 %v5638
        %6102 = vmatpush.bf16.msra.mxu0 %v5637
        %6103 = vmatpush.bf16.msra.mxu0 %v5636
        %6104 = vmatpush.bf16.msra.mxu0 %v5635
        %6105 = vmatpush.bf16.msra.mxu0 %v5634
        %6106 = vmatpush.bf16.msra.mxu0 %v5633
        %6107 = vmatpush.bf16.msra.mxu0 %v5632
        %6108 = vmatmul.bf16.gmra.mxu0 %v4875
        %v6109 = vpop.f32.mrf.mxu0
        %v6110 = vadd.f32 %v6021, %v6109
        %v6111 = vpop.f32.mrf.mxu0
        %v6112 = vadd.f32 %v6023, %v6111
        %6113 = vmatmul.bf16.gmra.mxu0 %v4887
        %v6114 = vpop.f32.mrf.mxu0
        %v6115 = vadd.f32 %v6026, %v6114
        %v6116 = vpop.f32.mrf.mxu0
        %v6117 = vadd.f32 %v6028, %v6116
        %6118 = vmatmul.bf16.gmra.mxu0 %v4899
        %v6119 = vpop.f32.mrf.mxu0
        %v6120 = vadd.f32 %v6031, %v6119
        %v6121 = vpop.f32.mrf.mxu0
        %v6122 = vadd.f32 %v6033, %v6121
        %6123 = vmatmul.bf16.gmra.mxu0 %v4911
        %v6124 = vpop.f32.mrf.mxu0
        %v6125 = vadd.f32 %v6036, %v6124
        %v6126 = vpop.f32.mrf.mxu0
        %v6127 = vadd.f32 %v6038, %v6126
        %6128 = vmatmul.bf16.gmra.mxu0 %v4923
        %v6129 = vpop.f32.mrf.mxu0
        %v6130 = vadd.f32 %v6041, %v6129
        %v6131 = vpop.f32.mrf.mxu0
        %v6132 = vadd.f32 %v6043, %v6131
        %6133 = vmatmul.bf16.gmra.mxu0 %v4935
        %v6134 = vpop.f32.mrf.mxu0
        %v6135 = vadd.f32 %v6046, %v6134
        %v6136 = vpop.f32.mrf.mxu0
        %v6137 = vadd.f32 %v6048, %v6136
        %6138 = vmatmul.bf16.gmra.mxu0 %v4947
        %v6139 = vpop.f32.mrf.mxu0
        %v6140 = vadd.f32 %v6051, %v6139
        %v6141 = vpop.f32.mrf.mxu0
        %v6142 = vadd.f32 %v6053, %v6141
        %6143 = vmatmul.bf16.gmra.mxu0 %v4959
        %v6144 = vpop.f32.mrf.mxu0
        %v6145 = vadd.f32 %v6056, %v6144
        %v6146 = vpop.f32.mrf.mxu0
        %v6147 = vadd.f32 %v6058, %v6146
        %6148 = vmatmul.bf16.gmra.mxu0 %v4971
        %v6149 = vpop.f32.mrf.mxu0
        %v6150 = vadd.f32 %v6061, %v6149
        %v6151 = vpop.f32.mrf.mxu0
        %v6152 = vadd.f32 %v6063, %v6151
        %6153 = vmatmul.bf16.gmra.mxu0 %v4983
        %v6154 = vpop.f32.mrf.mxu0
        %v6155 = vadd.f32 %v6066, %v6154
        %v6156 = vpop.f32.mrf.mxu0
        %v6157 = vadd.f32 %v6068, %v6156
        %6158 = vmatmul.bf16.gmra.mxu0 %v4995
        %v6159 = vpop.f32.mrf.mxu0
        %v6160 = vadd.f32 %v6071, %v6159
        %v6161 = vpop.f32.mrf.mxu0
        %v6162 = vadd.f32 %v6073, %v6161
        %6163 = vmatmul.bf16.gmra.mxu0 %v5007
        %v6164 = vpop.f32.mrf.mxu0
        %v6165 = vadd.f32 %v6076, %v6164
        %v6166 = vpop.f32.mrf.mxu0
        %v6167 = vadd.f32 %v6078, %v6166
        %6168 = vmatmul.bf16.gmra.mxu0 %v5019
        %v6169 = vpop.f32.mrf.mxu0
        %v6170 = vadd.f32 %v6081, %v6169
        %v6171 = vpop.f32.mrf.mxu0
        %v6172 = vadd.f32 %v6083, %v6171
        %6173 = vmatmul.bf16.gmra.mxu0 %v5031
        %v6174 = vpop.f32.mrf.mxu0
        %v6175 = vadd.f32 %v6086, %v6174
        %v6176 = vpop.f32.mrf.mxu0
        %v6177 = vadd.f32 %v6088, %v6176
        %6178 = vmatmul.bf16.gmra.mxu0 %v5043
        %v6179 = vpop.f32.mrf.mxu0
        %v6180 = vadd.f32 %v6091, %v6179
        %v6181 = vpop.f32.mrf.mxu0
        %v6182 = vadd.f32 %v6093, %v6181
        %6183 = vmatmul.bf16.gmra.mxu0 %v5160
        %v6184 = vpop.f32.mrf.mxu0
        %v6185 = vadd.f32 %v6096, %v6184
        %v6186 = vpop.f32.mrf.mxu0
        %v6187 = vadd.f32 %v6098, %v6186
        %6188 = vdwg.mxu0
        %6189 = vmatpush.bf16.msra.mxu0 %v5647
        %6190 = vmatpush.bf16.msra.mxu0 %v5646
        %6191 = vmatpush.bf16.msra.mxu0 %v5645
        %6192 = vmatpush.bf16.msra.mxu0 %v5644
        %6193 = vmatpush.bf16.msra.mxu0 %v5643
        %6194 = vmatpush.bf16.msra.mxu0 %v5642
        %6195 = vmatpush.bf16.msra.mxu0 %v5641
        %6196 = vmatpush.bf16.msra.mxu0 %v5640
        %6197 = vmatmul.bf16.gmra.mxu0 %v5091
        %v6198 = vpop.f32.mrf.mxu0
        %v6199 = vadd.f32 %v6110, %v6198
        %v6200 = vpop.f32.mrf.mxu0
        %v6201 = vadd.f32 %v6112, %v6200
        %6202 = vmatmul.bf16.gmra.mxu0 %v5094
        %v6203 = vpop.f32.mrf.mxu0
        %v6204 = vadd.f32 %v6115, %v6203
        %v6205 = vpop.f32.mrf.mxu0
        %v6206 = vadd.f32 %v6117, %v6205
        %6207 = vmatmul.bf16.gmra.mxu0 %v5097
        %v6208 = vpop.f32.mrf.mxu0
        %v6209 = vadd.f32 %v6120, %v6208
        %v6210 = vpop.f32.mrf.mxu0
        %v6211 = vadd.f32 %v6122, %v6210
        %6212 = vmatmul.bf16.gmra.mxu0 %v5100
        %v6213 = vpop.f32.mrf.mxu0
        %v6214 = vadd.f32 %v6125, %v6213
        %v6215 = vpop.f32.mrf.mxu0
        %v6216 = vadd.f32 %v6127, %v6215
        %6217 = vmatmul.bf16.gmra.mxu0 %v5103
        %v6218 = vpop.f32.mrf.mxu0
        %v6219 = vadd.f32 %v6130, %v6218
        %v6220 = vpop.f32.mrf.mxu0
        %v6221 = vadd.f32 %v6132, %v6220
        %6222 = vmatmul.bf16.gmra.mxu0 %v5106
        %v6223 = vpop.f32.mrf.mxu0
        %v6224 = vadd.f32 %v6135, %v6223
        %v6225 = vpop.f32.mrf.mxu0
        %v6226 = vadd.f32 %v6137, %v6225
        %6227 = vmatmul.bf16.gmra.mxu0 %v5109
        %v6228 = vpop.f32.mrf.mxu0
        %v6229 = vadd.f32 %v6140, %v6228
        %v6230 = vpop.f32.mrf.mxu0
        %v6231 = vadd.f32 %v6142, %v6230
        %6232 = vmatmul.bf16.gmra.mxu0 %v5112
        %v6233 = vpop.f32.mrf.mxu0
        %v6234 = vadd.f32 %v6145, %v6233
        %v6235 = vpop.f32.mrf.mxu0
        %v6236 = vadd.f32 %v6147, %v6235
        %6237 = vmatmul.bf16.gmra.mxu0 %v5115
        %v6238 = vpop.f32.mrf.mxu0
        %v6239 = vadd.f32 %v6150, %v6238
        %v6240 = vpop.f32.mrf.mxu0
        %v6241 = vadd.f32 %v6152, %v6240
        %6242 = vmatmul.bf16.gmra.mxu0 %v5118
        %v6243 = vpop.f32.mrf.mxu0
        %v6244 = vadd.f32 %v6155, %v6243
        %v6245 = vpop.f32.mrf.mxu0
        %v6246 = vadd.f32 %v6157, %v6245
        %6247 = vmatmul.bf16.gmra.mxu0 %v5121
        %v6248 = vpop.f32.mrf.mxu0
        %v6249 = vadd.f32 %v6160, %v6248
        %v6250 = vpop.f32.mrf.mxu0
        %v6251 = vadd.f32 %v6162, %v6250
        %6252 = vmatmul.bf16.gmra.mxu0 %v5124
        %v6253 = vpop.f32.mrf.mxu0
        %v6254 = vadd.f32 %v6165, %v6253
        %v6255 = vpop.f32.mrf.mxu0
        %v6256 = vadd.f32 %v6167, %v6255
        %6257 = vmatmul.bf16.gmra.mxu0 %v5127
        %v6258 = vpop.f32.mrf.mxu0
        %v6259 = vadd.f32 %v6170, %v6258
        %v6260 = vpop.f32.mrf.mxu0
        %v6261 = vadd.f32 %v6172, %v6260
        %6262 = vmatmul.bf16.gmra.mxu0 %v5130
        %v6263 = vpop.f32.mrf.mxu0
        %v6264 = vadd.f32 %v6175, %v6263
        %v6265 = vpop.f32.mrf.mxu0
        %v6266 = vadd.f32 %v6177, %v6265
        %6267 = vmatmul.bf16.gmra.mxu0 %v5133
        %v6268 = vpop.f32.mrf.mxu0
        %v6269 = vadd.f32 %v6180, %v6268
        %v6270 = vpop.f32.mrf.mxu0
        %v6271 = vadd.f32 %v6182, %v6270
        %6272 = vmatmul.bf16.gmra.mxu0 %v5166
        %v6273 = vpop.f32.mrf.mxu0
        %v6274 = vadd.f32 %v6185, %v6273
        %v6275 = vpop.f32.mrf.mxu0
        %v6276 = vadd.f32 %v6187, %v6275
        %6277 = vdwg.mxu0
        %6278 = vmatpush.bf16.msra.mxu0 %v5655
        %6279 = vmatpush.bf16.msra.mxu0 %v5654
        %6280 = vmatpush.bf16.msra.mxu0 %v5653
        %6281 = vmatpush.bf16.msra.mxu0 %v5652
        %6282 = vmatpush.bf16.msra.mxu0 %v5651
        %6283 = vmatpush.bf16.msra.mxu0 %v5650
        %6284 = vmatpush.bf16.msra.mxu0 %v5649
        %6285 = vmatpush.bf16.msra.mxu0 %v5648
        %6286 = vmatmul.bf16.gmra.mxu0 %v4833
        %v6287 = vpop.f32.mrf.mxu0
        %v6288 = vadd.f32 %v6199, %v6287
        %v6289 = vpop.f32.mrf.mxu0
        %v6290 = vadd.f32 %v6201, %v6289
        %6291 = vmatmul.bf16.gmra.mxu0 %v4834
        %v6292 = vpop.f32.mrf.mxu0
        %v6293 = vadd.f32 %v6204, %v6292
        %v6294 = vpop.f32.mrf.mxu0
        %v6295 = vadd.f32 %v6206, %v6294
        %6296 = vmatmul.bf16.gmra.mxu0 %v4835
        %v6297 = vpop.f32.mrf.mxu0
        %v6298 = vadd.f32 %v6209, %v6297
        %v6299 = vpop.f32.mrf.mxu0
        %v6300 = vadd.f32 %v6211, %v6299
        %6301 = vmatmul.bf16.gmra.mxu0 %v4836
        %v6302 = vpop.f32.mrf.mxu0
        %v6303 = vadd.f32 %v6214, %v6302
        %v6304 = vpop.f32.mrf.mxu0
        %v6305 = vadd.f32 %v6216, %v6304
        %6306 = vmatmul.bf16.gmra.mxu0 %v4837
        %v6307 = vpop.f32.mrf.mxu0
        %v6308 = vadd.f32 %v6219, %v6307
        %v6309 = vpop.f32.mrf.mxu0
        %v6310 = vadd.f32 %v6221, %v6309
        %6311 = vmatmul.bf16.gmra.mxu0 %v4838
        %v6312 = vpop.f32.mrf.mxu0
        %v6313 = vadd.f32 %v6224, %v6312
        %v6314 = vpop.f32.mrf.mxu0
        %v6315 = vadd.f32 %v6226, %v6314
        %6316 = vmatmul.bf16.gmra.mxu0 %v4839
        %v6317 = vpop.f32.mrf.mxu0
        %v6318 = vadd.f32 %v6229, %v6317
        %v6319 = vpop.f32.mrf.mxu0
        %v6320 = vadd.f32 %v6231, %v6319
        %6321 = vmatmul.bf16.gmra.mxu0 %v4840
        %v6322 = vpop.f32.mrf.mxu0
        %v6323 = vadd.f32 %v6234, %v6322
        %v6324 = vpop.f32.mrf.mxu0
        %v6325 = vadd.f32 %v6236, %v6324
        %6326 = vmatmul.bf16.gmra.mxu0 %v4841
        %v6327 = vpop.f32.mrf.mxu0
        %v6328 = vadd.f32 %v6239, %v6327
        %v6329 = vpop.f32.mrf.mxu0
        %v6330 = vadd.f32 %v6241, %v6329
        %6331 = vmatmul.bf16.gmra.mxu0 %v4842
        %v6332 = vpop.f32.mrf.mxu0
        %v6333 = vadd.f32 %v6244, %v6332
        %v6334 = vpop.f32.mrf.mxu0
        %v6335 = vadd.f32 %v6246, %v6334
        %6336 = vmatmul.bf16.gmra.mxu0 %v4843
        %v6337 = vpop.f32.mrf.mxu0
        %v6338 = vadd.f32 %v6249, %v6337
        %v6339 = vpop.f32.mrf.mxu0
        %v6340 = vadd.f32 %v6251, %v6339
        %6341 = vmatmul.bf16.gmra.mxu0 %v4844
        %v6342 = vpop.f32.mrf.mxu0
        %v6343 = vadd.f32 %v6254, %v6342
        %v6344 = vpop.f32.mrf.mxu0
        %v6345 = vadd.f32 %v6256, %v6344
        %6346 = vmatmul.bf16.gmra.mxu0 %v4845
        %v6347 = vpop.f32.mrf.mxu0
        %v6348 = vadd.f32 %v6259, %v6347
        %v6349 = vpop.f32.mrf.mxu0
        %v6350 = vadd.f32 %v6261, %v6349
        %6351 = vmatmul.bf16.gmra.mxu0 %v4846
        %v6352 = vpop.f32.mrf.mxu0
        %v6353 = vadd.f32 %v6264, %v6352
        %v6354 = vpop.f32.mrf.mxu0
        %v6355 = vadd.f32 %v6266, %v6354
        %6356 = vmatmul.bf16.gmra.mxu0 %v4847
        %v6357 = vpop.f32.mrf.mxu0
        %v6358 = vadd.f32 %v6269, %v6357
        %v6359 = vpop.f32.mrf.mxu0
        %v6360 = vadd.f32 %v6271, %v6359
        %6361 = vmatmul.bf16.gmra.mxu0 %v663
        %v6362 = vpop.f32.mrf.mxu0
        %v6363 = vadd.f32 %v6274, %v6362
        %v6364 = vpop.f32.mrf.mxu0
        %v6365 = vadd.f32 %v6276, %v6364
        %6366 = vdwg.mxu0
        %6367 = vmatpush.bf16.msra.mxu0 %v5663
        %6368 = vmatpush.bf16.msra.mxu0 %v5662
        %6369 = vmatpush.bf16.msra.mxu0 %v5661
        %6370 = vmatpush.bf16.msra.mxu0 %v5660
        %6371 = vmatpush.bf16.msra.mxu0 %v5659
        %6372 = vmatpush.bf16.msra.mxu0 %v5658
        %6373 = vmatpush.bf16.msra.mxu0 %v5657
        %6374 = vmatpush.bf16.msra.mxu0 %v5656
        %6375 = vmatmul.bf16.gmra.mxu0 %v4887
        %v6376 = vpop.f32.mrf.mxu0
        %v6377 = vadd.f32 %v6288, %v6376
        %v6378 = vpop.f32.mrf.mxu0
        %v6379 = vadd.f32 %v6290, %v6378
        %6380 = vmatmul.bf16.gmra.mxu0 %v4899
        %v6381 = vpop.f32.mrf.mxu0
        %v6382 = vadd.f32 %v6293, %v6381
        %v6383 = vpop.f32.mrf.mxu0
        %v6384 = vadd.f32 %v6295, %v6383
        %6385 = vmatmul.bf16.gmra.mxu0 %v4911
        %v6386 = vpop.f32.mrf.mxu0
        %v6387 = vadd.f32 %v6298, %v6386
        %v6388 = vpop.f32.mrf.mxu0
        %v6389 = vadd.f32 %v6300, %v6388
        %6390 = vmatmul.bf16.gmra.mxu0 %v4923
        %v6391 = vpop.f32.mrf.mxu0
        %v6392 = vadd.f32 %v6303, %v6391
        %v6393 = vpop.f32.mrf.mxu0
        %v6394 = vadd.f32 %v6305, %v6393
        %6395 = vmatmul.bf16.gmra.mxu0 %v4935
        %v6396 = vpop.f32.mrf.mxu0
        %v6397 = vadd.f32 %v6308, %v6396
        %v6398 = vpop.f32.mrf.mxu0
        %v6399 = vadd.f32 %v6310, %v6398
        %6400 = vmatmul.bf16.gmra.mxu0 %v4947
        %v6401 = vpop.f32.mrf.mxu0
        %v6402 = vadd.f32 %v6313, %v6401
        %v6403 = vpop.f32.mrf.mxu0
        %v6404 = vadd.f32 %v6315, %v6403
        %6405 = vmatmul.bf16.gmra.mxu0 %v4959
        %v6406 = vpop.f32.mrf.mxu0
        %v6407 = vadd.f32 %v6318, %v6406
        %v6408 = vpop.f32.mrf.mxu0
        %v6409 = vadd.f32 %v6320, %v6408
        %6410 = vmatmul.bf16.gmra.mxu0 %v4971
        %v6411 = vpop.f32.mrf.mxu0
        %v6412 = vadd.f32 %v6323, %v6411
        %v6413 = vpop.f32.mrf.mxu0
        %v6414 = vadd.f32 %v6325, %v6413
        %6415 = vmatmul.bf16.gmra.mxu0 %v4983
        %v6416 = vpop.f32.mrf.mxu0
        %v6417 = vadd.f32 %v6328, %v6416
        %v6418 = vpop.f32.mrf.mxu0
        %v6419 = vadd.f32 %v6330, %v6418
        %6420 = vmatmul.bf16.gmra.mxu0 %v4995
        %v6421 = vpop.f32.mrf.mxu0
        %v6422 = vadd.f32 %v6333, %v6421
        %v6423 = vpop.f32.mrf.mxu0
        %v6424 = vadd.f32 %v6335, %v6423
        %6425 = vmatmul.bf16.gmra.mxu0 %v5007
        %v6426 = vpop.f32.mrf.mxu0
        %v6427 = vadd.f32 %v6338, %v6426
        %v6428 = vpop.f32.mrf.mxu0
        %v6429 = vadd.f32 %v6340, %v6428
        %6430 = vmatmul.bf16.gmra.mxu0 %v5019
        %v6431 = vpop.f32.mrf.mxu0
        %v6432 = vadd.f32 %v6343, %v6431
        %v6433 = vpop.f32.mrf.mxu0
        %v6434 = vadd.f32 %v6345, %v6433
        %6435 = vmatmul.bf16.gmra.mxu0 %v5031
        %v6436 = vpop.f32.mrf.mxu0
        %v6437 = vadd.f32 %v6348, %v6436
        %v6438 = vpop.f32.mrf.mxu0
        %v6439 = vadd.f32 %v6350, %v6438
        %6440 = vmatmul.bf16.gmra.mxu0 %v5043
        %v6441 = vpop.f32.mrf.mxu0
        %v6442 = vadd.f32 %v6353, %v6441
        %v6443 = vpop.f32.mrf.mxu0
        %v6444 = vadd.f32 %v6355, %v6443
        %6445 = vmatmul.bf16.gmra.mxu0 %v5160
        %v6446 = vpop.f32.mrf.mxu0
        %v6447 = vadd.f32 %v6358, %v6446
        %v6448 = vpop.f32.mrf.mxu0
        %v6449 = vadd.f32 %v6360, %v6448
        %6450 = vmatmul.bf16.gmra.mxu0 %v709
        %v6451 = vpop.f32.mrf.mxu0
        %v6452 = vadd.f32 %v6363, %v6451
        %v6453 = vpop.f32.mrf.mxu0
        %v6454 = vadd.f32 %v6365, %v6453
        %6455 = vdwg.mxu0
        %6456 = vmatpush.bf16.msra.mxu0 %v5671
        %6457 = vmatpush.bf16.msra.mxu0 %v5670
        %6458 = vmatpush.bf16.msra.mxu0 %v5669
        %6459 = vmatpush.bf16.msra.mxu0 %v5668
        %6460 = vmatpush.bf16.msra.mxu0 %v5667
        %6461 = vmatpush.bf16.msra.mxu0 %v5666
        %6462 = vmatpush.bf16.msra.mxu0 %v5665
        %6463 = vmatpush.bf16.msra.mxu0 %v5664
        %6464 = vmatmul.bf16.gmra.mxu0 %v5094
        %v6465 = vpop.f32.mrf.mxu0
        %v6466 = vadd.f32 %v6377, %v6465
        %v6467 = vpop.f32.mrf.mxu0
        %v6468 = vadd.f32 %v6379, %v6467
        %6469 = vmatmul.bf16.gmra.mxu0 %v5097
        %v6470 = vpop.f32.mrf.mxu0
        %v6471 = vadd.f32 %v6382, %v6470
        %v6472 = vpop.f32.mrf.mxu0
        %v6473 = vadd.f32 %v6384, %v6472
        %6474 = vmatmul.bf16.gmra.mxu0 %v5100
        %v6475 = vpop.f32.mrf.mxu0
        %v6476 = vadd.f32 %v6387, %v6475
        %v6477 = vpop.f32.mrf.mxu0
        %v6478 = vadd.f32 %v6389, %v6477
        %6479 = vmatmul.bf16.gmra.mxu0 %v5103
        %v6480 = vpop.f32.mrf.mxu0
        %v6481 = vadd.f32 %v6392, %v6480
        %v6482 = vpop.f32.mrf.mxu0
        %v6483 = vadd.f32 %v6394, %v6482
        %6484 = vmatmul.bf16.gmra.mxu0 %v5106
        %v6485 = vpop.f32.mrf.mxu0
        %v6486 = vadd.f32 %v6397, %v6485
        %v6487 = vpop.f32.mrf.mxu0
        %v6488 = vadd.f32 %v6399, %v6487
        %6489 = vmatmul.bf16.gmra.mxu0 %v5109
        %v6490 = vpop.f32.mrf.mxu0
        %v6491 = vadd.f32 %v6402, %v6490
        %v6492 = vpop.f32.mrf.mxu0
        %v6493 = vadd.f32 %v6404, %v6492
        %6494 = vmatmul.bf16.gmra.mxu0 %v5112
        %v6495 = vpop.f32.mrf.mxu0
        %v6496 = vadd.f32 %v6407, %v6495
        %v6497 = vpop.f32.mrf.mxu0
        %v6498 = vadd.f32 %v6409, %v6497
        %6499 = vmatmul.bf16.gmra.mxu0 %v5115
        %v6500 = vpop.f32.mrf.mxu0
        %v6501 = vadd.f32 %v6412, %v6500
        %v6502 = vpop.f32.mrf.mxu0
        %v6503 = vadd.f32 %v6414, %v6502
        %6504 = vmatmul.bf16.gmra.mxu0 %v5118
        %v6505 = vpop.f32.mrf.mxu0
        %v6506 = vadd.f32 %v6417, %v6505
        %v6507 = vpop.f32.mrf.mxu0
        %v6508 = vadd.f32 %v6419, %v6507
        %6509 = vmatmul.bf16.gmra.mxu0 %v5121
        %v6510 = vpop.f32.mrf.mxu0
        %v6511 = vadd.f32 %v6422, %v6510
        %v6512 = vpop.f32.mrf.mxu0
        %v6513 = vadd.f32 %v6424, %v6512
        %6514 = vmatmul.bf16.gmra.mxu0 %v5124
        %v6515 = vpop.f32.mrf.mxu0
        %v6516 = vadd.f32 %v6427, %v6515
        %v6517 = vpop.f32.mrf.mxu0
        %v6518 = vadd.f32 %v6429, %v6517
        %6519 = vmatmul.bf16.gmra.mxu0 %v5127
        %v6520 = vpop.f32.mrf.mxu0
        %v6521 = vadd.f32 %v6432, %v6520
        %v6522 = vpop.f32.mrf.mxu0
        %v6523 = vadd.f32 %v6434, %v6522
        %6524 = vmatmul.bf16.gmra.mxu0 %v5130
        %v6525 = vpop.f32.mrf.mxu0
        %v6526 = vadd.f32 %v6437, %v6525
        %v6527 = vpop.f32.mrf.mxu0
        %v6528 = vadd.f32 %v6439, %v6527
        %6529 = vmatmul.bf16.gmra.mxu0 %v5133
        %v6530 = vpop.f32.mrf.mxu0
        %v6531 = vadd.f32 %v6442, %v6530
        %v6532 = vpop.f32.mrf.mxu0
        %v6533 = vadd.f32 %v6444, %v6532
        %6534 = vmatmul.bf16.gmra.mxu0 %v5166
        %v6535 = vpop.f32.mrf.mxu0
        %v6536 = vadd.f32 %v6447, %v6535
        %v6537 = vpop.f32.mrf.mxu0
        %v6538 = vadd.f32 %v6449, %v6537
        %6539 = vmatmul.bf16.gmra.mxu0 %v941
        %v6540 = vpop.f32.mrf.mxu0
        %v6541 = vadd.f32 %v6452, %v6540
        %v6542 = vpop.f32.mrf.mxu0
        %v6543 = vadd.f32 %v6454, %v6542
        %6544 = vdwg.mxu0
        %v6545 = vld [vmem:[%s8] sm:$0x1]
        %v6547 = vperm.slane %v6545, 0
        %v6549 = vmul.f32 %v6466, %v6547
        %v6550 = vmul.f32 %v6468, %v6547
        %v6551 = vmul.f32 %v6471, %v6547
        %v6552 = vmul.f32 %v6473, %v6547
        %v6553 = vmul.f32 %v6476, %v6547
        %v6554 = vmul.f32 %v6478, %v6547
        %v6555 = vmul.f32 %v6481, %v6547
        %v6556 = vmul.f32 %v6483, %v6547
        %v6557 = vmul.f32 %v6486, %v6547
        %v6558 = vmul.f32 %v6488, %v6547
        %v6559 = vmul.f32 %v6491, %v6547
        %v6560 = vmul.f32 %v6493, %v6547
        %v6561 = vmul.f32 %v6496, %v6547
        %v6562 = vmul.f32 %v6498, %v6547
        %v6563 = vmul.f32 %v6501, %v6547
        %v6564 = vmul.f32 %v6503, %v6547
        %v6565 = vmul.f32 %v6506, %v6547
        %v6566 = vmul.f32 %v6508, %v6547
        %v6567 = vmul.f32 %v6511, %v6547
        %v6568 = vmul.f32 %v6513, %v6547
        %v6569 = vmul.f32 %v6516, %v6547
        %v6570 = vmul.f32 %v6518, %v6547
        %v6571 = vmul.f32 %v6521, %v6547
        %v6572 = vmul.f32 %v6523, %v6547
        %v6573 = vmul.f32 %v6526, %v6547
        %v6574 = vmul.f32 %v6528, %v6547
        %v6575 = vmul.f32 %v6531, %v6547
        %v6576 = vmul.f32 %v6533, %v6547
        %v6577 = vmul.f32 %v6536, %v6547
        %v6578 = vmul.f32 %v6538, %v6547
        %v6579 = vmul.f32 %v6541, %v6547
        %v6580 = vmul.f32 %v6543, %v6547
        %v6581 = vld [vmem:[%s9] sm:$0x1]
        %v6583 = vperm.slane %v6581, 0
        %v6585 = vadd.f32 %v6549, %v6583
        %v6586 = vadd.f32 %v6550, %v6583
        %v6587 = vadd.f32 %v6551, %v6583
        %v6588 = vadd.f32 %v6552, %v6583
        %v6589 = vadd.f32 %v6553, %v6583
        %v6590 = vadd.f32 %v6554, %v6583
        %v6591 = vadd.f32 %v6555, %v6583
        %v6592 = vadd.f32 %v6556, %v6583
        %v6593 = vadd.f32 %v6557, %v6583
        %v6594 = vadd.f32 %v6558, %v6583
        %v6595 = vadd.f32 %v6559, %v6583
        %v6596 = vadd.f32 %v6560, %v6583
        %v6597 = vadd.f32 %v6561, %v6583
        %v6598 = vadd.f32 %v6562, %v6583
        %v6599 = vadd.f32 %v6563, %v6583
        %v6600 = vadd.f32 %v6564, %v6583
        %v6601 = vadd.f32 %v6565, %v6583
        %v6602 = vadd.f32 %v6566, %v6583
        %v6603 = vadd.f32 %v6567, %v6583
        %v6604 = vadd.f32 %v6568, %v6583
        %v6605 = vadd.f32 %v6569, %v6583
        %v6606 = vadd.f32 %v6570, %v6583
        %v6607 = vadd.f32 %v6571, %v6583
        %v6608 = vadd.f32 %v6572, %v6583
        %v6609 = vadd.f32 %v6573, %v6583
        %v6610 = vadd.f32 %v6574, %v6583
        %v6611 = vadd.f32 %v6575, %v6583
        %v6612 = vadd.f32 %v6576, %v6583
        %v6613 = vadd.f32 %v6577, %v6583
        %v6614 = vadd.f32 %v6578, %v6583
        %v6615 = vadd.f32 %v6579, %v6583
        %v6616 = vadd.f32 %v6580, %v6583
        %v6617 = vmax.f32 %v6585, 0.0
        %v6618 = vmax.f32 %v6586, 0.0
        %v6619 = vmax.f32 %v6587, 0.0
        %v6620 = vmax.f32 %v6588, 0.0
        %v6621 = vmax.f32 %v6589, 0.0
        %v6622 = vmax.f32 %v6590, 0.0
        %v6623 = vmax.f32 %v6591, 0.0
        %v6624 = vmax.f32 %v6592, 0.0
        %v6625 = vmax.f32 %v6593, 0.0
        %v6626 = vmax.f32 %v6594, 0.0
        %v6627 = vmax.f32 %v6595, 0.0
        %v6628 = vmax.f32 %v6596, 0.0
        %v6629 = vmax.f32 %v6597, 0.0
        %v6630 = vmax.f32 %v6598, 0.0
        %v6631 = vmax.f32 %v6599, 0.0
        %v6632 = vmax.f32 %v6600, 0.0
        %v6633 = vmax.f32 %v6601, 0.0
        %v6634 = vmax.f32 %v6602, 0.0
        %v6635 = vmax.f32 %v6603, 0.0
        %v6636 = vmax.f32 %v6604, 0.0
        %v6637 = vmax.f32 %v6605, 0.0
        %v6638 = vmax.f32 %v6606, 0.0
        %v6639 = vmax.f32 %v6607, 0.0
        %v6640 = vmax.f32 %v6608, 0.0
        %v6641 = vmax.f32 %v6609, 0.0
        %v6642 = vmax.f32 %v6610, 0.0
        %v6643 = vmax.f32 %v6611, 0.0
        %v6644 = vmax.f32 %v6612, 0.0
        %v6645 = vmax.f32 %v6613, 0.0
        %v6646 = vmax.f32 %v6614, 0.0
        %v6647 = vmax.f32 %v6615, 0.0
        %v6648 = vmax.f32 %v6616, 0.0
        %6649 = vst [vmem:[%s393] sm:$0xff] %v6617
        %6650 = vst [vmem:[%s393 + $0x8] sm:$0xff] %v6618
        %6651 = vst [vmem:[%s393 + $0x10] sm:$0xff] %v6619
        %6652 = vst [vmem:[%s393 + $0x18] sm:$0xff] %v6620
        %6653 = vst [vmem:[%s393 + $0x20] sm:$0xff] %v6621
        %6654 = vst [vmem:[%s393 + $0x28] sm:$0xff] %v6622
        %6655 = vst [vmem:[%s393 + $0x30] sm:$0xff] %v6623
        %6656 = vst [vmem:[%s393 + $0x38] sm:$0xff] %v6624
        %6657 = vst [vmem:[%s393 + $0x40] sm:$0xff] %v6625
        %6658 = vst [vmem:[%s393 + $0x48] sm:$0xff] %v6626
        %6659 = vst [vmem:[%s393 + $0x50] sm:$0xff] %v6627
        %6660 = vst [vmem:[%s393 + $0x58] sm:$0xff] %v6628
        %6661 = vst [vmem:[%s393 + $0x60] sm:$0xff] %v6629
        %6662 = vst [vmem:[%s393 + $0x68] sm:$0xff] %v6630
        %6663 = vst [vmem:[%s393 + $0x70] sm:$0xff] %v6631
        %6664 = vst [vmem:[%s393 + $0x78] sm:$0xff] %v6632
        %6665 = vst [vmem:[%s393 + $0x80] sm:$0xff] %v6633
        %6666 = vst [vmem:[%s393 + $0x88] sm:$0xff] %v6634
        %6667 = vst [vmem:[%s393 + $0x90] sm:$0xff] %v6635
        %6668 = vst [vmem:[%s393 + $0x98] sm:$0xff] %v6636
        %6669 = vst [vmem:[%s393 + $0xa0] sm:$0xff] %v6637
        %6670 = vst [vmem:[%s393 + $0xa8] sm:$0xff] %v6638
        %6671 = vst [vmem:[%s393 + $0xb0] sm:$0xff] %v6639
        %6672 = vst [vmem:[%s393 + $0xb8] sm:$0xff] %v6640
        %6673 = vst [vmem:[%s393 + $0xc0] sm:$0xff] %v6641
        %6674 = vst [vmem:[%s393 + $0xc8] sm:$0xff] %v6642
        %6675 = vst [vmem:[%s393 + $0xd0] sm:$0xff] %v6643
        %6676 = vst [vmem:[%s393 + $0xd8] sm:$0xff] %v6644
        %6677 = vst [vmem:[%s393 + $0xe0] sm:$0xff] %v6645
        %6678 = vst [vmem:[%s393 + $0xe8] sm:$0xff] %v6646
        %6679 = vst [vmem:[%s393 + $0xf0] sm:$0xff] %v6647
        %6680 = vst [vmem:[%s393 + $0xf8] sm:$0xff] %v6648
        %p6681 = scmp.lt.s32.totalorder %s23, 1
        %s6682 = scalar_select %p6681, %s23, 1
        %s6683 = smul.addr %s6682, 32
        %s6684 = smul.addr %s6683, 8
        %s6685 = scalar_lea.vmem %s10, %s6684
        // Predicated region
        $region69: #{unet_conv2_forward.1} parent=59 // pred_check
          %p6686 = pneg %p256
        $region70: #{unet_conv2_forward.1} parent=59 // pred_check_branch
          %6688 = sbr.rel (%p6686) target = $region72
        $region71: #{unet_conv2_forward.1} parent=59 // pred_region
          _
        $region72: #{unet_conv2_forward.1} parent=59 // pred_fallthru
          _
      $region60: #{unet_conv2_forward.1} parent=5 // pred_fallthru
        _
      %p6689 = scmp.le.s32.totalorder 2, %s18
      // Predicated region
      $region73: #{unet_conv2_forward.1} parent=5 // pred_check
        %p6690 = pneg %p6689
      $region74: #{unet_conv2_forward.1} parent=5 // pred_check_branch
        %6692 = sbr.rel (%p6690) target = $region76
      $region75: #{unet_conv2_forward.1} parent=5 // pred_region
        %s6693 = ssub.s32 %s18, 2
        // Predicated region
        $region77: #{unet_conv2_forward.1} parent=75 // pred_check
          %p6694 = pneg %p262
        $region78: #{unet_conv2_forward.1} parent=75 // pred_check_branch
          %6696 = sbr.rel (%p6694) target = $region80
        $region79: #{unet_conv2_forward.1} parent=75 // pred_region
          %p6697 = scmp.lt.s32.totalorder %s24, 1
          %s6698 = scalar_select %p6697, %s24, 1
          %s6699 = smul.addr %s6698, 32
          %s6700 = smul.addr %s6699, 8
          %s6701 = scalar_lea.vmem %s10, %s6700
        $region80: #{unet_conv2_forward.1} parent=75 // pred_fallthru
          _
      $region76: #{unet_conv2_forward.1} parent=5 // pred_fallthru
        _
    $region6: #{unet_conv2_forward.1} parent=1 // loop_footer
      %s22 = sadd.s32 1, %s18
    $region7: #{unet_conv2_forward.1} parent=1 // loop_footer_branch
      %17 = sbr.rel target = $region3
    $region8: #{unet_conv2_forward.1} parent=1 // loop_exit
      _
    %6702 = vsyncpa [#allocation3], 1
    %s6703 = scalar_lea.sflag [#allocation3], 1
    %6704 = vsyncpa %s6703, 1
    %6705 = vsyncpa [#allocation5], 1

</llo_original>
